<compile_context>
chip_gen: v6e
topology: v6e:2x2x1
jax: 0.10.0
libtpu: 0.0.40
codegen_flags: <defaults>
</compile_context>

<pallas_src>
import functools
import re

import jax
import jax.numpy as jnp
from jax.experimental import pallas as pl
from jax.experimental.pallas import tpu as pltpu

_LANE = 128
_SUBLANE = 8


def _dlr_kernel(logits_ref, y_ref, out_ref, *, num_classes, minimum, compute_dtype):
    """One row tile: loss = -(yth - max_non_y) / max(pi1 - pi3, minimum)."""
    logits = logits_ref[...].astype(compute_dtype)      # (bn, C)
    y = y_ref[...]                                       # (bn, 1) int32
    bn, ncls = logits.shape
    neg_inf = jnp.asarray(-jnp.inf, compute_dtype)

    # Single iota reused for every mask (fewer live (bn, C) temporaries).
    class_ids = jax.lax.broadcasted_iota(jnp.int32, (bn, ncls), 1)
    is_y = class_ids == y

    # True-class logit: exactly one hit per row, so a masked max is exact.
    yth = jnp.max(jnp.where(is_y, logits, neg_inf), axis=1, keepdims=True)

    # Top-1 value + one representative (lowest) index; tie-safe like torch.sort.
    m1 = jnp.max(logits, axis=1, keepdims=True)
    idx1 = jnp.min(jnp.where(logits == m1, class_ids, ncls), axis=1, keepdims=True)
    removed1 = class_ids == idx1
    # 2nd-largest value: remove exactly one occurrence of the top value.
    m2 = jnp.max(jnp.where(removed1, neg_inf, logits), axis=1, keepdims=True)

    # Largest non-true-class logit, derived from (m1, m2, idx1):
    #   idx1 == y -> best non-true logit is m2 (a tie with m1 still shows in m2)
    #   idx1 != y -> some non-true class attains m1
    max_non_y = jnp.where(idx1 == y, m2, m1)

    # Per-row scalars go to f32 for the final subtract / clamp / divide.
    log_diff = yth.astype(jnp.float32) - max_non_y.astype(jnp.float32)

    if num_classes > 2:
        # 3rd-largest value, again removing one occurrence at a time (tie-safe).
        idx2 = jnp.min(
            jnp.where((logits == m2) & jnp.logical_not(removed1), class_ids, ncls),
            axis=1, keepdims=True)
        m3 = jnp.max(
            jnp.where(removed1 | (class_ids == idx2), neg_inf, logits),
            axis=1, keepdims=True)
        pi_diff = m1.astype(jnp.float32) - m3.astype(jnp.float32)
    else:
        # Binary classification: denominator fixed to 1.
        pi_diff = jnp.ones_like(log_diff)

    loss = -log_diff / jnp.maximum(pi_diff, jnp.float32(minimum))    # (bn, 1) f32

    # Lane-dense store: relayout the (bn, 1) column into a (1, bn) row.  Broadcast
    # across 128 lanes and use the well-supported (bn, 128) -> (128, bn) f32 XLU
    # transpose (block_n is a multiple of 128); cost ~bn/8 granules, negligible
    # next to the 6 cross-lane reductions above, and it turns the output store
    # into dense unmasked vst + a dense HBM writeback.
    loss_t = jnp.transpose(jnp.broadcast_to(loss, (bn, _LANE)))      # (128, bn)
    out_ref[...] = loss_t[0:1, :].astype(out_ref.dtype)


def _tpu_generation():
    """Best-effort TPU generation number (e.g. 5, 6, 7) from device_kind."""
    try:
        kind = jax.devices()[0].device_kind
    except Exception:
        return None
    m = re.search(r"(\d+)", kind)
    return int(m.group(1)) if m else None


def _vmem_limit_bytes_default():
    """Generation-aware scoped-VMEM limit: ~3/4 of physical VMEM."""
    try:
        capacity = int(pltpu.get_tpu_info().vmem_capacity_bytes)
    except Exception:
        capacity = 64 * 1024 * 1024    # conservative fallback: v7x physical VMEM
    # 48 MiB on v7x (64 MiB phys), 96 MiB on v5e/v6e (128 MiB phys).
    return (capacity * 3) // 4


def _pick_block_n(n_rows, n_classes, *, in_itemsize, compute_itemsize,
                  vmem_budget_bytes, max_block_n=4096, min_grid_blocks=4):
    """Largest row tile (multiple of 128) fitting the VMEM budget.

    Per tile row: 2 double-buffered logits blocks at the streamed dtype, ~4 live
    (bn, C) temporaries at the compute dtype, the lane-padded y column
    (double-buffered) and the loss broadcast/transpose temporaries.  The tile is
    additionally clamped so the parallel row grid keeps >= min_grid_blocks blocks
    (>= 2 per TensorCore on v7x; costs nothing on single-TC v5e/v6e).
    """
    c_pad = pl.cdiv(n_classes, _LANE) * _LANE
    bytes_per_row = (2 * c_pad * in_itemsize
                     + 4 * c_pad * compute_itemsize
                     + 2 * _LANE * 4            # y column block (lane padded), x2
                     + 2 * _LANE * 4)           # loss broadcast + transpose temps
    bn = vmem_budget_bytes // bytes_per_row
    per_core_cap = pl.cdiv(pl.cdiv(n_rows, min_grid_blocks), _LANE) * _LANE
    bn = min(bn, max_block_n, per_core_cap)
    bn = max(_LANE, (bn // _LANE) * _LANE)
    return int(bn)


def dlr_loss(logits, y, *, classes, minimum=1e-08, block_n=None,
             compute_dtype=None, vmem_limit_bytes=None):
    """Pallas-backed DLR loss. logits: (N, C), y: (N,) int. Returns (N,) float32."""
    n, c = logits.shape
    assert c == classes, (c, classes)

    if vmem_limit_bytes is None:
        vmem_limit_bytes = _vmem_limit_bytes_default()

    if compute_dtype is None:
        gen = _tpu_generation()
        # bf16-native reductions only where the VPU/XLU handle bf16 (v6e / v7x);
        # v5e and unknown chips stream bf16 but reduce in f32.
        if logits.dtype == jnp.bfloat16 and gen is not None and gen >= 6:
            compute_dtype = jnp.bfloat16
        else:
            compute_dtype = jnp.float32
    compute_dtype = jnp.dtype(compute_dtype)

    if block_n is None:
        block_n = _pick_block_n(
            n, c,
            in_itemsize=jnp.dtype(logits.dtype).itemsize,
            compute_itemsize=compute_dtype.itemsize,
            vmem_budget_bytes=max(int(vmem_limit_bytes) // 3, 1 << 20))
    block_n = max(_LANE, block_n - block_n % _LANE)

    n_blocks = pl.cdiv(n, block_n)
    n_pad = n_blocks * block_n      # only the *output* is padded; inputs are not

    # No jnp.pad of logits/y: the ragged final input block reads junk rows whose
    # per-row results land in out[0, n:] and are sliced off below.  Everything in
    # the kernel is per-row, so junk rows never contaminate real rows.
    y2 = y.astype(jnp.int32).reshape(n, 1)

    kernel = functools.partial(
        _dlr_kernel, num_classes=classes, minimum=minimum,
        compute_dtype=compute_dtype)
    out = pl.pallas_call(
        kernel,
        out_shape=jax.ShapeDtypeStruct((1, n_pad), jnp.float32),
        grid_spec=pltpu.PrefetchScalarGridSpec(
            num_scalar_prefetch=0,
            grid=(n_blocks,),
            in_specs=[
                pl.BlockSpec((block_n, c), lambda i: (i, 0)),
                pl.BlockSpec((block_n, 1), lambda i: (i, 0)),
            ],
            # Lane-dense loss row: one (1, block_n) block per grid step.
            out_specs=pl.BlockSpec((1, block_n), lambda i: (0, i)),
        ),
        compiler_params=pltpu.CompilerParams(
            # "parallel" lets v7x's two TensorCores split the row grid.
            dimension_semantics=("parallel",),
            vmem_limit_bytes=int(vmem_limit_bytes),
        ),
    )(logits, y2)
    return out.reshape(n_pad)[:n]


def _dlr_loss_reference(logits, y, *, classes, minimum=1e-08):
    """Plain-JAX reference mirroring the PyTorch forward."""
    logits = logits.astype(jnp.float32)
    y_hot = jax.nn.one_hot(y, classes, dtype=jnp.bool_)
    yth = jnp.sum(jnp.where(y_hot, logits, 0.0), axis=1)
    max_non_y = jnp.max(jnp.where(y_hot, -jnp.inf, logits), axis=1)
    log_diff = yth - max_non_y
    if classes > 2:
        desc = jnp.sort(logits, axis=1)[:, ::-1]
        pi_diff = desc[:, 0] - desc[:, 2]
    else:
        pi_diff = jnp.ones_like(log_diff)
    return -log_diff / jnp.maximum(pi_diff, minimum)


if __name__ == "__main__":
    key = jax.random.PRNGKey(0)
    cases = [
        # (n, c, dtype, force_ties)
        (2048, 10, jnp.float32, False),   # multi-block parallel grid, CIFAR-like C
        (300, 5, jnp.float32, True),      # ragged N (no wrapper pad) + exact ties
        (64, 2, jnp.float32, False),      # binary classification -> denominator 1
        (512, 16, jnp.bfloat16, False),   # bf16 streaming (+ bf16 reductions on v6e+)
    ]
    for n, c, dtype, make_ties in cases:
        key, k1, k2 = jax.random.split(key, 3)
        logits = jax.random.normal(k1, (n, c), dtype=jnp.float32)
        if make_ties:
            logits = jnp.round(logits * 2.0) / 2.0   # quantize to create ties
        logits = logits.astype(dtype)
        y = jax.random.randint(k2, (n,), 0, c, dtype=jnp.int32)

        loss = dlr_loss(logits, y, classes=c)
        jax.block_until_ready(loss)

        ref = _dlr_loss_reference(logits, y, classes=c)
        assert loss.shape == (n,), (loss.shape, n)
        assert jnp.allclose(loss, ref, atol=2e-5, rtol=2e-5), (n, c, dtype)

    print("KERNEL_OK")
</pallas_src>

<mosaic_0001>
module attributes {stable_mosaic.version = 11 : i64} {
  func.func @_dlr_kernel(%arg0: i32, %arg1: memref<512x10xf32, #tpu.memory_space<vmem>>, %arg2: memref<512x1xi32, #tpu.memory_space<vmem>>, %arg3: memref<1x512xf32, #tpu.memory_space<vmem>>) attributes {dimension_semantics = [#tpu.dimension_semantics<parallel>], iteration_bounds = array<i64: 4>, scalar_prefetch = 0 : i64, scratch_operands = 0 : i64, tpu.core_type = #tpu.core_type<tc>, window_params = [{transform_indices = @transform_0, window_bounds = array<i64: 512, 10>}, {transform_indices = @transform_1, window_bounds = array<i64: 512, 1>}, {transform_indices = @transform_2, window_bounds = array<i64: 1, 512>}]} {
    %c0 = arith.constant 0 : index
    %c0_0 = arith.constant 0 : index
    %0 = vector.load %arg1[%c0, %c0_0] : memref<512x10xf32, #tpu.memory_space<vmem>>, vector<512x10xf32>
    %c0_1 = arith.constant 0 : index
    %c0_2 = arith.constant 0 : index
    %1 = vector.load %arg2[%c0_1, %c0_2] : memref<512x1xi32, #tpu.memory_space<vmem>>, vector<512x1xi32>
    %2 = tpu.iota {dimensions = array<i32: 1>} : vector<512x10xi32>
    %3 = vector.broadcast %1 : vector<512x1xi32> to vector<512x10xi32>
    %4 = arith.cmpi eq, %2, %3 : vector<512x10xi32>
    %cst = arith.constant 0xFF800000 : f32
    %5 = vector.broadcast %cst : f32 to vector<512x10xf32>
    %6 = arith.select %4, %0, %5 : vector<512x10xi1>, vector<512x10xf32>
    %cst_3 = arith.constant dense<0xFF800000> : vector<512xf32>
    %7 = vector.multi_reduction <maximumf>, %6, %cst_3 [1] : vector<512x10xf32> to vector<512xf32>
    %8 = vector.shape_cast %7 : vector<512xf32> to vector<512x1xf32>
    %cst_4 = arith.constant dense<0xFF800000> : vector<512xf32>
    %9 = vector.multi_reduction <maximumf>, %0, %cst_4 [1] : vector<512x10xf32> to vector<512xf32>
    %10 = vector.shape_cast %9 : vector<512xf32> to vector<512x1xf32>
    %11 = vector.broadcast %10 : vector<512x1xf32> to vector<512x10xf32>
    %12 = arith.cmpf oeq, %0, %11 : vector<512x10xf32>
    %c10_i32 = arith.constant 10 : i32
    %13 = vector.broadcast %c10_i32 : i32 to vector<512x10xi32>
    %14 = arith.select %12, %2, %13 : vector<512x10xi1>, vector<512x10xi32>
    %cst_5 = arith.constant dense<2147483647> : vector<512xi32>
    %15 = vector.multi_reduction <minsi>, %14, %cst_5 [1] : vector<512x10xi32> to vector<512xi32>
    %16 = vector.shape_cast %15 : vector<512xi32> to vector<512x1xi32>
    %17 = vector.broadcast %16 : vector<512x1xi32> to vector<512x10xi32>
    %18 = arith.cmpi eq, %2, %17 : vector<512x10xi32>
    %cst_6 = arith.constant 0xFF800000 : f32
    %19 = vector.broadcast %cst_6 : f32 to vector<512x10xf32>
    %20 = arith.select %18, %19, %0 : vector<512x10xi1>, vector<512x10xf32>
    %cst_7 = arith.constant dense<0xFF800000> : vector<512xf32>
    %21 = vector.multi_reduction <maximumf>, %20, %cst_7 [1] : vector<512x10xf32> to vector<512xf32>
    %22 = vector.shape_cast %21 : vector<512xf32> to vector<512x1xf32>
    %23 = arith.cmpi eq, %16, %1 : vector<512x1xi32>
    %24 = arith.select %23, %22, %10 : vector<512x1xi1>, vector<512x1xf32>
    %25 = arith.subf %8, %24 : vector<512x1xf32>
    %26 = vector.broadcast %22 : vector<512x1xf32> to vector<512x10xf32>
    %27 = arith.cmpf oeq, %0, %26 : vector<512x10xf32>
    %cst_8 = arith.constant dense<true> : vector<512x10xi1>
    %28 = arith.xori %18, %cst_8 : vector<512x10xi1>
    %29 = arith.andi %27, %28 : vector<512x10xi1>
    %c10_i32_9 = arith.constant 10 : i32
    %30 = vector.broadcast %c10_i32_9 : i32 to vector<512x10xi32>
    %31 = arith.select %29, %2, %30 : vector<512x10xi1>, vector<512x10xi32>
    %cst_10 = arith.constant dense<2147483647> : vector<512xi32>
    %32 = vector.multi_reduction <minsi>, %31, %cst_10 [1] : vector<512x10xi32> to vector<512xi32>
    %33 = vector.shape_cast %32 : vector<512xi32> to vector<512x1xi32>
    %34 = vector.broadcast %33 : vector<512x1xi32> to vector<512x10xi32>
    %35 = arith.cmpi eq, %2, %34 : vector<512x10xi32>
    %36 = arith.ori %18, %35 : vector<512x10xi1>
    %cst_11 = arith.constant 0xFF800000 : f32
    %37 = vector.broadcast %cst_11 : f32 to vector<512x10xf32>
    %38 = arith.select %36, %37, %0 : vector<512x10xi1>, vector<512x10xf32>
    %cst_12 = arith.constant dense<0xFF800000> : vector<512xf32>
    %39 = vector.multi_reduction <maximumf>, %38, %cst_12 [1] : vector<512x10xf32> to vector<512xf32>
    %40 = vector.shape_cast %39 : vector<512xf32> to vector<512x1xf32>
    %41 = arith.subf %10, %40 : vector<512x1xf32>
    %cst_13 = arith.constant 0.000000e+00 : f32
    %42 = vector.broadcast %cst_13 : f32 to vector<512x1xf32>
    %43 = arith.subf %42, %25 : vector<512x1xf32>
    %cst_14 = arith.constant 9.99999993E-9 : f32
    %44 = vector.broadcast %cst_14 : f32 to vector<512x1xf32>
    %45 = arith.maximumf %41, %44 : vector<512x1xf32>
    %46 = arith.divf %43, %45 : vector<512x1xf32>
    %47 = vector.shape_cast %46 : vector<512x1xf32> to vector<512x1xf32>
    %48 = vector.broadcast %47 : vector<512x1xf32> to vector<512x128xf32>
    %49 = tpu.transpose %48, [1, 0] : vector<512x128xf32> -> vector<128x512xf32>
    %50 = vector.extract_strided_slice %49 {offsets = [0, 0], sizes = [1, 512], strides = [1, 1]} : vector<128x512xf32> to vector<1x512xf32>
    %c0_15 = arith.constant 0 : index
    %c0_16 = arith.constant 0 : index
    %51 = vector.load %arg3[%c0_15, %c0_16] : memref<1x512xf32, #tpu.memory_space<vmem>>, vector<1x512xf32>
    tpu.vector_store %arg3[%c0_15, %c0_16], %50 {strides = array<i32>} : memref<1x512xf32, #tpu.memory_space<vmem>>, vector<1x512xf32>,
    return
  }
  func.func @transform_0(%arg0: i32) -> (i32, i32) {
    %c0_i32 = arith.constant 0 : i32
    %c0_i32_0 = arith.constant 0 : i32
    return %arg0, %c0_i32 : i32, i32
  }
  func.func @transform_1(%arg0: i32) -> (i32, i32) {
    %c0_i32 = arith.constant 0 : i32
    %c0_i32_0 = arith.constant 0 : i32
    return %arg0, %c0_i32 : i32, i32
  }
  func.func @transform_2(%arg0: i32) -> (i32, i32) {
    %c0_i32 = arith.constant 0 : i32
    %c0_i32_0 = arith.constant 0 : i32
    return %c0_i32, %arg0 : i32, i32
  }
}

</mosaic_0001>

<llo_original>
// kernel: tpu_custom_call.1
$region0: #{tpu_custom_call.1}
  #allocation0 [shape = 'u32[]', space=smem, size = 0x4, offset = 0x4, fixed_abs, tag = 'smem constant byte address 0x4 - core index']
  #allocation1 [shape = 'u32[144,128]{1,0:T(1,128)}', space=vmem, size = 0x12000, scoped, tag = 'internal scratch']
  %s0 = inlined_call_operand.vmem [shape: f32[2048,10], index: 0, kind: input, shape index: {}]
  %s1 = inlined_call_operand.vmem [shape: s32[2048,1], index: 1, kind: input, shape index: {}]
  %s2 = inlined_call_operand.hbm [shape: f32[1,2048], index: 2, kind: output, shape index: {}]
  %s3 = sld [smem:[#allocation0]]
  $region41: #{tpu_custom_call.1} parent=0
    _
  %s5 = ssub.s32 1, %s3
  %s6 = scalar_select 0, %s5, %s3
  $region1: #{tpu_custom_call.1} parent=0
    #allocation2 [shape = 'u8[4096]{0}', space=vmem, size = 0x1000, scoped, tag = 'output window, operand 0']
    #allocation3 [shape = 's32[2]{0}', space=sflag, size = 0x8, scoped, tag = 'scoped memory for tpu_custom_call.1']
    %7 = vsyncpa [#allocation3], 0
    %s8 = scalar_lea.sflag [#allocation3], 1
    %9 = vsyncpa %s8, 0
    loop: start=0, step=1, limit=6
    $region2: #{tpu_custom_call.1} parent=1 // loop_pre_header
      _
    $region3: #{tpu_custom_call.1} parent=1 // loop_header
      %s11 = sphi 0, %s15
      %p12 = scmp.ge.s32.totalorder %s11, 6
      %s21 = sphi 0, %s23
      %s24 = sphi 0, %s21
      %s25 = sphi 0, %s24
      %s41 = sphi 0, %s25
      %s47 = sphi 0, %s49
      %s50 = sphi 0, %s47
      %s51 = sphi 0, %s50
      %s67 = sphi 0, %s51
      %s73 = sphi 0, %s75
      %s76 = sphi 0, %s73
      %s77 = sphi 0, %s76
      %s93 = sphi 0, %s77
    $region4: #{tpu_custom_call.1} parent=1 // loop_header_branch
      %14 = sbr.rel (%p12) target = $region8
    $region5: #{tpu_custom_call.1} parent=1 // loop_body
      %s16 = ssub.s32 %s11, 1
      %s17 = ssub.s32 %s11, 2
      %s18 = sadd.s32 %s11, 1
      %s19 = ssub.s32 %s11, %s18
      %p20 = scmp.eq.s32.totalorder %s19, 0
      %s22 = sadd.s32 %s21, 1
      %s23 = scalar_select %p20, %s21, %s22
      %p26 = pneg %p20
      %p27 = scmp.eq.s32.totalorder %s11, 3
      %p28 = por %p26, %p27
      %p29 = scmp.ne.s32.totalorder %s21, %s24
      %p30 = scmp.eq.s32.totalorder %s11, 0
      %p31 = por %p29, %p30
      %p32 = scmp.ne.s32.totalorder %s21, %s24
      %p33 = scmp.eq.s32.totalorder %s16, 3
      %p34 = por %p32, %p33
      %p35 = scmp.ne.s32.totalorder %s24, %s25
      %p36 = scmp.eq.s32.totalorder %s16, 0
      %p37 = por %p35, %p36
      %p38 = scmp.ne.s32.totalorder %s24, %s25
      %p39 = scmp.eq.s32.totalorder %s17, 3
      %p40 = por %p38, %p39
      %p42 = scmp.ne.s32.totalorder %s25, %s41
      %p43 = scmp.eq.s32.totalorder %s17, 0
      %p44 = por %p42, %p43
      %s45 = ssub.s32 %s11, %s18
      %p46 = scmp.eq.s32.totalorder %s45, 0
      %s48 = sadd.s32 %s47, 1
      %s49 = scalar_select %p46, %s47, %s48
      %p52 = pneg %p46
      %p53 = scmp.eq.s32.totalorder %s11, 3
      %p54 = por %p52, %p53
      %p55 = scmp.ne.s32.totalorder %s47, %s50
      %p56 = scmp.eq.s32.totalorder %s11, 0
      %p57 = por %p55, %p56
      %p58 = scmp.ne.s32.totalorder %s47, %s50
      %p59 = scmp.eq.s32.totalorder %s16, 3
      %p60 = por %p58, %p59
      %p61 = scmp.ne.s32.totalorder %s50, %s51
      %p62 = scmp.eq.s32.totalorder %s16, 0
      %p63 = por %p61, %p62
      %p64 = scmp.ne.s32.totalorder %s50, %s51
      %p65 = scmp.eq.s32.totalorder %s17, 3
      %p66 = por %p64, %p65
      %p68 = scmp.ne.s32.totalorder %s51, %s67
      %p69 = scmp.eq.s32.totalorder %s17, 0
      %p70 = por %p68, %p69
      %s71 = ssub.s32 %s11, %s18
      %p72 = scmp.eq.s32.totalorder %s71, 0
      %s74 = sadd.s32 %s73, 1
      %s75 = scalar_select %p72, %s73, %s74
      %p78 = pneg %p72
      %p79 = scmp.eq.s32.totalorder %s11, 3
      %p80 = por %p78, %p79
      %p81 = scmp.ne.s32.totalorder %s73, %s76
      %p82 = scmp.eq.s32.totalorder %s11, 0
      %p83 = por %p81, %p82
      %p84 = scmp.ne.s32.totalorder %s73, %s76
      %p85 = scmp.eq.s32.totalorder %s16, 3
      %p86 = por %p84, %p85
      %p87 = scmp.ne.s32.totalorder %s76, %s77
      %p88 = scmp.eq.s32.totalorder %s16, 0
      %p89 = por %p87, %p88
      %p90 = scmp.ne.s32.totalorder %s76, %s77
      %p91 = scmp.eq.s32.totalorder %s17, 3
      %p92 = por %p90, %p91
      %p94 = scmp.ne.s32.totalorder %s77, %s93
      %p95 = scmp.eq.s32.totalorder %s17, 0
      %p96 = por %p94, %p95
      %p97 = scmp.le.s32.totalorder 1, %s11
      %p98 = scmp.lt.s32.totalorder %s11, 5
      %p99 = pnand %p97, %p98
      %p100 = pneg %p99
      // Predicated region
      $region9: #{tpu_custom_call.1} parent=5 // pred_check
        _
      $region10: #{tpu_custom_call.1} parent=5 // pred_check_branch
        %102 = sbr.rel (%p99) target = $region12
      $region11: #{tpu_custom_call.1} parent=5 // pred_region
        %s103 = ssub.s32 %s11, 1
      $region12: #{tpu_custom_call.1} parent=5 // pred_fallthru
        _
      %p104 = scmp.lt.s32.totalorder %s11, 4
      // Predicated region
      $region13: #{tpu_custom_call.1} parent=5 // pred_check
        %p105 = pneg %p104
      $region14: #{tpu_custom_call.1} parent=5 // pred_check_branch
        %107 = sbr.rel (%p105) target = $region16
      $region15: #{tpu_custom_call.1} parent=5 // pred_region
        // Predicated region
        $region17: #{tpu_custom_call.1} parent=15 // pred_check
          %p108 = pneg %p31
        $region18: #{tpu_custom_call.1} parent=15 // pred_check_branch
          %110 = sbr.rel (%p108) target = $region20
        $region19: #{tpu_custom_call.1} parent=15 // pred_region
          %s111 = smul.u32 64, %s11
          %p112 = scmp.lt.s32.totalorder %s111, 255
          %s113 = scalar_select %p112, %s111, 255
          %s114 = smul.addr %s113, 8
          %s115 = scalar_lea.vmem %s0, %s114
          %s116 = smul.u32 64, %s11
        $region20: #{tpu_custom_call.1} parent=15 // pred_fallthru
          _
        // Predicated region
        $region21: #{tpu_custom_call.1} parent=15 // pred_check
          %p117 = pneg %p57
        $region22: #{tpu_custom_call.1} parent=15 // pred_check_branch
          %119 = sbr.rel (%p117) target = $region24
        $region23: #{tpu_custom_call.1} parent=15 // pred_region
          %s120 = smul.u32 64, %s11
          %p121 = scmp.lt.s32.totalorder %s120, 255
          %s122 = scalar_select %p121, %s120, 255
          %s123 = smul.addr %s122, 8
          %s124 = scalar_lea.vmem %s1, %s123
          %s125 = smul.u32 64, %s11
        $region24: #{tpu_custom_call.1} parent=15 // pred_fallthru
          _
      $region16: #{tpu_custom_call.1} parent=5 // pred_fallthru
        _
      %p126 = scmp.le.s32.totalorder 1, %s11
      %p127 = scmp.lt.s32.totalorder %s11, 5
      %p128 = pnand %p126, %p127
      %p129 = pneg %p128
      // Predicated region
      $region25: #{tpu_custom_call.1} parent=5 // pred_check
        _
      $region26: #{tpu_custom_call.1} parent=5 // pred_check_branch
        %131 = sbr.rel (%p128) target = $region28
      $region27: #{tpu_custom_call.1} parent=5 // pred_region
        %s132 = ssub.s32 %s11, 1
        %s133 = smul.u32 64, %s16
        %p134 = scmp.lt.s32.totalorder %s133, 255
        %s135 = scalar_select %p134, %s133, 255
        %s136 = smul.addr %s135, 8
        %s137 = scalar_lea.vmem %s0, %s136
        %p138 = pneg %p37
        %p139 = pneg %p34
        %s140 = smul.u32 64, %s16
        %p141 = scmp.lt.s32.totalorder %s140, 255
        %s142 = scalar_select %p141, %s140, 255
        %s143 = smul.addr %s142, 8
        %s144 = scalar_lea.vmem %s1, %s143
        %p145 = pneg %p63
        %p146 = pneg %p60
        %p147 = pneg %p89
        %p148 = pneg %p86
        %s149 = sand.u32 %s76, 1
        %s150 = scalar_lea.sflag [#allocation3], %s149
        %s151 = sand.u32 %s76, 1
        %s152 = smul.addr %s151, 4
        %s153 = scalar_lea.vmem [#allocation2], %s152
        %s154 = smul.u32 64, %s16
        %p155 = scmp.lt.s32.totalorder %s154, 255
        %s156 = scalar_select %p155, %s154, 255
        %s157 = smul.addr %s156, 8
        %s158 = scalar_lea.vmem %s0, %s157
        %s159 = smul.u32 64, %s16
        %s160 = smul.u32 64, %s16
        %p161 = scmp.lt.s32.totalorder %s160, 255
        %s162 = scalar_select %p161, %s160, 255
        %s163 = smul.addr %s162, 8
        %s164 = scalar_lea.vmem %s1, %s163
        %s165 = smul.u32 64, %s16
        %s166 = smul.u32 4, %s16
        %v167 = vld [vmem:[%s158] sm:$0xff]
        %v168 = vld [vmem:[%s158 + $0x8] sm:$0xff]
        %v169 = vld [vmem:[%s158 + $0x10] sm:$0xff]
        %v170 = vld [vmem:[%s158 + $0x18] sm:$0xff]
        %v171 = vld [vmem:[%s158 + $0x20] sm:$0xff]
        %v172 = vld [vmem:[%s158 + $0x28] sm:$0xff]
        %v173 = vld [vmem:[%s158 + $0x30] sm:$0xff]
        %v174 = vld [vmem:[%s158 + $0x38] sm:$0xff]
        %v175 = vld [vmem:[%s158 + $0x40] sm:$0xff]
        %v176 = vld [vmem:[%s158 + $0x48] sm:$0xff]
        %v177 = vld [vmem:[%s158 + $0x50] sm:$0xff]
        %v178 = vld [vmem:[%s158 + $0x58] sm:$0xff]
        %v179 = vld [vmem:[%s158 + $0x60] sm:$0xff]
        %v180 = vld [vmem:[%s158 + $0x68] sm:$0xff]
        %v181 = vld [vmem:[%s158 + $0x70] sm:$0xff]
        %v182 = vld [vmem:[%s158 + $0x78] sm:$0xff]
        %v183 = vld [vmem:[%s158 + $0x80] sm:$0xff]
        %v184 = vld [vmem:[%s158 + $0x88] sm:$0xff]
        %v185 = vld [vmem:[%s158 + $0x90] sm:$0xff]
        %v186 = vld [vmem:[%s158 + $0x98] sm:$0xff]
        %v187 = vld [vmem:[%s158 + $0xa0] sm:$0xff]
        %v188 = vld [vmem:[%s158 + $0xa8] sm:$0xff]
        %v189 = vld [vmem:[%s158 + $0xb0] sm:$0xff]
        %v190 = vld [vmem:[%s158 + $0xb8] sm:$0xff]
        %v191 = vld [vmem:[%s158 + $0xc0] sm:$0xff]
        %v192 = vld [vmem:[%s158 + $0xc8] sm:$0xff]
        %v193 = vld [vmem:[%s158 + $0xd0] sm:$0xff]
        %v194 = vld [vmem:[%s158 + $0xd8] sm:$0xff]
        %v195 = vld [vmem:[%s158 + $0xe0] sm:$0xff]
        %v196 = vld [vmem:[%s158 + $0xe8] sm:$0xff]
        %v197 = vld [vmem:[%s158 + $0xf0] sm:$0xff]
        %v198 = vld [vmem:[%s158 + $0xf8] sm:$0xff]
        %v199 = vld [vmem:[%s158 + $0x100] sm:$0xff]
        %v200 = vld [vmem:[%s158 + $0x108] sm:$0xff]
        %v201 = vld [vmem:[%s158 + $0x110] sm:$0xff]
        %v202 = vld [vmem:[%s158 + $0x118] sm:$0xff]
        %v203 = vld [vmem:[%s158 + $0x120] sm:$0xff]
        %v204 = vld [vmem:[%s158 + $0x128] sm:$0xff]
        %v205 = vld [vmem:[%s158 + $0x130] sm:$0xff]
        %v206 = vld [vmem:[%s158 + $0x138] sm:$0xff]
        %v207 = vld [vmem:[%s158 + $0x140] sm:$0xff]
        %v208 = vld [vmem:[%s158 + $0x148] sm:$0xff]
        %v209 = vld [vmem:[%s158 + $0x150] sm:$0xff]
        %v210 = vld [vmem:[%s158 + $0x158] sm:$0xff]
        %v211 = vld [vmem:[%s158 + $0x160] sm:$0xff]
        %v212 = vld [vmem:[%s158 + $0x168] sm:$0xff]
        %v213 = vld [vmem:[%s158 + $0x170] sm:$0xff]
        %v214 = vld [vmem:[%s158 + $0x178] sm:$0xff]
        %v215 = vld [vmem:[%s158 + $0x180] sm:$0xff]
        %v216 = vld [vmem:[%s158 + $0x188] sm:$0xff]
        %v217 = vld [vmem:[%s158 + $0x190] sm:$0xff]
        %v218 = vld [vmem:[%s158 + $0x198] sm:$0xff]
        %v219 = vld [vmem:[%s158 + $0x1a0] sm:$0xff]
        %v220 = vld [vmem:[%s158 + $0x1a8] sm:$0xff]
        %v221 = vld [vmem:[%s158 + $0x1b0] sm:$0xff]
        %v222 = vld [vmem:[%s158 + $0x1b8] sm:$0xff]
        %v223 = vld [vmem:[%s158 + $0x1c0] sm:$0xff]
        %v224 = vld [vmem:[%s158 + $0x1c8] sm:$0xff]
        %v225 = vld [vmem:[%s158 + $0x1d0] sm:$0xff]
        %v226 = vld [vmem:[%s158 + $0x1d8] sm:$0xff]
        %v227 = vld [vmem:[%s158 + $0x1e0] sm:$0xff]
        %v228 = vld [vmem:[%s158 + $0x1e8] sm:$0xff]
        %v229 = vld [vmem:[%s158 + $0x1f0] sm:$0xff]
        %v230 = vld [vmem:[%s158 + $0x1f8] sm:$0xff]
        %v231 = vld [vmem:[%s164] sm:$0xff]
        %v232 = vld [vmem:[%s164 + $0x8] sm:$0xff]
        %v233 = vld [vmem:[%s164 + $0x10] sm:$0xff]
        %v234 = vld [vmem:[%s164 + $0x18] sm:$0xff]
        %v235 = vld [vmem:[%s164 + $0x20] sm:$0xff]
        %v236 = vld [vmem:[%s164 + $0x28] sm:$0xff]
        %v237 = vld [vmem:[%s164 + $0x30] sm:$0xff]
        %v238 = vld [vmem:[%s164 + $0x38] sm:$0xff]
        %v239 = vld [vmem:[%s164 + $0x40] sm:$0xff]
        %v240 = vld [vmem:[%s164 + $0x48] sm:$0xff]
        %v241 = vld [vmem:[%s164 + $0x50] sm:$0xff]
        %v242 = vld [vmem:[%s164 + $0x58] sm:$0xff]
        %v243 = vld [vmem:[%s164 + $0x60] sm:$0xff]
        %v244 = vld [vmem:[%s164 + $0x68] sm:$0xff]
        %v245 = vld [vmem:[%s164 + $0x70] sm:$0xff]
        %v246 = vld [vmem:[%s164 + $0x78] sm:$0xff]
        %v247 = vld [vmem:[%s164 + $0x80] sm:$0xff]
        %v248 = vld [vmem:[%s164 + $0x88] sm:$0xff]
        %v249 = vld [vmem:[%s164 + $0x90] sm:$0xff]
        %v250 = vld [vmem:[%s164 + $0x98] sm:$0xff]
        %v251 = vld [vmem:[%s164 + $0xa0] sm:$0xff]
        %v252 = vld [vmem:[%s164 + $0xa8] sm:$0xff]
        %v253 = vld [vmem:[%s164 + $0xb0] sm:$0xff]
        %v254 = vld [vmem:[%s164 + $0xb8] sm:$0xff]
        %v255 = vld [vmem:[%s164 + $0xc0] sm:$0xff]
        %v256 = vld [vmem:[%s164 + $0xc8] sm:$0xff]
        %v257 = vld [vmem:[%s164 + $0xd0] sm:$0xff]
        %v258 = vld [vmem:[%s164 + $0xd8] sm:$0xff]
        %v259 = vld [vmem:[%s164 + $0xe0] sm:$0xff]
        %v260 = vld [vmem:[%s164 + $0xe8] sm:$0xff]
        %v261 = vld [vmem:[%s164 + $0xf0] sm:$0xff]
        %v262 = vld [vmem:[%s164 + $0xf8] sm:$0xff]
        %v263 = vld [vmem:[%s164 + $0x100] sm:$0xff]
        %v264 = vld [vmem:[%s164 + $0x108] sm:$0xff]
        %v265 = vld [vmem:[%s164 + $0x110] sm:$0xff]
        %v266 = vld [vmem:[%s164 + $0x118] sm:$0xff]
        %v267 = vld [vmem:[%s164 + $0x120] sm:$0xff]
        %v268 = vld [vmem:[%s164 + $0x128] sm:$0xff]
        %v269 = vld [vmem:[%s164 + $0x130] sm:$0xff]
        %v270 = vld [vmem:[%s164 + $0x138] sm:$0xff]
        %v271 = vld [vmem:[%s164 + $0x140] sm:$0xff]
        %v272 = vld [vmem:[%s164 + $0x148] sm:$0xff]
        %v273 = vld [vmem:[%s164 + $0x150] sm:$0xff]
        %v274 = vld [vmem:[%s164 + $0x158] sm:$0xff]
        %v275 = vld [vmem:[%s164 + $0x160] sm:$0xff]
        %v276 = vld [vmem:[%s164 + $0x168] sm:$0xff]
        %v277 = vld [vmem:[%s164 + $0x170] sm:$0xff]
        %v278 = vld [vmem:[%s164 + $0x178] sm:$0xff]
        %v279 = vld [vmem:[%s164 + $0x180] sm:$0xff]
        %v280 = vld [vmem:[%s164 + $0x188] sm:$0xff]
        %v281 = vld [vmem:[%s164 + $0x190] sm:$0xff]
        %v282 = vld [vmem:[%s164 + $0x198] sm:$0xff]
        %v283 = vld [vmem:[%s164 + $0x1a0] sm:$0xff]
        %v284 = vld [vmem:[%s164 + $0x1a8] sm:$0xff]
        %v285 = vld [vmem:[%s164 + $0x1b0] sm:$0xff]
        %v286 = vld [vmem:[%s164 + $0x1b8] sm:$0xff]
        %v287 = vld [vmem:[%s164 + $0x1c0] sm:$0xff]
        %v288 = vld [vmem:[%s164 + $0x1c8] sm:$0xff]
        %v289 = vld [vmem:[%s164 + $0x1d0] sm:$0xff]
        %v290 = vld [vmem:[%s164 + $0x1d8] sm:$0xff]
        %v291 = vld [vmem:[%s164 + $0x1e0] sm:$0xff]
        %v292 = vld [vmem:[%s164 + $0x1e8] sm:$0xff]
        %v293 = vld [vmem:[%s164 + $0x1f0] sm:$0xff]
        %v294 = vld [vmem:[%s164 + $0x1f8] sm:$0xff]
        %v295 = vlaneseq
        %v296 = vand.u32 %v295, 127
        %297 = vset.pattern.permute.xlu0 0
        %298 = vperm.xlu0 %297, %v231
        %v299 = vpop.permute.xlu0 %298
        %300 = vset.pattern.permute.xlu0 0
        %301 = vperm.xlu0 %300, %v232
        %v302 = vpop.permute.xlu0 %301
        %303 = vset.pattern.permute.xlu0 0
        %304 = vperm.xlu0 %303, %v233
        %v305 = vpop.permute.xlu0 %304
        %306 = vset.pattern.permute.xlu0 0
        %307 = vperm.xlu0 %306, %v234
        %v308 = vpop.permute.xlu0 %307
        %309 = vset.pattern.permute.xlu0 0
        %310 = vperm.xlu0 %309, %v235
        %v311 = vpop.permute.xlu0 %310
        %312 = vset.pattern.permute.xlu0 0
        %313 = vperm.xlu0 %312, %v236
        %v314 = vpop.permute.xlu0 %313
        %315 = vset.pattern.permute.xlu0 0
        %316 = vperm.xlu0 %315, %v237
        %v317 = vpop.permute.xlu0 %316
        %318 = vset.pattern.permute.xlu0 0
        %319 = vperm.xlu0 %318, %v238
        %v320 = vpop.permute.xlu0 %319
        %321 = vset.pattern.permute.xlu0 0
        %322 = vperm.xlu0 %321, %v239
        %v323 = vpop.permute.xlu0 %322
        %324 = vset.pattern.permute.xlu0 0
        %325 = vperm.xlu0 %324, %v240
        %v326 = vpop.permute.xlu0 %325
        %327 = vset.pattern.permute.xlu0 0
        %328 = vperm.xlu0 %327, %v241
        %v329 = vpop.permute.xlu0 %328
        %330 = vset.pattern.permute.xlu0 0
        %331 = vperm.xlu0 %330, %v242
        %v332 = vpop.permute.xlu0 %331
        %333 = vset.pattern.permute.xlu0 0
        %334 = vperm.xlu0 %333, %v243
        %v335 = vpop.permute.xlu0 %334
        %336 = vset.pattern.permute.xlu0 0
        %337 = vperm.xlu0 %336, %v244
        %v338 = vpop.permute.xlu0 %337
        %339 = vset.pattern.permute.xlu0 0
        %340 = vperm.xlu0 %339, %v245
        %v341 = vpop.permute.xlu0 %340
        %342 = vset.pattern.permute.xlu0 0
        %343 = vperm.xlu0 %342, %v246
        %v344 = vpop.permute.xlu0 %343
        %345 = vset.pattern.permute.xlu0 0
        %346 = vperm.xlu0 %345, %v247
        %v347 = vpop.permute.xlu0 %346
        %348 = vset.pattern.permute.xlu0 0
        %349 = vperm.xlu0 %348, %v248
        %v350 = vpop.permute.xlu0 %349
        %351 = vset.pattern.permute.xlu0 0
        %352 = vperm.xlu0 %351, %v249
        %v353 = vpop.permute.xlu0 %352
        %354 = vset.pattern.permute.xlu0 0
        %355 = vperm.xlu0 %354, %v250
        %v356 = vpop.permute.xlu0 %355
        %357 = vset.pattern.permute.xlu0 0
        %358 = vperm.xlu0 %357, %v251
        %v359 = vpop.permute.xlu0 %358
        %360 = vset.pattern.permute.xlu0 0
        %361 = vperm.xlu0 %360, %v252
        %v362 = vpop.permute.xlu0 %361
        %363 = vset.pattern.permute.xlu0 0
        %364 = vperm.xlu0 %363, %v253
        %v365 = vpop.permute.xlu0 %364
        %366 = vset.pattern.permute.xlu0 0
        %367 = vperm.xlu0 %366, %v254
        %v368 = vpop.permute.xlu0 %367
        %369 = vset.pattern.permute.xlu0 0
        %370 = vperm.xlu0 %369, %v255
        %v371 = vpop.permute.xlu0 %370
        %372 = vset.pattern.permute.xlu0 0
        %373 = vperm.xlu0 %372, %v256
        %v374 = vpop.permute.xlu0 %373
        %375 = vset.pattern.permute.xlu0 0
        %376 = vperm.xlu0 %375, %v257
        %v377 = vpop.permute.xlu0 %376
        %378 = vset.pattern.permute.xlu0 0
        %379 = vperm.xlu0 %378, %v258
        %v380 = vpop.permute.xlu0 %379
        %381 = vset.pattern.permute.xlu0 0
        %382 = vperm.xlu0 %381, %v259
        %v383 = vpop.permute.xlu0 %382
        %384 = vset.pattern.permute.xlu0 0
        %385 = vperm.xlu0 %384, %v260
        %v386 = vpop.permute.xlu0 %385
        %387 = vset.pattern.permute.xlu0 0
        %388 = vperm.xlu0 %387, %v261
        %v389 = vpop.permute.xlu0 %388
        %390 = vset.pattern.permute.xlu0 0
        %391 = vperm.xlu0 %390, %v262
        %v392 = vpop.permute.xlu0 %391
        %393 = vset.pattern.permute.xlu0 0
        %394 = vperm.xlu0 %393, %v263
        %v395 = vpop.permute.xlu0 %394
        %396 = vset.pattern.permute.xlu0 0
        %397 = vperm.xlu0 %396, %v264
        %v398 = vpop.permute.xlu0 %397
        %399 = vset.pattern.permute.xlu0 0
        %400 = vperm.xlu0 %399, %v265
        %v401 = vpop.permute.xlu0 %400
        %402 = vset.pattern.permute.xlu0 0
        %403 = vperm.xlu0 %402, %v266
        %v404 = vpop.permute.xlu0 %403
        %405 = vset.pattern.permute.xlu0 0
        %406 = vperm.xlu0 %405, %v267
        %v407 = vpop.permute.xlu0 %406
        %408 = vset.pattern.permute.xlu0 0
        %409 = vperm.xlu0 %408, %v268
        %v410 = vpop.permute.xlu0 %409
        %411 = vset.pattern.permute.xlu0 0
        %412 = vperm.xlu0 %411, %v269
        %v413 = vpop.permute.xlu0 %412
        %414 = vset.pattern.permute.xlu0 0
        %415 = vperm.xlu0 %414, %v270
        %v416 = vpop.permute.xlu0 %415
        %417 = vset.pattern.permute.xlu0 0
        %418 = vperm.xlu0 %417, %v271
        %v419 = vpop.permute.xlu0 %418
        %420 = vset.pattern.permute.xlu0 0
        %421 = vperm.xlu0 %420, %v272
        %v422 = vpop.permute.xlu0 %421
        %423 = vset.pattern.permute.xlu0 0
        %424 = vperm.xlu0 %423, %v273
        %v425 = vpop.permute.xlu0 %424
        %426 = vset.pattern.permute.xlu0 0
        %427 = vperm.xlu0 %426, %v274
        %v428 = vpop.permute.xlu0 %427
        %429 = vset.pattern.permute.xlu0 0
        %430 = vperm.xlu0 %429, %v275
        %v431 = vpop.permute.xlu0 %430
        %432 = vset.pattern.permute.xlu0 0
        %433 = vperm.xlu0 %432, %v276
        %v434 = vpop.permute.xlu0 %433
        %435 = vset.pattern.permute.xlu0 0
        %436 = vperm.xlu0 %435, %v277
        %v437 = vpop.permute.xlu0 %436
        %438 = vset.pattern.permute.xlu0 0
        %439 = vperm.xlu0 %438, %v278
        %v440 = vpop.permute.xlu0 %439
        %441 = vset.pattern.permute.xlu0 0
        %442 = vperm.xlu0 %441, %v279
        %v443 = vpop.permute.xlu0 %442
        %444 = vset.pattern.permute.xlu0 0
        %445 = vperm.xlu0 %444, %v280
        %v446 = vpop.permute.xlu0 %445
        %447 = vset.pattern.permute.xlu0 0
        %448 = vperm.xlu0 %447, %v281
        %v449 = vpop.permute.xlu0 %448
        %450 = vset.pattern.permute.xlu0 0
        %451 = vperm.xlu0 %450, %v282
        %v452 = vpop.permute.xlu0 %451
        %453 = vset.pattern.permute.xlu0 0
        %454 = vperm.xlu0 %453, %v283
        %v455 = vpop.permute.xlu0 %454
        %456 = vset.pattern.permute.xlu0 0
        %457 = vperm.xlu0 %456, %v284
        %v458 = vpop.permute.xlu0 %457
        %459 = vset.pattern.permute.xlu0 0
        %460 = vperm.xlu0 %459, %v285
        %v461 = vpop.permute.xlu0 %460
        %462 = vset.pattern.permute.xlu0 0
        %463 = vperm.xlu0 %462, %v286
        %v464 = vpop.permute.xlu0 %463
        %465 = vset.pattern.permute.xlu0 0
        %466 = vperm.xlu0 %465, %v287
        %v467 = vpop.permute.xlu0 %466
        %468 = vset.pattern.permute.xlu0 0
        %469 = vperm.xlu0 %468, %v288
        %v470 = vpop.permute.xlu0 %469
        %471 = vset.pattern.permute.xlu0 0
        %472 = vperm.xlu0 %471, %v289
        %v473 = vpop.permute.xlu0 %472
        %474 = vset.pattern.permute.xlu0 0
        %475 = vperm.xlu0 %474, %v290
        %v476 = vpop.permute.xlu0 %475
        %477 = vset.pattern.permute.xlu0 0
        %478 = vperm.xlu0 %477, %v291
        %v479 = vpop.permute.xlu0 %478
        %480 = vset.pattern.permute.xlu0 0
        %481 = vperm.xlu0 %480, %v292
        %v482 = vpop.permute.xlu0 %481
        %483 = vset.pattern.permute.xlu0 0
        %484 = vperm.xlu0 %483, %v293
        %v485 = vpop.permute.xlu0 %484
        %486 = vset.pattern.permute.xlu0 0
        %487 = vperm.xlu0 %486, %v294
        %v488 = vpop.permute.xlu0 %487
        %vm489 = vcmp.eq.s32.totalorder %v296, %v299
        %vm490 = vcmp.eq.s32.totalorder %v296, %v302
        %vm491 = vcmp.eq.s32.totalorder %v296, %v305
        %vm492 = vcmp.eq.s32.totalorder %v296, %v308
        %vm493 = vcmp.eq.s32.totalorder %v296, %v311
        %vm494 = vcmp.eq.s32.totalorder %v296, %v314
        %vm495 = vcmp.eq.s32.totalorder %v296, %v317
        %vm496 = vcmp.eq.s32.totalorder %v296, %v320
        %vm497 = vcmp.eq.s32.totalorder %v296, %v323
        %vm498 = vcmp.eq.s32.totalorder %v296, %v326
        %vm499 = vcmp.eq.s32.totalorder %v296, %v329
        %vm500 = vcmp.eq.s32.totalorder %v296, %v332
        %vm501 = vcmp.eq.s32.totalorder %v296, %v335
        %vm502 = vcmp.eq.s32.totalorder %v296, %v338
        %vm503 = vcmp.eq.s32.totalorder %v296, %v341
        %vm504 = vcmp.eq.s32.totalorder %v296, %v344
        %vm505 = vcmp.eq.s32.totalorder %v296, %v347
        %vm506 = vcmp.eq.s32.totalorder %v296, %v350
        %vm507 = vcmp.eq.s32.totalorder %v296, %v353
        %vm508 = vcmp.eq.s32.totalorder %v296, %v356
        %vm509 = vcmp.eq.s32.totalorder %v296, %v359
        %vm510 = vcmp.eq.s32.totalorder %v296, %v362
        %vm511 = vcmp.eq.s32.totalorder %v296, %v365
        %vm512 = vcmp.eq.s32.totalorder %v296, %v368
        %vm513 = vcmp.eq.s32.totalorder %v296, %v371
        %vm514 = vcmp.eq.s32.totalorder %v296, %v374
        %vm515 = vcmp.eq.s32.totalorder %v296, %v377
        %vm516 = vcmp.eq.s32.totalorder %v296, %v380
        %vm517 = vcmp.eq.s32.totalorder %v296, %v383
        %vm518 = vcmp.eq.s32.totalorder %v296, %v386
        %vm519 = vcmp.eq.s32.totalorder %v296, %v389
        %vm520 = vcmp.eq.s32.totalorder %v296, %v392
        %vm521 = vcmp.eq.s32.totalorder %v296, %v395
        %vm522 = vcmp.eq.s32.totalorder %v296, %v398
        %vm523 = vcmp.eq.s32.totalorder %v296, %v401
        %vm524 = vcmp.eq.s32.totalorder %v296, %v404
        %vm525 = vcmp.eq.s32.totalorder %v296, %v407
        %vm526 = vcmp.eq.s32.totalorder %v296, %v410
        %vm527 = vcmp.eq.s32.totalorder %v296, %v413
        %vm528 = vcmp.eq.s32.totalorder %v296, %v416
        %vm529 = vcmp.eq.s32.totalorder %v296, %v419
        %vm530 = vcmp.eq.s32.totalorder %v296, %v422
        %vm531 = vcmp.eq.s32.totalorder %v296, %v425
        %vm532 = vcmp.eq.s32.totalorder %v296, %v428
        %vm533 = vcmp.eq.s32.totalorder %v296, %v431
        %vm534 = vcmp.eq.s32.totalorder %v296, %v434
        %vm535 = vcmp.eq.s32.totalorder %v296, %v437
        %vm536 = vcmp.eq.s32.totalorder %v296, %v440
        %vm537 = vcmp.eq.s32.totalorder %v296, %v443
        %vm538 = vcmp.eq.s32.totalorder %v296, %v446
        %vm539 = vcmp.eq.s32.totalorder %v296, %v449
        %vm540 = vcmp.eq.s32.totalorder %v296, %v452
        %vm541 = vcmp.eq.s32.totalorder %v296, %v455
        %vm542 = vcmp.eq.s32.totalorder %v296, %v458
        %vm543 = vcmp.eq.s32.totalorder %v296, %v461
        %vm544 = vcmp.eq.s32.totalorder %v296, %v464
        %vm545 = vcmp.eq.s32.totalorder %v296, %v467
        %vm546 = vcmp.eq.s32.totalorder %v296, %v470
        %vm547 = vcmp.eq.s32.totalorder %v296, %v473
        %vm548 = vcmp.eq.s32.totalorder %v296, %v476
        %vm549 = vcmp.eq.s32.totalorder %v296, %v479
        %vm550 = vcmp.eq.s32.totalorder %v296, %v482
        %vm551 = vcmp.eq.s32.totalorder %v296, %v485
        %vm552 = vcmp.eq.s32.totalorder %v296, %v488
        %v553 = vsel %vm489, %v167, -inf
        %v554 = vsel %vm490, %v168, -inf
        %v555 = vsel %vm491, %v169, -inf
        %v556 = vsel %vm492, %v170, -inf
        %v557 = vsel %vm493, %v171, -inf
        %v558 = vsel %vm494, %v172, -inf
        %v559 = vsel %vm495, %v173, -inf
        %v560 = vsel %vm496, %v174, -inf
        %v561 = vsel %vm497, %v175, -inf
        %v562 = vsel %vm498, %v176, -inf
        %v563 = vsel %vm499, %v177, -inf
        %v564 = vsel %vm500, %v178, -inf
        %v565 = vsel %vm501, %v179, -inf
        %v566 = vsel %vm502, %v180, -inf
        %v567 = vsel %vm503, %v181, -inf
        %v568 = vsel %vm504, %v182, -inf
        %v569 = vsel %vm505, %v183, -inf
        %v570 = vsel %vm506, %v184, -inf
        %v571 = vsel %vm507, %v185, -inf
        %v572 = vsel %vm508, %v186, -inf
        %v573 = vsel %vm509, %v187, -inf
        %v574 = vsel %vm510, %v188, -inf
        %v575 = vsel %vm511, %v189, -inf
        %v576 = vsel %vm512, %v190, -inf
        %v577 = vsel %vm513, %v191, -inf
        %v578 = vsel %vm514, %v192, -inf
        %v579 = vsel %vm515, %v193, -inf
        %v580 = vsel %vm516, %v194, -inf
        %v581 = vsel %vm517, %v195, -inf
        %v582 = vsel %vm518, %v196, -inf
        %v583 = vsel %vm519, %v197, -inf
        %v584 = vsel %vm520, %v198, -inf
        %v585 = vsel %vm521, %v199, -inf
        %v586 = vsel %vm522, %v200, -inf
        %v587 = vsel %vm523, %v201, -inf
        %v588 = vsel %vm524, %v202, -inf
        %v589 = vsel %vm525, %v203, -inf
        %v590 = vsel %vm526, %v204, -inf
        %v591 = vsel %vm527, %v205, -inf
        %v592 = vsel %vm528, %v206, -inf
        %v593 = vsel %vm529, %v207, -inf
        %v594 = vsel %vm530, %v208, -inf
        %v595 = vsel %vm531, %v209, -inf
        %v596 = vsel %vm532, %v210, -inf
        %v597 = vsel %vm533, %v211, -inf
        %v598 = vsel %vm534, %v212, -inf
        %v599 = vsel %vm535, %v213, -inf
        %v600 = vsel %vm536, %v214, -inf
        %v601 = vsel %vm537, %v215, -inf
        %v602 = vsel %vm538, %v216, -inf
        %v603 = vsel %vm539, %v217, -inf
        %v604 = vsel %vm540, %v218, -inf
        %v605 = vsel %vm541, %v219, -inf
        %v606 = vsel %vm542, %v220, -inf
        %v607 = vsel %vm543, %v221, -inf
        %v608 = vsel %vm544, %v222, -inf
        %v609 = vsel %vm545, %v223, -inf
        %v610 = vsel %vm546, %v224, -inf
        %v611 = vsel %vm547, %v225, -inf
        %v612 = vsel %vm548, %v226, -inf
        %v613 = vsel %vm549, %v227, -inf
        %v614 = vsel %vm550, %v228, -inf
        %v615 = vsel %vm551, %v229, -inf
        %v616 = vsel %vm552, %v230, -inf
        %vm617 = vcmask 80896
        %v618 = vsel %vm617, %v553, -inf
        %619 = vmax.xlane.f32.xlu0 %v618
        %v620 = vpop.xlane.xlu0 %619
        %v621 = vsel %vm617, %v554, -inf
        %622 = vmax.xlane.f32.xlu0 %v621
        %v623 = vpop.xlane.xlu0 %622
        %v624 = vsel %vm617, %v555, -inf
        %625 = vmax.xlane.f32.xlu0 %v624
        %v626 = vpop.xlane.xlu0 %625
        %v627 = vsel %vm617, %v556, -inf
        %628 = vmax.xlane.f32.xlu0 %v627
        %v629 = vpop.xlane.xlu0 %628
        %v630 = vsel %vm617, %v557, -inf
        %631 = vmax.xlane.f32.xlu0 %v630
        %v632 = vpop.xlane.xlu0 %631
        %v633 = vsel %vm617, %v558, -inf
        %634 = vmax.xlane.f32.xlu0 %v633
        %v635 = vpop.xlane.xlu0 %634
        %v636 = vsel %vm617, %v559, -inf
        %637 = vmax.xlane.f32.xlu0 %v636
        %v638 = vpop.xlane.xlu0 %637
        %v639 = vsel %vm617, %v560, -inf
        %640 = vmax.xlane.f32.xlu0 %v639
        %v641 = vpop.xlane.xlu0 %640
        %v642 = vsel %vm617, %v561, -inf
        %643 = vmax.xlane.f32.xlu0 %v642
        %v644 = vpop.xlane.xlu0 %643
        %v645 = vsel %vm617, %v562, -inf
        %646 = vmax.xlane.f32.xlu0 %v645
        %v647 = vpop.xlane.xlu0 %646
        %v648 = vsel %vm617, %v563, -inf
        %649 = vmax.xlane.f32.xlu0 %v648
        %v650 = vpop.xlane.xlu0 %649
        %v651 = vsel %vm617, %v564, -inf
        %652 = vmax.xlane.f32.xlu0 %v651
        %v653 = vpop.xlane.xlu0 %652
        %v654 = vsel %vm617, %v565, -inf
        %655 = vmax.xlane.f32.xlu0 %v654
        %v656 = vpop.xlane.xlu0 %655
        %v657 = vsel %vm617, %v566, -inf
        %658 = vmax.xlane.f32.xlu0 %v657
        %v659 = vpop.xlane.xlu0 %658
        %v660 = vsel %vm617, %v567, -inf
        %661 = vmax.xlane.f32.xlu0 %v660
        %v662 = vpop.xlane.xlu0 %661
        %v663 = vsel %vm617, %v568, -inf
        %664 = vmax.xlane.f32.xlu0 %v663
        %v665 = vpop.xlane.xlu0 %664
        %v666 = vsel %vm617, %v569, -inf
        %667 = vmax.xlane.f32.xlu0 %v666
        %v668 = vpop.xlane.xlu0 %667
        %v669 = vsel %vm617, %v570, -inf
        %670 = vmax.xlane.f32.xlu0 %v669
        %v671 = vpop.xlane.xlu0 %670
        %v672 = vsel %vm617, %v571, -inf
        %673 = vmax.xlane.f32.xlu0 %v672
        %v674 = vpop.xlane.xlu0 %673
        %v675 = vsel %vm617, %v572, -inf
        %676 = vmax.xlane.f32.xlu0 %v675
        %v677 = vpop.xlane.xlu0 %676
        %v678 = vsel %vm617, %v573, -inf
        %679 = vmax.xlane.f32.xlu0 %v678
        %v680 = vpop.xlane.xlu0 %679
        %v681 = vsel %vm617, %v574, -inf
        %682 = vmax.xlane.f32.xlu0 %v681
        %v683 = vpop.xlane.xlu0 %682
        %v684 = vsel %vm617, %v575, -inf
        %685 = vmax.xlane.f32.xlu0 %v684
        %v686 = vpop.xlane.xlu0 %685
        %v687 = vsel %vm617, %v576, -inf
        %688 = vmax.xlane.f32.xlu0 %v687
        %v689 = vpop.xlane.xlu0 %688
        %v690 = vsel %vm617, %v577, -inf
        %691 = vmax.xlane.f32.xlu0 %v690
        %v692 = vpop.xlane.xlu0 %691
        %v693 = vsel %vm617, %v578, -inf
        %694 = vmax.xlane.f32.xlu0 %v693
        %v695 = vpop.xlane.xlu0 %694
        %v696 = vsel %vm617, %v579, -inf
        %697 = vmax.xlane.f32.xlu0 %v696
        %v698 = vpop.xlane.xlu0 %697
        %v699 = vsel %vm617, %v580, -inf
        %700 = vmax.xlane.f32.xlu0 %v699
        %v701 = vpop.xlane.xlu0 %700
        %v702 = vsel %vm617, %v581, -inf
        %703 = vmax.xlane.f32.xlu0 %v702
        %v704 = vpop.xlane.xlu0 %703
        %v705 = vsel %vm617, %v582, -inf
        %706 = vmax.xlane.f32.xlu0 %v705
        %v707 = vpop.xlane.xlu0 %706
        %v708 = vsel %vm617, %v583, -inf
        %709 = vmax.xlane.f32.xlu0 %v708
        %v710 = vpop.xlane.xlu0 %709
        %v711 = vsel %vm617, %v584, -inf
        %712 = vmax.xlane.f32.xlu0 %v711
        %v713 = vpop.xlane.xlu0 %712
        %v714 = vsel %vm617, %v585, -inf
        %715 = vmax.xlane.f32.xlu0 %v714
        %v716 = vpop.xlane.xlu0 %715
        %v717 = vsel %vm617, %v586, -inf
        %718 = vmax.xlane.f32.xlu0 %v717
        %v719 = vpop.xlane.xlu0 %718
        %v720 = vsel %vm617, %v587, -inf
        %721 = vmax.xlane.f32.xlu0 %v720
        %v722 = vpop.xlane.xlu0 %721
        %v723 = vsel %vm617, %v588, -inf
        %724 = vmax.xlane.f32.xlu0 %v723
        %v725 = vpop.xlane.xlu0 %724
        %v726 = vsel %vm617, %v589, -inf
        %727 = vmax.xlane.f32.xlu0 %v726
        %v728 = vpop.xlane.xlu0 %727
        %v729 = vsel %vm617, %v590, -inf
        %730 = vmax.xlane.f32.xlu0 %v729
        %v731 = vpop.xlane.xlu0 %730
        %v732 = vsel %vm617, %v591, -inf
        %733 = vmax.xlane.f32.xlu0 %v732
        %v734 = vpop.xlane.xlu0 %733
        %v735 = vsel %vm617, %v592, -inf
        %736 = vmax.xlane.f32.xlu0 %v735
        %v737 = vpop.xlane.xlu0 %736
        %v738 = vsel %vm617, %v593, -inf
        %739 = vmax.xlane.f32.xlu0 %v738
        %v740 = vpop.xlane.xlu0 %739
        %v741 = vsel %vm617, %v594, -inf
        %742 = vmax.xlane.f32.xlu0 %v741
        %v743 = vpop.xlane.xlu0 %742
        %v744 = vsel %vm617, %v595, -inf
        %745 = vmax.xlane.f32.xlu0 %v744
        %v746 = vpop.xlane.xlu0 %745
        %v747 = vsel %vm617, %v596, -inf
        %748 = vmax.xlane.f32.xlu0 %v747
        %v749 = vpop.xlane.xlu0 %748
        %v750 = vsel %vm617, %v597, -inf
        %751 = vmax.xlane.f32.xlu0 %v750
        %v752 = vpop.xlane.xlu0 %751
        %v753 = vsel %vm617, %v598, -inf
        %754 = vmax.xlane.f32.xlu0 %v753
        %v755 = vpop.xlane.xlu0 %754
        %v756 = vsel %vm617, %v599, -inf
        %757 = vmax.xlane.f32.xlu0 %v756
        %v758 = vpop.xlane.xlu0 %757
        %v759 = vsel %vm617, %v600, -inf
        %760 = vmax.xlane.f32.xlu0 %v759
        %v761 = vpop.xlane.xlu0 %760
        %v762 = vsel %vm617, %v601, -inf
        %763 = vmax.xlane.f32.xlu0 %v762
        %v764 = vpop.xlane.xlu0 %763
        %v765 = vsel %vm617, %v602, -inf
        %766 = vmax.xlane.f32.xlu0 %v765
        %v767 = vpop.xlane.xlu0 %766
        %v768 = vsel %vm617, %v603, -inf
        %769 = vmax.xlane.f32.xlu0 %v768
        %v770 = vpop.xlane.xlu0 %769
        %v771 = vsel %vm617, %v604, -inf
        %772 = vmax.xlane.f32.xlu0 %v771
        %v773 = vpop.xlane.xlu0 %772
        %v774 = vsel %vm617, %v605, -inf
        %775 = vmax.xlane.f32.xlu0 %v774
        %v776 = vpop.xlane.xlu0 %775
        %v777 = vsel %vm617, %v606, -inf
        %778 = vmax.xlane.f32.xlu0 %v777
        %v779 = vpop.xlane.xlu0 %778
        %v780 = vsel %vm617, %v607, -inf
        %781 = vmax.xlane.f32.xlu0 %v780
        %v782 = vpop.xlane.xlu0 %781
        %v783 = vsel %vm617, %v608, -inf
        %784 = vmax.xlane.f32.xlu0 %v783
        %v785 = vpop.xlane.xlu0 %784
        %v786 = vsel %vm617, %v609, -inf
        %787 = vmax.xlane.f32.xlu0 %v786
        %v788 = vpop.xlane.xlu0 %787
        %v789 = vsel %vm617, %v610, -inf
        %790 = vmax.xlane.f32.xlu0 %v789
        %v791 = vpop.xlane.xlu0 %790
        %v792 = vsel %vm617, %v611, -inf
        %793 = vmax.xlane.f32.xlu0 %v792
        %v794 = vpop.xlane.xlu0 %793
        %v795 = vsel %vm617, %v612, -inf
        %796 = vmax.xlane.f32.xlu0 %v795
        %v797 = vpop.xlane.xlu0 %796
        %v798 = vsel %vm617, %v613, -inf
        %799 = vmax.xlane.f32.xlu0 %v798
        %v800 = vpop.xlane.xlu0 %799
        %v801 = vsel %vm617, %v614, -inf
        %802 = vmax.xlane.f32.xlu0 %v801
        %v803 = vpop.xlane.xlu0 %802
        %v804 = vsel %vm617, %v615, -inf
        %805 = vmax.xlane.f32.xlu0 %v804
        %v806 = vpop.xlane.xlu0 %805
        %v807 = vsel %vm617, %v616, -inf
        %808 = vmax.xlane.f32.xlu0 %v807
        %v809 = vpop.xlane.xlu0 %808
        %v810 = vsel %vm617, %v167, -inf
        %811 = vmax.xlane.f32.xlu0 %v810
        %v812 = vpop.xlane.xlu0 %811
        %v813 = vsel %vm617, %v168, -inf
        %814 = vmax.xlane.f32.xlu0 %v813
        %v815 = vpop.xlane.xlu0 %814
        %v816 = vsel %vm617, %v169, -inf
        %817 = vmax.xlane.f32.xlu0 %v816
        %v818 = vpop.xlane.xlu0 %817
        %v819 = vsel %vm617, %v170, -inf
        %820 = vmax.xlane.f32.xlu0 %v819
        %v821 = vpop.xlane.xlu0 %820
        %v822 = vsel %vm617, %v171, -inf
        %823 = vmax.xlane.f32.xlu0 %v822
        %v824 = vpop.xlane.xlu0 %823
        %v825 = vsel %vm617, %v172, -inf
        %826 = vmax.xlane.f32.xlu0 %v825
        %v827 = vpop.xlane.xlu0 %826
        %v828 = vsel %vm617, %v173, -inf
        %829 = vmax.xlane.f32.xlu0 %v828
        %v830 = vpop.xlane.xlu0 %829
        %v831 = vsel %vm617, %v174, -inf
        %832 = vmax.xlane.f32.xlu0 %v831
        %v833 = vpop.xlane.xlu0 %832
        %v834 = vsel %vm617, %v175, -inf
        %835 = vmax.xlane.f32.xlu0 %v834
        %v836 = vpop.xlane.xlu0 %835
        %v837 = vsel %vm617, %v176, -inf
        %838 = vmax.xlane.f32.xlu0 %v837
        %v839 = vpop.xlane.xlu0 %838
        %v840 = vsel %vm617, %v177, -inf
        %841 = vmax.xlane.f32.xlu0 %v840
        %v842 = vpop.xlane.xlu0 %841
        %v843 = vsel %vm617, %v178, -inf
        %844 = vmax.xlane.f32.xlu0 %v843
        %v845 = vpop.xlane.xlu0 %844
        %v846 = vsel %vm617, %v179, -inf
        %847 = vmax.xlane.f32.xlu0 %v846
        %v848 = vpop.xlane.xlu0 %847
        %v849 = vsel %vm617, %v180, -inf
        %850 = vmax.xlane.f32.xlu0 %v849
        %v851 = vpop.xlane.xlu0 %850
        %v852 = vsel %vm617, %v181, -inf
        %853 = vmax.xlane.f32.xlu0 %v852
        %v854 = vpop.xlane.xlu0 %853
        %v855 = vsel %vm617, %v182, -inf
        %856 = vmax.xlane.f32.xlu0 %v855
        %v857 = vpop.xlane.xlu0 %856
        %v858 = vsel %vm617, %v183, -inf
        %859 = vmax.xlane.f32.xlu0 %v858
        %v860 = vpop.xlane.xlu0 %859
        %v861 = vsel %vm617, %v184, -inf
        %862 = vmax.xlane.f32.xlu0 %v861
        %v863 = vpop.xlane.xlu0 %862
        %v864 = vsel %vm617, %v185, -inf
        %865 = vmax.xlane.f32.xlu0 %v864
        %v866 = vpop.xlane.xlu0 %865
        %v867 = vsel %vm617, %v186, -inf
        %868 = vmax.xlane.f32.xlu0 %v867
        %v869 = vpop.xlane.xlu0 %868
        %v870 = vsel %vm617, %v187, -inf
        %871 = vmax.xlane.f32.xlu0 %v870
        %v872 = vpop.xlane.xlu0 %871
        %v873 = vsel %vm617, %v188, -inf
        %874 = vmax.xlane.f32.xlu0 %v873
        %v875 = vpop.xlane.xlu0 %874
        %v876 = vsel %vm617, %v189, -inf
        %877 = vmax.xlane.f32.xlu0 %v876
        %v878 = vpop.xlane.xlu0 %877
        %v879 = vsel %vm617, %v190, -inf
        %880 = vmax.xlane.f32.xlu0 %v879
        %v881 = vpop.xlane.xlu0 %880
        %v882 = vsel %vm617, %v191, -inf
        %883 = vmax.xlane.f32.xlu0 %v882
        %v884 = vpop.xlane.xlu0 %883
        %v885 = vsel %vm617, %v192, -inf
        %886 = vmax.xlane.f32.xlu0 %v885
        %v887 = vpop.xlane.xlu0 %886
        %v888 = vsel %vm617, %v193, -inf
        %889 = vmax.xlane.f32.xlu0 %v888
        %v890 = vpop.xlane.xlu0 %889
        %v891 = vsel %vm617, %v194, -inf
        %892 = vmax.xlane.f32.xlu0 %v891
        %v893 = vpop.xlane.xlu0 %892
        %v894 = vsel %vm617, %v195, -inf
        %895 = vmax.xlane.f32.xlu0 %v894
        %v896 = vpop.xlane.xlu0 %895
        %v897 = vsel %vm617, %v196, -inf
        %898 = vmax.xlane.f32.xlu0 %v897
        %v899 = vpop.xlane.xlu0 %898
        %v900 = vsel %vm617, %v197, -inf
        %901 = vmax.xlane.f32.xlu0 %v900
        %v902 = vpop.xlane.xlu0 %901
        %v903 = vsel %vm617, %v198, -inf
        %904 = vmax.xlane.f32.xlu0 %v903
        %v905 = vpop.xlane.xlu0 %904
        %v906 = vsel %vm617, %v199, -inf
        %907 = vmax.xlane.f32.xlu0 %v906
        %v908 = vpop.xlane.xlu0 %907
        %v909 = vsel %vm617, %v200, -inf
        %910 = vmax.xlane.f32.xlu0 %v909
        %v911 = vpop.xlane.xlu0 %910
        %v912 = vsel %vm617, %v201, -inf
        %913 = vmax.xlane.f32.xlu0 %v912
        %v914 = vpop.xlane.xlu0 %913
        %v915 = vsel %vm617, %v202, -inf
        %916 = vmax.xlane.f32.xlu0 %v915
        %v917 = vpop.xlane.xlu0 %916
        %v918 = vsel %vm617, %v203, -inf
        %919 = vmax.xlane.f32.xlu0 %v918
        %v920 = vpop.xlane.xlu0 %919
        %v921 = vsel %vm617, %v204, -inf
        %922 = vmax.xlane.f32.xlu0 %v921
        %v923 = vpop.xlane.xlu0 %922
        %v924 = vsel %vm617, %v205, -inf
        %925 = vmax.xlane.f32.xlu0 %v924
        %v926 = vpop.xlane.xlu0 %925
        %v927 = vsel %vm617, %v206, -inf
        %928 = vmax.xlane.f32.xlu0 %v927
        %v929 = vpop.xlane.xlu0 %928
        %v930 = vsel %vm617, %v207, -inf
        %931 = vmax.xlane.f32.xlu0 %v930
        %v932 = vpop.xlane.xlu0 %931
        %v933 = vsel %vm617, %v208, -inf
        %934 = vmax.xlane.f32.xlu0 %v933
        %v935 = vpop.xlane.xlu0 %934
        %v936 = vsel %vm617, %v209, -inf
        %937 = vmax.xlane.f32.xlu0 %v936
        %v938 = vpop.xlane.xlu0 %937
        %v939 = vsel %vm617, %v210, -inf
        %940 = vmax.xlane.f32.xlu0 %v939
        %v941 = vpop.xlane.xlu0 %940
        %v942 = vsel %vm617, %v211, -inf
        %943 = vmax.xlane.f32.xlu0 %v942
        %v944 = vpop.xlane.xlu0 %943
        %v945 = vsel %vm617, %v212, -inf
        %946 = vmax.xlane.f32.xlu0 %v945
        %v947 = vpop.xlane.xlu0 %946
        %v948 = vsel %vm617, %v213, -inf
        %949 = vmax.xlane.f32.xlu0 %v948
        %v950 = vpop.xlane.xlu0 %949
        %v951 = vsel %vm617, %v214, -inf
        %952 = vmax.xlane.f32.xlu0 %v951
        %v953 = vpop.xlane.xlu0 %952
        %v954 = vsel %vm617, %v215, -inf
        %955 = vmax.xlane.f32.xlu0 %v954
        %v956 = vpop.xlane.xlu0 %955
        %v957 = vsel %vm617, %v216, -inf
        %958 = vmax.xlane.f32.xlu0 %v957
        %v959 = vpop.xlane.xlu0 %958
        %v960 = vsel %vm617, %v217, -inf
        %961 = vmax.xlane.f32.xlu0 %v960
        %v962 = vpop.xlane.xlu0 %961
        %v963 = vsel %vm617, %v218, -inf
        %964 = vmax.xlane.f32.xlu0 %v963
        %v965 = vpop.xlane.xlu0 %964
        %v966 = vsel %vm617, %v219, -inf
        %967 = vmax.xlane.f32.xlu0 %v966
        %v968 = vpop.xlane.xlu0 %967
        %v969 = vsel %vm617, %v220, -inf
        %970 = vmax.xlane.f32.xlu0 %v969
        %v971 = vpop.xlane.xlu0 %970
        %v972 = vsel %vm617, %v221, -inf
        %973 = vmax.xlane.f32.xlu0 %v972
        %v974 = vpop.xlane.xlu0 %973
        %v975 = vsel %vm617, %v222, -inf
        %976 = vmax.xlane.f32.xlu0 %v975
        %v977 = vpop.xlane.xlu0 %976
        %v978 = vsel %vm617, %v223, -inf
        %979 = vmax.xlane.f32.xlu0 %v978
        %v980 = vpop.xlane.xlu0 %979
        %v981 = vsel %vm617, %v224, -inf
        %982 = vmax.xlane.f32.xlu0 %v981
        %v983 = vpop.xlane.xlu0 %982
        %v984 = vsel %vm617, %v225, -inf
        %985 = vmax.xlane.f32.xlu0 %v984
        %v986 = vpop.xlane.xlu0 %985
        %v987 = vsel %vm617, %v226, -inf
        %988 = vmax.xlane.f32.xlu0 %v987
        %v989 = vpop.xlane.xlu0 %988
        %v990 = vsel %vm617, %v227, -inf
        %991 = vmax.xlane.f32.xlu0 %v990
        %v992 = vpop.xlane.xlu0 %991
        %v993 = vsel %vm617, %v228, -inf
        %994 = vmax.xlane.f32.xlu0 %v993
        %v995 = vpop.xlane.xlu0 %994
        %v996 = vsel %vm617, %v229, -inf
        %997 = vmax.xlane.f32.xlu0 %v996
        %v998 = vpop.xlane.xlu0 %997
        %v999 = vsel %vm617, %v230, -inf
        %1000 = vmax.xlane.f32.xlu0 %v999
        %v1001 = vpop.xlane.xlu0 %1000
        %vm1002 = vcmp.eq.f32.partialorder %v167, %v812
        %vm1003 = vcmp.eq.f32.partialorder %v168, %v815
        %vm1004 = vcmp.eq.f32.partialorder %v169, %v818
        %vm1005 = vcmp.eq.f32.partialorder %v170, %v821
        %vm1006 = vcmp.eq.f32.partialorder %v171, %v824
        %vm1007 = vcmp.eq.f32.partialorder %v172, %v827
        %vm1008 = vcmp.eq.f32.partialorder %v173, %v830
        %vm1009 = vcmp.eq.f32.partialorder %v174, %v833
        %vm1010 = vcmp.eq.f32.partialorder %v175, %v836
        %vm1011 = vcmp.eq.f32.partialorder %v176, %v839
        %vm1012 = vcmp.eq.f32.partialorder %v177, %v842
        %vm1013 = vcmp.eq.f32.partialorder %v178, %v845
        %vm1014 = vcmp.eq.f32.partialorder %v179, %v848
        %vm1015 = vcmp.eq.f32.partialorder %v180, %v851
        %vm1016 = vcmp.eq.f32.partialorder %v181, %v854
        %vm1017 = vcmp.eq.f32.partialorder %v182, %v857
        %vm1018 = vcmp.eq.f32.partialorder %v183, %v860
        %vm1019 = vcmp.eq.f32.partialorder %v184, %v863
        %vm1020 = vcmp.eq.f32.partialorder %v185, %v866
        %vm1021 = vcmp.eq.f32.partialorder %v186, %v869
        %vm1022 = vcmp.eq.f32.partialorder %v187, %v872
        %vm1023 = vcmp.eq.f32.partialorder %v188, %v875
        %vm1024 = vcmp.eq.f32.partialorder %v189, %v878
        %vm1025 = vcmp.eq.f32.partialorder %v190, %v881
        %vm1026 = vcmp.eq.f32.partialorder %v191, %v884
        %vm1027 = vcmp.eq.f32.partialorder %v192, %v887
        %vm1028 = vcmp.eq.f32.partialorder %v193, %v890
        %vm1029 = vcmp.eq.f32.partialorder %v194, %v893
        %vm1030 = vcmp.eq.f32.partialorder %v195, %v896
        %vm1031 = vcmp.eq.f32.partialorder %v196, %v899
        %vm1032 = vcmp.eq.f32.partialorder %v197, %v902
        %vm1033 = vcmp.eq.f32.partialorder %v198, %v905
        %vm1034 = vcmp.eq.f32.partialorder %v199, %v908
        %vm1035 = vcmp.eq.f32.partialorder %v200, %v911
        %vm1036 = vcmp.eq.f32.partialorder %v201, %v914
        %vm1037 = vcmp.eq.f32.partialorder %v202, %v917
        %vm1038 = vcmp.eq.f32.partialorder %v203, %v920
        %vm1039 = vcmp.eq.f32.partialorder %v204, %v923
        %vm1040 = vcmp.eq.f32.partialorder %v205, %v926
        %vm1041 = vcmp.eq.f32.partialorder %v206, %v929
        %vm1042 = vcmp.eq.f32.partialorder %v207, %v932
        %vm1043 = vcmp.eq.f32.partialorder %v208, %v935
        %vm1044 = vcmp.eq.f32.partialorder %v209, %v938
        %vm1045 = vcmp.eq.f32.partialorder %v210, %v941
        %vm1046 = vcmp.eq.f32.partialorder %v211, %v944
        %vm1047 = vcmp.eq.f32.partialorder %v212, %v947
        %vm1048 = vcmp.eq.f32.partialorder %v213, %v950
        %vm1049 = vcmp.eq.f32.partialorder %v214, %v953
        %vm1050 = vcmp.eq.f32.partialorder %v215, %v956
        %vm1051 = vcmp.eq.f32.partialorder %v216, %v959
        %vm1052 = vcmp.eq.f32.partialorder %v217, %v962
        %vm1053 = vcmp.eq.f32.partialorder %v218, %v965
        %vm1054 = vcmp.eq.f32.partialorder %v219, %v968
        %vm1055 = vcmp.eq.f32.partialorder %v220, %v971
        %vm1056 = vcmp.eq.f32.partialorder %v221, %v974
        %vm1057 = vcmp.eq.f32.partialorder %v222, %v977
        %vm1058 = vcmp.eq.f32.partialorder %v223, %v980
        %vm1059 = vcmp.eq.f32.partialorder %v224, %v983
        %vm1060 = vcmp.eq.f32.partialorder %v225, %v986
        %vm1061 = vcmp.eq.f32.partialorder %v226, %v989
        %vm1062 = vcmp.eq.f32.partialorder %v227, %v992
        %vm1063 = vcmp.eq.f32.partialorder %v228, %v995
        %vm1064 = vcmp.eq.f32.partialorder %v229, %v998
        %vm1065 = vcmp.eq.f32.partialorder %v230, %v1001
        %v1066 = vsel %vm1002, %v296, 10
        %v1067 = vsel %vm1003, %v296, 10
        %v1068 = vsel %vm1004, %v296, 10
        %v1069 = vsel %vm1005, %v296, 10
        %v1070 = vsel %vm1006, %v296, 10
        %v1071 = vsel %vm1007, %v296, 10
        %v1072 = vsel %vm1008, %v296, 10
        %v1073 = vsel %vm1009, %v296, 10
        %v1074 = vsel %vm1010, %v296, 10
        %v1075 = vsel %vm1011, %v296, 10
        %v1076 = vsel %vm1012, %v296, 10
        %v1077 = vsel %vm1013, %v296, 10
        %v1078 = vsel %vm1014, %v296, 10
        %v1079 = vsel %vm1015, %v296, 10
        %v1080 = vsel %vm1016, %v296, 10
        %v1081 = vsel %vm1017, %v296, 10
        %v1082 = vsel %vm1018, %v296, 10
        %v1083 = vsel %vm1019, %v296, 10
        %v1084 = vsel %vm1020, %v296, 10
        %v1085 = vsel %vm1021, %v296, 10
        %v1086 = vsel %vm1022, %v296, 10
        %v1087 = vsel %vm1023, %v296, 10
        %v1088 = vsel %vm1024, %v296, 10
        %v1089 = vsel %vm1025, %v296, 10
        %v1090 = vsel %vm1026, %v296, 10
        %v1091 = vsel %vm1027, %v296, 10
        %v1092 = vsel %vm1028, %v296, 10
        %v1093 = vsel %vm1029, %v296, 10
        %v1094 = vsel %vm1030, %v296, 10
        %v1095 = vsel %vm1031, %v296, 10
        %v1096 = vsel %vm1032, %v296, 10
        %v1097 = vsel %vm1033, %v296, 10
        %v1098 = vsel %vm1034, %v296, 10
        %v1099 = vsel %vm1035, %v296, 10
        %v1100 = vsel %vm1036, %v296, 10
        %v1101 = vsel %vm1037, %v296, 10
        %v1102 = vsel %vm1038, %v296, 10
        %v1103 = vsel %vm1039, %v296, 10
        %v1104 = vsel %vm1040, %v296, 10
        %v1105 = vsel %vm1041, %v296, 10
        %v1106 = vsel %vm1042, %v296, 10
        %v1107 = vsel %vm1043, %v296, 10
        %v1108 = vsel %vm1044, %v296, 10
        %v1109 = vsel %vm1045, %v296, 10
        %v1110 = vsel %vm1046, %v296, 10
        %v1111 = vsel %vm1047, %v296, 10
        %v1112 = vsel %vm1048, %v296, 10
        %v1113 = vsel %vm1049, %v296, 10
        %v1114 = vsel %vm1050, %v296, 10
        %v1115 = vsel %vm1051, %v296, 10
        %v1116 = vsel %vm1052, %v296, 10
        %v1117 = vsel %vm1053, %v296, 10
        %v1118 = vsel %vm1054, %v296, 10
        %v1119 = vsel %vm1055, %v296, 10
        %v1120 = vsel %vm1056, %v296, 10
        %v1121 = vsel %vm1057, %v296, 10
        %v1122 = vsel %vm1058, %v296, 10
        %v1123 = vsel %vm1059, %v296, 10
        %v1124 = vsel %vm1060, %v296, 10
        %v1125 = vsel %vm1061, %v296, 10
        %v1126 = vsel %vm1062, %v296, 10
        %v1127 = vsel %vm1063, %v296, 10
        %v1128 = vsel %vm1064, %v296, 10
        %v1129 = vsel %vm1065, %v296, 10
        %v1130 = vsel %vm617, %v1066, 2147483647
        %v1131 = vand.u32 %v1130, 65535
        %v1132 = vshra.s32 %v1130, 16
        %v1133 = vcvt.s32.f32 %v1131
        %v1134 = vcvt.s32.f32 %v1132
        %1135 = vmin.xlane.f32.xlu0 %v1134
        %v1136 = vpop.xlane.xlu0 %1135
        %vm1137 = vcmp.eq.f32.partialorder %v1134, %v1136
        %v1138 = vsel %vm1137, %v1133, inf
        %1139 = vmin.xlane.f32.xlu0 %v1138
        %v1140 = vpop.xlane.xlu0 %1139
        %v1141 = vcvt.f32.s32 %v1140
        %v1142 = vcvt.f32.s32 %v1136
        %v1143 = vshll.u32 %v1142, 16
        %v1144 = vadd.s32 %v1143, %v1141
        %v1145 = vsel %vm617, %v1067, 2147483647
        %v1146 = vand.u32 %v1145, 65535
        %v1147 = vshra.s32 %v1145, 16
        %v1148 = vcvt.s32.f32 %v1146
        %v1149 = vcvt.s32.f32 %v1147
        %1150 = vmin.xlane.f32.xlu0 %v1149
        %v1151 = vpop.xlane.xlu0 %1150
        %vm1152 = vcmp.eq.f32.partialorder %v1149, %v1151
        %v1153 = vsel %vm1152, %v1148, inf
        %1154 = vmin.xlane.f32.xlu0 %v1153
        %v1155 = vpop.xlane.xlu0 %1154
        %v1156 = vcvt.f32.s32 %v1155
        %v1157 = vcvt.f32.s32 %v1151
        %v1158 = vshll.u32 %v1157, 16
        %v1159 = vadd.s32 %v1158, %v1156
        %v1160 = vsel %vm617, %v1068, 2147483647
        %v1161 = vand.u32 %v1160, 65535
        %v1162 = vshra.s32 %v1160, 16
        %v1163 = vcvt.s32.f32 %v1161
        %v1164 = vcvt.s32.f32 %v1162
        %1165 = vmin.xlane.f32.xlu0 %v1164
        %v1166 = vpop.xlane.xlu0 %1165
        %vm1167 = vcmp.eq.f32.partialorder %v1164, %v1166
        %v1168 = vsel %vm1167, %v1163, inf
        %1169 = vmin.xlane.f32.xlu0 %v1168
        %v1170 = vpop.xlane.xlu0 %1169
        %v1171 = vcvt.f32.s32 %v1170
        %v1172 = vcvt.f32.s32 %v1166
        %v1173 = vshll.u32 %v1172, 16
        %v1174 = vadd.s32 %v1173, %v1171
        %v1175 = vsel %vm617, %v1069, 2147483647
        %v1176 = vand.u32 %v1175, 65535
        %v1177 = vshra.s32 %v1175, 16
        %v1178 = vcvt.s32.f32 %v1176
        %v1179 = vcvt.s32.f32 %v1177
        %1180 = vmin.xlane.f32.xlu0 %v1179
        %v1181 = vpop.xlane.xlu0 %1180
        %vm1182 = vcmp.eq.f32.partialorder %v1179, %v1181
        %v1183 = vsel %vm1182, %v1178, inf
        %1184 = vmin.xlane.f32.xlu0 %v1183
        %v1185 = vpop.xlane.xlu0 %1184
        %v1186 = vcvt.f32.s32 %v1185
        %v1187 = vcvt.f32.s32 %v1181
        %v1188 = vshll.u32 %v1187, 16
        %v1189 = vadd.s32 %v1188, %v1186
        %v1190 = vsel %vm617, %v1070, 2147483647
        %v1191 = vand.u32 %v1190, 65535
        %v1192 = vshra.s32 %v1190, 16
        %v1193 = vcvt.s32.f32 %v1191
        %v1194 = vcvt.s32.f32 %v1192
        %1195 = vmin.xlane.f32.xlu0 %v1194
        %v1196 = vpop.xlane.xlu0 %1195
        %vm1197 = vcmp.eq.f32.partialorder %v1194, %v1196
        %v1198 = vsel %vm1197, %v1193, inf
        %1199 = vmin.xlane.f32.xlu0 %v1198
        %v1200 = vpop.xlane.xlu0 %1199
        %v1201 = vcvt.f32.s32 %v1200
        %v1202 = vcvt.f32.s32 %v1196
        %v1203 = vshll.u32 %v1202, 16
        %v1204 = vadd.s32 %v1203, %v1201
        %v1205 = vsel %vm617, %v1071, 2147483647
        %v1206 = vand.u32 %v1205, 65535
        %v1207 = vshra.s32 %v1205, 16
        %v1208 = vcvt.s32.f32 %v1206
        %v1209 = vcvt.s32.f32 %v1207
        %1210 = vmin.xlane.f32.xlu0 %v1209
        %v1211 = vpop.xlane.xlu0 %1210
        %vm1212 = vcmp.eq.f32.partialorder %v1209, %v1211
        %v1213 = vsel %vm1212, %v1208, inf
        %1214 = vmin.xlane.f32.xlu0 %v1213
        %v1215 = vpop.xlane.xlu0 %1214
        %v1216 = vcvt.f32.s32 %v1215
        %v1217 = vcvt.f32.s32 %v1211
        %v1218 = vshll.u32 %v1217, 16
        %v1219 = vadd.s32 %v1218, %v1216
        %v1220 = vsel %vm617, %v1072, 2147483647
        %v1221 = vand.u32 %v1220, 65535
        %v1222 = vshra.s32 %v1220, 16
        %v1223 = vcvt.s32.f32 %v1221
        %v1224 = vcvt.s32.f32 %v1222
        %1225 = vmin.xlane.f32.xlu0 %v1224
        %v1226 = vpop.xlane.xlu0 %1225
        %vm1227 = vcmp.eq.f32.partialorder %v1224, %v1226
        %v1228 = vsel %vm1227, %v1223, inf
        %1229 = vmin.xlane.f32.xlu0 %v1228
        %v1230 = vpop.xlane.xlu0 %1229
        %v1231 = vcvt.f32.s32 %v1230
        %v1232 = vcvt.f32.s32 %v1226
        %v1233 = vshll.u32 %v1232, 16
        %v1234 = vadd.s32 %v1233, %v1231
        %v1235 = vsel %vm617, %v1073, 2147483647
        %v1236 = vand.u32 %v1235, 65535
        %v1237 = vshra.s32 %v1235, 16
        %v1238 = vcvt.s32.f32 %v1236
        %v1239 = vcvt.s32.f32 %v1237
        %1240 = vmin.xlane.f32.xlu0 %v1239
        %v1241 = vpop.xlane.xlu0 %1240
        %vm1242 = vcmp.eq.f32.partialorder %v1239, %v1241
        %v1243 = vsel %vm1242, %v1238, inf
        %1244 = vmin.xlane.f32.xlu0 %v1243
        %v1245 = vpop.xlane.xlu0 %1244
        %v1246 = vcvt.f32.s32 %v1245
        %v1247 = vcvt.f32.s32 %v1241
        %v1248 = vshll.u32 %v1247, 16
        %v1249 = vadd.s32 %v1248, %v1246
        %v1250 = vsel %vm617, %v1074, 2147483647
        %v1251 = vand.u32 %v1250, 65535
        %v1252 = vshra.s32 %v1250, 16
        %v1253 = vcvt.s32.f32 %v1251
        %v1254 = vcvt.s32.f32 %v1252
        %1255 = vmin.xlane.f32.xlu0 %v1254
        %v1256 = vpop.xlane.xlu0 %1255
        %vm1257 = vcmp.eq.f32.partialorder %v1254, %v1256
        %v1258 = vsel %vm1257, %v1253, inf
        %1259 = vmin.xlane.f32.xlu0 %v1258
        %v1260 = vpop.xlane.xlu0 %1259
        %v1261 = vcvt.f32.s32 %v1260
        %v1262 = vcvt.f32.s32 %v1256
        %v1263 = vshll.u32 %v1262, 16
        %v1264 = vadd.s32 %v1263, %v1261
        %v1265 = vsel %vm617, %v1075, 2147483647
        %v1266 = vand.u32 %v1265, 65535
        %v1267 = vshra.s32 %v1265, 16
        %v1268 = vcvt.s32.f32 %v1266
        %v1269 = vcvt.s32.f32 %v1267
        %1270 = vmin.xlane.f32.xlu0 %v1269
        %v1271 = vpop.xlane.xlu0 %1270
        %vm1272 = vcmp.eq.f32.partialorder %v1269, %v1271
        %v1273 = vsel %vm1272, %v1268, inf
        %1274 = vmin.xlane.f32.xlu0 %v1273
        %v1275 = vpop.xlane.xlu0 %1274
        %v1276 = vcvt.f32.s32 %v1275
        %v1277 = vcvt.f32.s32 %v1271
        %v1278 = vshll.u32 %v1277, 16
        %v1279 = vadd.s32 %v1278, %v1276
        %v1280 = vsel %vm617, %v1076, 2147483647
        %v1281 = vand.u32 %v1280, 65535
        %v1282 = vshra.s32 %v1280, 16
        %v1283 = vcvt.s32.f32 %v1281
        %v1284 = vcvt.s32.f32 %v1282
        %1285 = vmin.xlane.f32.xlu0 %v1284
        %v1286 = vpop.xlane.xlu0 %1285
        %vm1287 = vcmp.eq.f32.partialorder %v1284, %v1286
        %v1288 = vsel %vm1287, %v1283, inf
        %1289 = vmin.xlane.f32.xlu0 %v1288
        %v1290 = vpop.xlane.xlu0 %1289
        %v1291 = vcvt.f32.s32 %v1290
        %v1292 = vcvt.f32.s32 %v1286
        %v1293 = vshll.u32 %v1292, 16
        %v1294 = vadd.s32 %v1293, %v1291
        %v1295 = vsel %vm617, %v1077, 2147483647
        %v1296 = vand.u32 %v1295, 65535
        %v1297 = vshra.s32 %v1295, 16
        %v1298 = vcvt.s32.f32 %v1296
        %v1299 = vcvt.s32.f32 %v1297
        %1300 = vmin.xlane.f32.xlu0 %v1299
        %v1301 = vpop.xlane.xlu0 %1300
        %vm1302 = vcmp.eq.f32.partialorder %v1299, %v1301
        %v1303 = vsel %vm1302, %v1298, inf
        %1304 = vmin.xlane.f32.xlu0 %v1303
        %v1305 = vpop.xlane.xlu0 %1304
        %v1306 = vcvt.f32.s32 %v1305
        %v1307 = vcvt.f32.s32 %v1301
        %v1308 = vshll.u32 %v1307, 16
        %v1309 = vadd.s32 %v1308, %v1306
        %v1310 = vsel %vm617, %v1078, 2147483647
        %v1311 = vand.u32 %v1310, 65535
        %v1312 = vshra.s32 %v1310, 16
        %v1313 = vcvt.s32.f32 %v1311
        %v1314 = vcvt.s32.f32 %v1312
        %1315 = vmin.xlane.f32.xlu0 %v1314
        %v1316 = vpop.xlane.xlu0 %1315
        %vm1317 = vcmp.eq.f32.partialorder %v1314, %v1316
        %v1318 = vsel %vm1317, %v1313, inf
        %1319 = vmin.xlane.f32.xlu0 %v1318
        %v1320 = vpop.xlane.xlu0 %1319
        %v1321 = vcvt.f32.s32 %v1320
        %v1322 = vcvt.f32.s32 %v1316
        %v1323 = vshll.u32 %v1322, 16
        %v1324 = vadd.s32 %v1323, %v1321
        %v1325 = vsel %vm617, %v1079, 2147483647
        %v1326 = vand.u32 %v1325, 65535
        %v1327 = vshra.s32 %v1325, 16
        %v1328 = vcvt.s32.f32 %v1326
        %v1329 = vcvt.s32.f32 %v1327
        %1330 = vmin.xlane.f32.xlu0 %v1329
        %v1331 = vpop.xlane.xlu0 %1330
        %vm1332 = vcmp.eq.f32.partialorder %v1329, %v1331
        %v1333 = vsel %vm1332, %v1328, inf
        %1334 = vmin.xlane.f32.xlu0 %v1333
        %v1335 = vpop.xlane.xlu0 %1334
        %v1336 = vcvt.f32.s32 %v1335
        %v1337 = vcvt.f32.s32 %v1331
        %v1338 = vshll.u32 %v1337, 16
        %v1339 = vadd.s32 %v1338, %v1336
        %v1340 = vsel %vm617, %v1080, 2147483647
        %v1341 = vand.u32 %v1340, 65535
        %v1342 = vshra.s32 %v1340, 16
        %v1343 = vcvt.s32.f32 %v1341
        %v1344 = vcvt.s32.f32 %v1342
        %1345 = vmin.xlane.f32.xlu0 %v1344
        %v1346 = vpop.xlane.xlu0 %1345
        %vm1347 = vcmp.eq.f32.partialorder %v1344, %v1346
        %v1348 = vsel %vm1347, %v1343, inf
        %1349 = vmin.xlane.f32.xlu0 %v1348
        %v1350 = vpop.xlane.xlu0 %1349
        %v1351 = vcvt.f32.s32 %v1350
        %v1352 = vcvt.f32.s32 %v1346
        %v1353 = vshll.u32 %v1352, 16
        %v1354 = vadd.s32 %v1353, %v1351
        %v1355 = vsel %vm617, %v1081, 2147483647
        %v1356 = vand.u32 %v1355, 65535
        %v1357 = vshra.s32 %v1355, 16
        %v1358 = vcvt.s32.f32 %v1356
        %v1359 = vcvt.s32.f32 %v1357
        %1360 = vmin.xlane.f32.xlu0 %v1359
        %v1361 = vpop.xlane.xlu0 %1360
        %vm1362 = vcmp.eq.f32.partialorder %v1359, %v1361
        %v1363 = vsel %vm1362, %v1358, inf
        %1364 = vmin.xlane.f32.xlu0 %v1363
        %v1365 = vpop.xlane.xlu0 %1364
        %v1366 = vcvt.f32.s32 %v1365
        %v1367 = vcvt.f32.s32 %v1361
        %v1368 = vshll.u32 %v1367, 16
        %v1369 = vadd.s32 %v1368, %v1366
        %v1370 = vsel %vm617, %v1082, 2147483647
        %v1371 = vand.u32 %v1370, 65535
        %v1372 = vshra.s32 %v1370, 16
        %v1373 = vcvt.s32.f32 %v1371
        %v1374 = vcvt.s32.f32 %v1372
        %1375 = vmin.xlane.f32.xlu0 %v1374
        %v1376 = vpop.xlane.xlu0 %1375
        %vm1377 = vcmp.eq.f32.partialorder %v1374, %v1376
        %v1378 = vsel %vm1377, %v1373, inf
        %1379 = vmin.xlane.f32.xlu0 %v1378
        %v1380 = vpop.xlane.xlu0 %1379
        %v1381 = vcvt.f32.s32 %v1380
        %v1382 = vcvt.f32.s32 %v1376
        %v1383 = vshll.u32 %v1382, 16
        %v1384 = vadd.s32 %v1383, %v1381
        %v1385 = vsel %vm617, %v1083, 2147483647
        %v1386 = vand.u32 %v1385, 65535
        %v1387 = vshra.s32 %v1385, 16
        %v1388 = vcvt.s32.f32 %v1386
        %v1389 = vcvt.s32.f32 %v1387
        %1390 = vmin.xlane.f32.xlu0 %v1389
        %v1391 = vpop.xlane.xlu0 %1390
        %vm1392 = vcmp.eq.f32.partialorder %v1389, %v1391
        %v1393 = vsel %vm1392, %v1388, inf
        %1394 = vmin.xlane.f32.xlu0 %v1393
        %v1395 = vpop.xlane.xlu0 %1394
        %v1396 = vcvt.f32.s32 %v1395
        %v1397 = vcvt.f32.s32 %v1391
        %v1398 = vshll.u32 %v1397, 16
        %v1399 = vadd.s32 %v1398, %v1396
        %v1400 = vsel %vm617, %v1084, 2147483647
        %v1401 = vand.u32 %v1400, 65535
        %v1402 = vshra.s32 %v1400, 16
        %v1403 = vcvt.s32.f32 %v1401
        %v1404 = vcvt.s32.f32 %v1402
        %1405 = vmin.xlane.f32.xlu0 %v1404
        %v1406 = vpop.xlane.xlu0 %1405
        %vm1407 = vcmp.eq.f32.partialorder %v1404, %v1406
        %v1408 = vsel %vm1407, %v1403, inf
        %1409 = vmin.xlane.f32.xlu0 %v1408
        %v1410 = vpop.xlane.xlu0 %1409
        %v1411 = vcvt.f32.s32 %v1410
        %v1412 = vcvt.f32.s32 %v1406
        %v1413 = vshll.u32 %v1412, 16
        %v1414 = vadd.s32 %v1413, %v1411
        %v1415 = vsel %vm617, %v1085, 2147483647
        %v1416 = vand.u32 %v1415, 65535
        %v1417 = vshra.s32 %v1415, 16
        %v1418 = vcvt.s32.f32 %v1416
        %v1419 = vcvt.s32.f32 %v1417
        %1420 = vmin.xlane.f32.xlu0 %v1419
        %v1421 = vpop.xlane.xlu0 %1420
        %vm1422 = vcmp.eq.f32.partialorder %v1419, %v1421
        %v1423 = vsel %vm1422, %v1418, inf
        %1424 = vmin.xlane.f32.xlu0 %v1423
        %v1425 = vpop.xlane.xlu0 %1424
        %v1426 = vcvt.f32.s32 %v1425
        %v1427 = vcvt.f32.s32 %v1421
        %v1428 = vshll.u32 %v1427, 16
        %v1429 = vadd.s32 %v1428, %v1426
        %v1430 = vsel %vm617, %v1086, 2147483647
        %v1431 = vand.u32 %v1430, 65535
        %v1432 = vshra.s32 %v1430, 16
        %v1433 = vcvt.s32.f32 %v1431
        %v1434 = vcvt.s32.f32 %v1432
        %1435 = vmin.xlane.f32.xlu0 %v1434
        %v1436 = vpop.xlane.xlu0 %1435
        %vm1437 = vcmp.eq.f32.partialorder %v1434, %v1436
        %v1438 = vsel %vm1437, %v1433, inf
        %1439 = vmin.xlane.f32.xlu0 %v1438
        %v1440 = vpop.xlane.xlu0 %1439
        %v1441 = vcvt.f32.s32 %v1440
        %v1442 = vcvt.f32.s32 %v1436
        %v1443 = vshll.u32 %v1442, 16
        %v1444 = vadd.s32 %v1443, %v1441
        %v1445 = vsel %vm617, %v1087, 2147483647
        %v1446 = vand.u32 %v1445, 65535
        %v1447 = vshra.s32 %v1445, 16
        %v1448 = vcvt.s32.f32 %v1446
        %v1449 = vcvt.s32.f32 %v1447
        %1450 = vmin.xlane.f32.xlu0 %v1449
        %v1451 = vpop.xlane.xlu0 %1450
        %vm1452 = vcmp.eq.f32.partialorder %v1449, %v1451
        %v1453 = vsel %vm1452, %v1448, inf
        %1454 = vmin.xlane.f32.xlu0 %v1453
        %v1455 = vpop.xlane.xlu0 %1454
        %v1456 = vcvt.f32.s32 %v1455
        %v1457 = vcvt.f32.s32 %v1451
        %v1458 = vshll.u32 %v1457, 16
        %v1459 = vadd.s32 %v1458, %v1456
        %v1460 = vsel %vm617, %v1088, 2147483647
        %v1461 = vand.u32 %v1460, 65535
        %v1462 = vshra.s32 %v1460, 16
        %v1463 = vcvt.s32.f32 %v1461
        %v1464 = vcvt.s32.f32 %v1462
        %1465 = vmin.xlane.f32.xlu0 %v1464
        %v1466 = vpop.xlane.xlu0 %1465
        %vm1467 = vcmp.eq.f32.partialorder %v1464, %v1466
        %v1468 = vsel %vm1467, %v1463, inf
        %1469 = vmin.xlane.f32.xlu0 %v1468
        %v1470 = vpop.xlane.xlu0 %1469
        %v1471 = vcvt.f32.s32 %v1470
        %v1472 = vcvt.f32.s32 %v1466
        %v1473 = vshll.u32 %v1472, 16
        %v1474 = vadd.s32 %v1473, %v1471
        %v1475 = vsel %vm617, %v1089, 2147483647
        %v1476 = vand.u32 %v1475, 65535
        %v1477 = vshra.s32 %v1475, 16
        %v1478 = vcvt.s32.f32 %v1476
        %v1479 = vcvt.s32.f32 %v1477
        %1480 = vmin.xlane.f32.xlu0 %v1479
        %v1481 = vpop.xlane.xlu0 %1480
        %vm1482 = vcmp.eq.f32.partialorder %v1479, %v1481
        %v1483 = vsel %vm1482, %v1478, inf
        %1484 = vmin.xlane.f32.xlu0 %v1483
        %v1485 = vpop.xlane.xlu0 %1484
        %v1486 = vcvt.f32.s32 %v1485
        %v1487 = vcvt.f32.s32 %v1481
        %v1488 = vshll.u32 %v1487, 16
        %v1489 = vadd.s32 %v1488, %v1486
        %v1490 = vsel %vm617, %v1090, 2147483647
        %v1491 = vand.u32 %v1490, 65535
        %v1492 = vshra.s32 %v1490, 16
        %v1493 = vcvt.s32.f32 %v1491
        %v1494 = vcvt.s32.f32 %v1492
        %1495 = vmin.xlane.f32.xlu0 %v1494
        %v1496 = vpop.xlane.xlu0 %1495
        %vm1497 = vcmp.eq.f32.partialorder %v1494, %v1496
        %v1498 = vsel %vm1497, %v1493, inf
        %1499 = vmin.xlane.f32.xlu0 %v1498
        %v1500 = vpop.xlane.xlu0 %1499
        %v1501 = vcvt.f32.s32 %v1500
        %v1502 = vcvt.f32.s32 %v1496
        %v1503 = vshll.u32 %v1502, 16
        %v1504 = vadd.s32 %v1503, %v1501
        %v1505 = vsel %vm617, %v1091, 2147483647
        %v1506 = vand.u32 %v1505, 65535
        %v1507 = vshra.s32 %v1505, 16
        %v1508 = vcvt.s32.f32 %v1506
        %v1509 = vcvt.s32.f32 %v1507
        %1510 = vmin.xlane.f32.xlu0 %v1509
        %v1511 = vpop.xlane.xlu0 %1510
        %vm1512 = vcmp.eq.f32.partialorder %v1509, %v1511
        %v1513 = vsel %vm1512, %v1508, inf
        %1514 = vmin.xlane.f32.xlu0 %v1513
        %v1515 = vpop.xlane.xlu0 %1514
        %v1516 = vcvt.f32.s32 %v1515
        %v1517 = vcvt.f32.s32 %v1511
        %v1518 = vshll.u32 %v1517, 16
        %v1519 = vadd.s32 %v1518, %v1516
        %v1520 = vsel %vm617, %v1092, 2147483647
        %v1521 = vand.u32 %v1520, 65535
        %v1522 = vshra.s32 %v1520, 16
        %v1523 = vcvt.s32.f32 %v1521
        %v1524 = vcvt.s32.f32 %v1522
        %1525 = vmin.xlane.f32.xlu0 %v1524
        %v1526 = vpop.xlane.xlu0 %1525
        %vm1527 = vcmp.eq.f32.partialorder %v1524, %v1526
        %v1528 = vsel %vm1527, %v1523, inf
        %1529 = vmin.xlane.f32.xlu0 %v1528
        %v1530 = vpop.xlane.xlu0 %1529
        %v1531 = vcvt.f32.s32 %v1530
        %v1532 = vcvt.f32.s32 %v1526
        %v1533 = vshll.u32 %v1532, 16
        %v1534 = vadd.s32 %v1533, %v1531
        %v1535 = vsel %vm617, %v1093, 2147483647
        %v1536 = vand.u32 %v1535, 65535
        %v1537 = vshra.s32 %v1535, 16
        %v1538 = vcvt.s32.f32 %v1536
        %v1539 = vcvt.s32.f32 %v1537
        %1540 = vmin.xlane.f32.xlu0 %v1539
        %v1541 = vpop.xlane.xlu0 %1540
        %vm1542 = vcmp.eq.f32.partialorder %v1539, %v1541
        %v1543 = vsel %vm1542, %v1538, inf
        %1544 = vmin.xlane.f32.xlu0 %v1543
        %v1545 = vpop.xlane.xlu0 %1544
        %v1546 = vcvt.f32.s32 %v1545
        %v1547 = vcvt.f32.s32 %v1541
        %v1548 = vshll.u32 %v1547, 16
        %v1549 = vadd.s32 %v1548, %v1546
        %v1550 = vsel %vm617, %v1094, 2147483647
        %v1551 = vand.u32 %v1550, 65535
        %v1552 = vshra.s32 %v1550, 16
        %v1553 = vcvt.s32.f32 %v1551
        %v1554 = vcvt.s32.f32 %v1552
        %1555 = vmin.xlane.f32.xlu0 %v1554
        %v1556 = vpop.xlane.xlu0 %1555
        %vm1557 = vcmp.eq.f32.partialorder %v1554, %v1556
        %v1558 = vsel %vm1557, %v1553, inf
        %1559 = vmin.xlane.f32.xlu0 %v1558
        %v1560 = vpop.xlane.xlu0 %1559
        %v1561 = vcvt.f32.s32 %v1560
        %v1562 = vcvt.f32.s32 %v1556
        %v1563 = vshll.u32 %v1562, 16
        %v1564 = vadd.s32 %v1563, %v1561
        %v1565 = vsel %vm617, %v1095, 2147483647
        %v1566 = vand.u32 %v1565, 65535
        %v1567 = vshra.s32 %v1565, 16
        %v1568 = vcvt.s32.f32 %v1566
        %v1569 = vcvt.s32.f32 %v1567
        %1570 = vmin.xlane.f32.xlu0 %v1569
        %v1571 = vpop.xlane.xlu0 %1570
        %vm1572 = vcmp.eq.f32.partialorder %v1569, %v1571
        %v1573 = vsel %vm1572, %v1568, inf
        %1574 = vmin.xlane.f32.xlu0 %v1573
        %v1575 = vpop.xlane.xlu0 %1574
        %v1576 = vcvt.f32.s32 %v1575
        %v1577 = vcvt.f32.s32 %v1571
        %v1578 = vshll.u32 %v1577, 16
        %v1579 = vadd.s32 %v1578, %v1576
        %v1580 = vsel %vm617, %v1096, 2147483647
        %v1581 = vand.u32 %v1580, 65535
        %v1582 = vshra.s32 %v1580, 16
        %v1583 = vcvt.s32.f32 %v1581
        %v1584 = vcvt.s32.f32 %v1582
        %1585 = vmin.xlane.f32.xlu0 %v1584
        %v1586 = vpop.xlane.xlu0 %1585
        %vm1587 = vcmp.eq.f32.partialorder %v1584, %v1586
        %v1588 = vsel %vm1587, %v1583, inf
        %1589 = vmin.xlane.f32.xlu0 %v1588
        %v1590 = vpop.xlane.xlu0 %1589
        %v1591 = vcvt.f32.s32 %v1590
        %v1592 = vcvt.f32.s32 %v1586
        %v1593 = vshll.u32 %v1592, 16
        %v1594 = vadd.s32 %v1593, %v1591
        %v1595 = vsel %vm617, %v1097, 2147483647
        %v1596 = vand.u32 %v1595, 65535
        %v1597 = vshra.s32 %v1595, 16
        %v1598 = vcvt.s32.f32 %v1596
        %v1599 = vcvt.s32.f32 %v1597
        %1600 = vmin.xlane.f32.xlu0 %v1599
        %v1601 = vpop.xlane.xlu0 %1600
        %vm1602 = vcmp.eq.f32.partialorder %v1599, %v1601
        %v1603 = vsel %vm1602, %v1598, inf
        %1604 = vmin.xlane.f32.xlu0 %v1603
        %v1605 = vpop.xlane.xlu0 %1604
        %v1606 = vcvt.f32.s32 %v1605
        %v1607 = vcvt.f32.s32 %v1601
        %v1608 = vshll.u32 %v1607, 16
        %v1609 = vadd.s32 %v1608, %v1606
        %v1610 = vsel %vm617, %v1098, 2147483647
        %v1611 = vand.u32 %v1610, 65535
        %v1612 = vshra.s32 %v1610, 16
        %v1613 = vcvt.s32.f32 %v1611
        %v1614 = vcvt.s32.f32 %v1612
        %1615 = vmin.xlane.f32.xlu0 %v1614
        %v1616 = vpop.xlane.xlu0 %1615
        %vm1617 = vcmp.eq.f32.partialorder %v1614, %v1616
        %v1618 = vsel %vm1617, %v1613, inf
        %1619 = vmin.xlane.f32.xlu0 %v1618
        %v1620 = vpop.xlane.xlu0 %1619
        %v1621 = vcvt.f32.s32 %v1620
        %v1622 = vcvt.f32.s32 %v1616
        %v1623 = vshll.u32 %v1622, 16
        %v1624 = vadd.s32 %v1623, %v1621
        %v1625 = vsel %vm617, %v1099, 2147483647
        %v1626 = vand.u32 %v1625, 65535
        %v1627 = vshra.s32 %v1625, 16
        %v1628 = vcvt.s32.f32 %v1626
        %v1629 = vcvt.s32.f32 %v1627
        %1630 = vmin.xlane.f32.xlu0 %v1629
        %v1631 = vpop.xlane.xlu0 %1630
        %vm1632 = vcmp.eq.f32.partialorder %v1629, %v1631
        %v1633 = vsel %vm1632, %v1628, inf
        %1634 = vmin.xlane.f32.xlu0 %v1633
        %v1635 = vpop.xlane.xlu0 %1634
        %v1636 = vcvt.f32.s32 %v1635
        %v1637 = vcvt.f32.s32 %v1631
        %v1638 = vshll.u32 %v1637, 16
        %v1639 = vadd.s32 %v1638, %v1636
        %v1640 = vsel %vm617, %v1100, 2147483647
        %v1641 = vand.u32 %v1640, 65535
        %v1642 = vshra.s32 %v1640, 16
        %v1643 = vcvt.s32.f32 %v1641
        %v1644 = vcvt.s32.f32 %v1642
        %1645 = vmin.xlane.f32.xlu0 %v1644
        %v1646 = vpop.xlane.xlu0 %1645
        %vm1647 = vcmp.eq.f32.partialorder %v1644, %v1646
        %v1648 = vsel %vm1647, %v1643, inf
        %1649 = vmin.xlane.f32.xlu0 %v1648
        %v1650 = vpop.xlane.xlu0 %1649
        %v1651 = vcvt.f32.s32 %v1650
        %v1652 = vcvt.f32.s32 %v1646
        %v1653 = vshll.u32 %v1652, 16
        %v1654 = vadd.s32 %v1653, %v1651
        %v1655 = vsel %vm617, %v1101, 2147483647
        %v1656 = vand.u32 %v1655, 65535
        %v1657 = vshra.s32 %v1655, 16
        %v1658 = vcvt.s32.f32 %v1656
        %v1659 = vcvt.s32.f32 %v1657
        %1660 = vmin.xlane.f32.xlu0 %v1659
        %v1661 = vpop.xlane.xlu0 %1660
        %vm1662 = vcmp.eq.f32.partialorder %v1659, %v1661
        %v1663 = vsel %vm1662, %v1658, inf
        %1664 = vmin.xlane.f32.xlu0 %v1663
        %v1665 = vpop.xlane.xlu0 %1664
        %v1666 = vcvt.f32.s32 %v1665
        %v1667 = vcvt.f32.s32 %v1661
        %v1668 = vshll.u32 %v1667, 16
        %v1669 = vadd.s32 %v1668, %v1666
        %v1670 = vsel %vm617, %v1102, 2147483647
        %v1671 = vand.u32 %v1670, 65535
        %v1672 = vshra.s32 %v1670, 16
        %v1673 = vcvt.s32.f32 %v1671
        %v1674 = vcvt.s32.f32 %v1672
        %1675 = vmin.xlane.f32.xlu0 %v1674
        %v1676 = vpop.xlane.xlu0 %1675
        %vm1677 = vcmp.eq.f32.partialorder %v1674, %v1676
        %v1678 = vsel %vm1677, %v1673, inf
        %1679 = vmin.xlane.f32.xlu0 %v1678
        %v1680 = vpop.xlane.xlu0 %1679
        %v1681 = vcvt.f32.s32 %v1680
        %v1682 = vcvt.f32.s32 %v1676
        %v1683 = vshll.u32 %v1682, 16
        %v1684 = vadd.s32 %v1683, %v1681
        %v1685 = vsel %vm617, %v1103, 2147483647
        %v1686 = vand.u32 %v1685, 65535
        %v1687 = vshra.s32 %v1685, 16
        %v1688 = vcvt.s32.f32 %v1686
        %v1689 = vcvt.s32.f32 %v1687
        %1690 = vmin.xlane.f32.xlu0 %v1689
        %v1691 = vpop.xlane.xlu0 %1690
        %vm1692 = vcmp.eq.f32.partialorder %v1689, %v1691
        %v1693 = vsel %vm1692, %v1688, inf
        %1694 = vmin.xlane.f32.xlu0 %v1693
        %v1695 = vpop.xlane.xlu0 %1694
        %v1696 = vcvt.f32.s32 %v1695
        %v1697 = vcvt.f32.s32 %v1691
        %v1698 = vshll.u32 %v1697, 16
        %v1699 = vadd.s32 %v1698, %v1696
        %v1700 = vsel %vm617, %v1104, 2147483647
        %v1701 = vand.u32 %v1700, 65535
        %v1702 = vshra.s32 %v1700, 16
        %v1703 = vcvt.s32.f32 %v1701
        %v1704 = vcvt.s32.f32 %v1702
        %1705 = vmin.xlane.f32.xlu0 %v1704
        %v1706 = vpop.xlane.xlu0 %1705
        %vm1707 = vcmp.eq.f32.partialorder %v1704, %v1706
        %v1708 = vsel %vm1707, %v1703, inf
        %1709 = vmin.xlane.f32.xlu0 %v1708
        %v1710 = vpop.xlane.xlu0 %1709
        %v1711 = vcvt.f32.s32 %v1710
        %v1712 = vcvt.f32.s32 %v1706
        %v1713 = vshll.u32 %v1712, 16
        %v1714 = vadd.s32 %v1713, %v1711
        %v1715 = vsel %vm617, %v1105, 2147483647
        %v1716 = vand.u32 %v1715, 65535
        %v1717 = vshra.s32 %v1715, 16
        %v1718 = vcvt.s32.f32 %v1716
        %v1719 = vcvt.s32.f32 %v1717
        %1720 = vmin.xlane.f32.xlu0 %v1719
        %v1721 = vpop.xlane.xlu0 %1720
        %vm1722 = vcmp.eq.f32.partialorder %v1719, %v1721
        %v1723 = vsel %vm1722, %v1718, inf
        %1724 = vmin.xlane.f32.xlu0 %v1723
        %v1725 = vpop.xlane.xlu0 %1724
        %v1726 = vcvt.f32.s32 %v1725
        %v1727 = vcvt.f32.s32 %v1721
        %v1728 = vshll.u32 %v1727, 16
        %v1729 = vadd.s32 %v1728, %v1726
        %v1730 = vsel %vm617, %v1106, 2147483647
        %v1731 = vand.u32 %v1730, 65535
        %v1732 = vshra.s32 %v1730, 16
        %v1733 = vcvt.s32.f32 %v1731
        %v1734 = vcvt.s32.f32 %v1732
        %1735 = vmin.xlane.f32.xlu0 %v1734
        %v1736 = vpop.xlane.xlu0 %1735
        %vm1737 = vcmp.eq.f32.partialorder %v1734, %v1736
        %v1738 = vsel %vm1737, %v1733, inf
        %1739 = vmin.xlane.f32.xlu0 %v1738
        %v1740 = vpop.xlane.xlu0 %1739
        %v1741 = vcvt.f32.s32 %v1740
        %v1742 = vcvt.f32.s32 %v1736
        %v1743 = vshll.u32 %v1742, 16
        %v1744 = vadd.s32 %v1743, %v1741
        %v1745 = vsel %vm617, %v1107, 2147483647
        %v1746 = vand.u32 %v1745, 65535
        %v1747 = vshra.s32 %v1745, 16
        %v1748 = vcvt.s32.f32 %v1746
        %v1749 = vcvt.s32.f32 %v1747
        %1750 = vmin.xlane.f32.xlu0 %v1749
        %v1751 = vpop.xlane.xlu0 %1750
        %vm1752 = vcmp.eq.f32.partialorder %v1749, %v1751
        %v1753 = vsel %vm1752, %v1748, inf
        %1754 = vmin.xlane.f32.xlu0 %v1753
        %v1755 = vpop.xlane.xlu0 %1754
        %v1756 = vcvt.f32.s32 %v1755
        %v1757 = vcvt.f32.s32 %v1751
        %v1758 = vshll.u32 %v1757, 16
        %v1759 = vadd.s32 %v1758, %v1756
        %v1760 = vsel %vm617, %v1108, 2147483647
        %v1761 = vand.u32 %v1760, 65535
        %v1762 = vshra.s32 %v1760, 16
        %v1763 = vcvt.s32.f32 %v1761
        %v1764 = vcvt.s32.f32 %v1762
        %1765 = vmin.xlane.f32.xlu0 %v1764
        %v1766 = vpop.xlane.xlu0 %1765
        %vm1767 = vcmp.eq.f32.partialorder %v1764, %v1766
        %v1768 = vsel %vm1767, %v1763, inf
        %1769 = vmin.xlane.f32.xlu0 %v1768
        %v1770 = vpop.xlane.xlu0 %1769
        %v1771 = vcvt.f32.s32 %v1770
        %v1772 = vcvt.f32.s32 %v1766
        %v1773 = vshll.u32 %v1772, 16
        %v1774 = vadd.s32 %v1773, %v1771
        %v1775 = vsel %vm617, %v1109, 2147483647
        %v1776 = vand.u32 %v1775, 65535
        %v1777 = vshra.s32 %v1775, 16
        %v1778 = vcvt.s32.f32 %v1776
        %v1779 = vcvt.s32.f32 %v1777
        %1780 = vmin.xlane.f32.xlu0 %v1779
        %v1781 = vpop.xlane.xlu0 %1780
        %vm1782 = vcmp.eq.f32.partialorder %v1779, %v1781
        %v1783 = vsel %vm1782, %v1778, inf
        %1784 = vmin.xlane.f32.xlu0 %v1783
        %v1785 = vpop.xlane.xlu0 %1784
        %v1786 = vcvt.f32.s32 %v1785
        %v1787 = vcvt.f32.s32 %v1781
        %v1788 = vshll.u32 %v1787, 16
        %v1789 = vadd.s32 %v1788, %v1786
        %v1790 = vsel %vm617, %v1110, 2147483647
        %v1791 = vand.u32 %v1790, 65535
        %v1792 = vshra.s32 %v1790, 16
        %v1793 = vcvt.s32.f32 %v1791
        %v1794 = vcvt.s32.f32 %v1792
        %1795 = vmin.xlane.f32.xlu0 %v1794
        %v1796 = vpop.xlane.xlu0 %1795
        %vm1797 = vcmp.eq.f32.partialorder %v1794, %v1796
        %v1798 = vsel %vm1797, %v1793, inf
        %1799 = vmin.xlane.f32.xlu0 %v1798
        %v1800 = vpop.xlane.xlu0 %1799
        %v1801 = vcvt.f32.s32 %v1800
        %v1802 = vcvt.f32.s32 %v1796
        %v1803 = vshll.u32 %v1802, 16
        %v1804 = vadd.s32 %v1803, %v1801
        %v1805 = vsel %vm617, %v1111, 2147483647
        %v1806 = vand.u32 %v1805, 65535
        %v1807 = vshra.s32 %v1805, 16
        %v1808 = vcvt.s32.f32 %v1806
        %v1809 = vcvt.s32.f32 %v1807
        %1810 = vmin.xlane.f32.xlu0 %v1809
        %v1811 = vpop.xlane.xlu0 %1810
        %vm1812 = vcmp.eq.f32.partialorder %v1809, %v1811
        %v1813 = vsel %vm1812, %v1808, inf
        %1814 = vmin.xlane.f32.xlu0 %v1813
        %v1815 = vpop.xlane.xlu0 %1814
        %v1816 = vcvt.f32.s32 %v1815
        %v1817 = vcvt.f32.s32 %v1811
        %v1818 = vshll.u32 %v1817, 16
        %v1819 = vadd.s32 %v1818, %v1816
        %v1820 = vsel %vm617, %v1112, 2147483647
        %v1821 = vand.u32 %v1820, 65535
        %v1822 = vshra.s32 %v1820, 16
        %v1823 = vcvt.s32.f32 %v1821
        %v1824 = vcvt.s32.f32 %v1822
        %1825 = vmin.xlane.f32.xlu0 %v1824
        %v1826 = vpop.xlane.xlu0 %1825
        %vm1827 = vcmp.eq.f32.partialorder %v1824, %v1826
        %v1828 = vsel %vm1827, %v1823, inf
        %1829 = vmin.xlane.f32.xlu0 %v1828
        %v1830 = vpop.xlane.xlu0 %1829
        %v1831 = vcvt.f32.s32 %v1830
        %v1832 = vcvt.f32.s32 %v1826
        %v1833 = vshll.u32 %v1832, 16
        %v1834 = vadd.s32 %v1833, %v1831
        %v1835 = vsel %vm617, %v1113, 2147483647
        %v1836 = vand.u32 %v1835, 65535
        %v1837 = vshra.s32 %v1835, 16
        %v1838 = vcvt.s32.f32 %v1836
        %v1839 = vcvt.s32.f32 %v1837
        %1840 = vmin.xlane.f32.xlu0 %v1839
        %v1841 = vpop.xlane.xlu0 %1840
        %vm1842 = vcmp.eq.f32.partialorder %v1839, %v1841
        %v1843 = vsel %vm1842, %v1838, inf
        %1844 = vmin.xlane.f32.xlu0 %v1843
        %v1845 = vpop.xlane.xlu0 %1844
        %v1846 = vcvt.f32.s32 %v1845
        %v1847 = vcvt.f32.s32 %v1841
        %v1848 = vshll.u32 %v1847, 16
        %v1849 = vadd.s32 %v1848, %v1846
        %v1850 = vsel %vm617, %v1114, 2147483647
        %v1851 = vand.u32 %v1850, 65535
        %v1852 = vshra.s32 %v1850, 16
        %v1853 = vcvt.s32.f32 %v1851
        %v1854 = vcvt.s32.f32 %v1852
        %1855 = vmin.xlane.f32.xlu0 %v1854
        %v1856 = vpop.xlane.xlu0 %1855
        %vm1857 = vcmp.eq.f32.partialorder %v1854, %v1856
        %v1858 = vsel %vm1857, %v1853, inf
        %1859 = vmin.xlane.f32.xlu0 %v1858
        %v1860 = vpop.xlane.xlu0 %1859
        %v1861 = vcvt.f32.s32 %v1860
        %v1862 = vcvt.f32.s32 %v1856
        %v1863 = vshll.u32 %v1862, 16
        %v1864 = vadd.s32 %v1863, %v1861
        %v1865 = vsel %vm617, %v1115, 2147483647
        %v1866 = vand.u32 %v1865, 65535
        %v1867 = vshra.s32 %v1865, 16
        %v1868 = vcvt.s32.f32 %v1866
        %v1869 = vcvt.s32.f32 %v1867
        %1870 = vmin.xlane.f32.xlu0 %v1869
        %v1871 = vpop.xlane.xlu0 %1870
        %vm1872 = vcmp.eq.f32.partialorder %v1869, %v1871
        %v1873 = vsel %vm1872, %v1868, inf
        %1874 = vmin.xlane.f32.xlu0 %v1873
        %v1875 = vpop.xlane.xlu0 %1874
        %v1876 = vcvt.f32.s32 %v1875
        %v1877 = vcvt.f32.s32 %v1871
        %v1878 = vshll.u32 %v1877, 16
        %v1879 = vadd.s32 %v1878, %v1876
        %v1880 = vsel %vm617, %v1116, 2147483647
        %v1881 = vand.u32 %v1880, 65535
        %v1882 = vshra.s32 %v1880, 16
        %v1883 = vcvt.s32.f32 %v1881
        %v1884 = vcvt.s32.f32 %v1882
        %1885 = vmin.xlane.f32.xlu0 %v1884
        %v1886 = vpop.xlane.xlu0 %1885
        %vm1887 = vcmp.eq.f32.partialorder %v1884, %v1886
        %v1888 = vsel %vm1887, %v1883, inf
        %1889 = vmin.xlane.f32.xlu0 %v1888
        %v1890 = vpop.xlane.xlu0 %1889
        %v1891 = vcvt.f32.s32 %v1890
        %v1892 = vcvt.f32.s32 %v1886
        %v1893 = vshll.u32 %v1892, 16
        %v1894 = vadd.s32 %v1893, %v1891
        %v1895 = vsel %vm617, %v1117, 2147483647
        %v1896 = vand.u32 %v1895, 65535
        %v1897 = vshra.s32 %v1895, 16
        %v1898 = vcvt.s32.f32 %v1896
        %v1899 = vcvt.s32.f32 %v1897
        %1900 = vmin.xlane.f32.xlu0 %v1899
        %v1901 = vpop.xlane.xlu0 %1900
        %vm1902 = vcmp.eq.f32.partialorder %v1899, %v1901
        %v1903 = vsel %vm1902, %v1898, inf
        %1904 = vmin.xlane.f32.xlu0 %v1903
        %v1905 = vpop.xlane.xlu0 %1904
        %v1906 = vcvt.f32.s32 %v1905
        %v1907 = vcvt.f32.s32 %v1901
        %v1908 = vshll.u32 %v1907, 16
        %v1909 = vadd.s32 %v1908, %v1906
        %v1910 = vsel %vm617, %v1118, 2147483647
        %v1911 = vand.u32 %v1910, 65535
        %v1912 = vshra.s32 %v1910, 16
        %v1913 = vcvt.s32.f32 %v1911
        %v1914 = vcvt.s32.f32 %v1912
        %1915 = vmin.xlane.f32.xlu0 %v1914
        %v1916 = vpop.xlane.xlu0 %1915
        %vm1917 = vcmp.eq.f32.partialorder %v1914, %v1916
        %v1918 = vsel %vm1917, %v1913, inf
        %1919 = vmin.xlane.f32.xlu0 %v1918
        %v1920 = vpop.xlane.xlu0 %1919
        %v1921 = vcvt.f32.s32 %v1920
        %v1922 = vcvt.f32.s32 %v1916
        %v1923 = vshll.u32 %v1922, 16
        %v1924 = vadd.s32 %v1923, %v1921
        %v1925 = vsel %vm617, %v1119, 2147483647
        %v1926 = vand.u32 %v1925, 65535
        %v1927 = vshra.s32 %v1925, 16
        %v1928 = vcvt.s32.f32 %v1926
        %v1929 = vcvt.s32.f32 %v1927
        %1930 = vmin.xlane.f32.xlu0 %v1929
        %v1931 = vpop.xlane.xlu0 %1930
        %vm1932 = vcmp.eq.f32.partialorder %v1929, %v1931
        %v1933 = vsel %vm1932, %v1928, inf
        %1934 = vmin.xlane.f32.xlu0 %v1933
        %v1935 = vpop.xlane.xlu0 %1934
        %v1936 = vcvt.f32.s32 %v1935
        %v1937 = vcvt.f32.s32 %v1931
        %v1938 = vshll.u32 %v1937, 16
        %v1939 = vadd.s32 %v1938, %v1936
        %v1940 = vsel %vm617, %v1120, 2147483647
        %v1941 = vand.u32 %v1940, 65535
        %v1942 = vshra.s32 %v1940, 16
        %v1943 = vcvt.s32.f32 %v1941
        %v1944 = vcvt.s32.f32 %v1942
        %1945 = vmin.xlane.f32.xlu0 %v1944
        %v1946 = vpop.xlane.xlu0 %1945
        %vm1947 = vcmp.eq.f32.partialorder %v1944, %v1946
        %v1948 = vsel %vm1947, %v1943, inf
        %1949 = vmin.xlane.f32.xlu0 %v1948
        %v1950 = vpop.xlane.xlu0 %1949
        %v1951 = vcvt.f32.s32 %v1950
        %v1952 = vcvt.f32.s32 %v1946
        %v1953 = vshll.u32 %v1952, 16
        %v1954 = vadd.s32 %v1953, %v1951
        %v1955 = vsel %vm617, %v1121, 2147483647
        %v1956 = vand.u32 %v1955, 65535
        %v1957 = vshra.s32 %v1955, 16
        %v1958 = vcvt.s32.f32 %v1956
        %v1959 = vcvt.s32.f32 %v1957
        %1960 = vmin.xlane.f32.xlu0 %v1959
        %v1961 = vpop.xlane.xlu0 %1960
        %vm1962 = vcmp.eq.f32.partialorder %v1959, %v1961
        %v1963 = vsel %vm1962, %v1958, inf
        %1964 = vmin.xlane.f32.xlu0 %v1963
        %v1965 = vpop.xlane.xlu0 %1964
        %v1966 = vcvt.f32.s32 %v1965
        %v1967 = vcvt.f32.s32 %v1961
        %v1968 = vshll.u32 %v1967, 16
        %v1969 = vadd.s32 %v1968, %v1966
        %v1970 = vsel %vm617, %v1122, 2147483647
        %v1971 = vand.u32 %v1970, 65535
        %v1972 = vshra.s32 %v1970, 16
        %v1973 = vcvt.s32.f32 %v1971
        %v1974 = vcvt.s32.f32 %v1972
        %1975 = vmin.xlane.f32.xlu0 %v1974
        %v1976 = vpop.xlane.xlu0 %1975
        %vm1977 = vcmp.eq.f32.partialorder %v1974, %v1976
        %v1978 = vsel %vm1977, %v1973, inf
        %1979 = vmin.xlane.f32.xlu0 %v1978
        %v1980 = vpop.xlane.xlu0 %1979
        %v1981 = vcvt.f32.s32 %v1980
        %v1982 = vcvt.f32.s32 %v1976
        %v1983 = vshll.u32 %v1982, 16
        %v1984 = vadd.s32 %v1983, %v1981
        %v1985 = vsel %vm617, %v1123, 2147483647
        %v1986 = vand.u32 %v1985, 65535
        %v1987 = vshra.s32 %v1985, 16
        %v1988 = vcvt.s32.f32 %v1986
        %v1989 = vcvt.s32.f32 %v1987
        %1990 = vmin.xlane.f32.xlu0 %v1989
        %v1991 = vpop.xlane.xlu0 %1990
        %vm1992 = vcmp.eq.f32.partialorder %v1989, %v1991
        %v1993 = vsel %vm1992, %v1988, inf
        %1994 = vmin.xlane.f32.xlu0 %v1993
        %v1995 = vpop.xlane.xlu0 %1994
        %v1996 = vcvt.f32.s32 %v1995
        %v1997 = vcvt.f32.s32 %v1991
        %v1998 = vshll.u32 %v1997, 16
        %v1999 = vadd.s32 %v1998, %v1996
        %v2000 = vsel %vm617, %v1124, 2147483647
        %v2001 = vand.u32 %v2000, 65535
        %v2002 = vshra.s32 %v2000, 16
        %v2003 = vcvt.s32.f32 %v2001
        %v2004 = vcvt.s32.f32 %v2002
        %2005 = vmin.xlane.f32.xlu0 %v2004
        %v2006 = vpop.xlane.xlu0 %2005
        %vm2007 = vcmp.eq.f32.partialorder %v2004, %v2006
        %v2008 = vsel %vm2007, %v2003, inf
        %2009 = vmin.xlane.f32.xlu0 %v2008
        %v2010 = vpop.xlane.xlu0 %2009
        %v2011 = vcvt.f32.s32 %v2010
        %v2012 = vcvt.f32.s32 %v2006
        %v2013 = vshll.u32 %v2012, 16
        %v2014 = vadd.s32 %v2013, %v2011
        %v2015 = vsel %vm617, %v1125, 2147483647
        %v2016 = vand.u32 %v2015, 65535
        %v2017 = vshra.s32 %v2015, 16
        %v2018 = vcvt.s32.f32 %v2016
        %v2019 = vcvt.s32.f32 %v2017
        %2020 = vmin.xlane.f32.xlu0 %v2019
        %v2021 = vpop.xlane.xlu0 %2020
        %vm2022 = vcmp.eq.f32.partialorder %v2019, %v2021
        %v2023 = vsel %vm2022, %v2018, inf
        %2024 = vmin.xlane.f32.xlu0 %v2023
        %v2025 = vpop.xlane.xlu0 %2024
        %v2026 = vcvt.f32.s32 %v2025
        %v2027 = vcvt.f32.s32 %v2021
        %v2028 = vshll.u32 %v2027, 16
        %v2029 = vadd.s32 %v2028, %v2026
        %v2030 = vsel %vm617, %v1126, 2147483647
        %v2031 = vand.u32 %v2030, 65535
        %v2032 = vshra.s32 %v2030, 16
        %v2033 = vcvt.s32.f32 %v2031
        %v2034 = vcvt.s32.f32 %v2032
        %2035 = vmin.xlane.f32.xlu0 %v2034
        %v2036 = vpop.xlane.xlu0 %2035
        %vm2037 = vcmp.eq.f32.partialorder %v2034, %v2036
        %v2038 = vsel %vm2037, %v2033, inf
        %2039 = vmin.xlane.f32.xlu0 %v2038
        %v2040 = vpop.xlane.xlu0 %2039
        %v2041 = vcvt.f32.s32 %v2040
        %v2042 = vcvt.f32.s32 %v2036
        %v2043 = vshll.u32 %v2042, 16
        %v2044 = vadd.s32 %v2043, %v2041
        %v2045 = vsel %vm617, %v1127, 2147483647
        %v2046 = vand.u32 %v2045, 65535
        %v2047 = vshra.s32 %v2045, 16
        %v2048 = vcvt.s32.f32 %v2046
        %v2049 = vcvt.s32.f32 %v2047
        %2050 = vmin.xlane.f32.xlu0 %v2049
        %v2051 = vpop.xlane.xlu0 %2050
        %vm2052 = vcmp.eq.f32.partialorder %v2049, %v2051
        %v2053 = vsel %vm2052, %v2048, inf
        %2054 = vmin.xlane.f32.xlu0 %v2053
        %v2055 = vpop.xlane.xlu0 %2054
        %v2056 = vcvt.f32.s32 %v2055
        %v2057 = vcvt.f32.s32 %v2051
        %v2058 = vshll.u32 %v2057, 16
        %v2059 = vadd.s32 %v2058, %v2056
        %v2060 = vsel %vm617, %v1128, 2147483647
        %v2061 = vand.u32 %v2060, 65535
        %v2062 = vshra.s32 %v2060, 16
        %v2063 = vcvt.s32.f32 %v2061
        %v2064 = vcvt.s32.f32 %v2062
        %2065 = vmin.xlane.f32.xlu0 %v2064
        %v2066 = vpop.xlane.xlu0 %2065
        %vm2067 = vcmp.eq.f32.partialorder %v2064, %v2066
        %v2068 = vsel %vm2067, %v2063, inf
        %2069 = vmin.xlane.f32.xlu0 %v2068
        %v2070 = vpop.xlane.xlu0 %2069
        %v2071 = vcvt.f32.s32 %v2070
        %v2072 = vcvt.f32.s32 %v2066
        %v2073 = vshll.u32 %v2072, 16
        %v2074 = vadd.s32 %v2073, %v2071
        %v2075 = vsel %vm617, %v1129, 2147483647
        %v2076 = vand.u32 %v2075, 65535
        %v2077 = vshra.s32 %v2075, 16
        %v2078 = vcvt.s32.f32 %v2076
        %v2079 = vcvt.s32.f32 %v2077
        %2080 = vmin.xlane.f32.xlu0 %v2079
        %v2081 = vpop.xlane.xlu0 %2080
        %vm2082 = vcmp.eq.f32.partialorder %v2079, %v2081
        %v2083 = vsel %vm2082, %v2078, inf
        %2084 = vmin.xlane.f32.xlu0 %v2083
        %v2085 = vpop.xlane.xlu0 %2084
        %v2086 = vcvt.f32.s32 %v2085
        %v2087 = vcvt.f32.s32 %v2081
        %v2088 = vshll.u32 %v2087, 16
        %v2089 = vadd.s32 %v2088, %v2086
        %vm2090 = vcmp.eq.s32.totalorder %v296, %v1144
        %vm2091 = vcmp.eq.s32.totalorder %v296, %v1159
        %vm2092 = vcmp.eq.s32.totalorder %v296, %v1174
        %vm2093 = vcmp.eq.s32.totalorder %v296, %v1189
        %vm2094 = vcmp.eq.s32.totalorder %v296, %v1204
        %vm2095 = vcmp.eq.s32.totalorder %v296, %v1219
        %vm2096 = vcmp.eq.s32.totalorder %v296, %v1234
        %vm2097 = vcmp.eq.s32.totalorder %v296, %v1249
        %vm2098 = vcmp.eq.s32.totalorder %v296, %v1264
        %vm2099 = vcmp.eq.s32.totalorder %v296, %v1279
        %vm2100 = vcmp.eq.s32.totalorder %v296, %v1294
        %vm2101 = vcmp.eq.s32.totalorder %v296, %v1309
        %vm2102 = vcmp.eq.s32.totalorder %v296, %v1324
        %vm2103 = vcmp.eq.s32.totalorder %v296, %v1339
        %vm2104 = vcmp.eq.s32.totalorder %v296, %v1354
        %vm2105 = vcmp.eq.s32.totalorder %v296, %v1369
        %vm2106 = vcmp.eq.s32.totalorder %v296, %v1384
        %vm2107 = vcmp.eq.s32.totalorder %v296, %v1399
        %vm2108 = vcmp.eq.s32.totalorder %v296, %v1414
        %vm2109 = vcmp.eq.s32.totalorder %v296, %v1429
        %vm2110 = vcmp.eq.s32.totalorder %v296, %v1444
        %vm2111 = vcmp.eq.s32.totalorder %v296, %v1459
        %vm2112 = vcmp.eq.s32.totalorder %v296, %v1474
        %vm2113 = vcmp.eq.s32.totalorder %v296, %v1489
        %vm2114 = vcmp.eq.s32.totalorder %v296, %v1504
        %vm2115 = vcmp.eq.s32.totalorder %v296, %v1519
        %vm2116 = vcmp.eq.s32.totalorder %v296, %v1534
        %vm2117 = vcmp.eq.s32.totalorder %v296, %v1549
        %vm2118 = vcmp.eq.s32.totalorder %v296, %v1564
        %vm2119 = vcmp.eq.s32.totalorder %v296, %v1579
        %vm2120 = vcmp.eq.s32.totalorder %v296, %v1594
        %vm2121 = vcmp.eq.s32.totalorder %v296, %v1609
        %vm2122 = vcmp.eq.s32.totalorder %v296, %v1624
        %vm2123 = vcmp.eq.s32.totalorder %v296, %v1639
        %vm2124 = vcmp.eq.s32.totalorder %v296, %v1654
        %vm2125 = vcmp.eq.s32.totalorder %v296, %v1669
        %vm2126 = vcmp.eq.s32.totalorder %v296, %v1684
        %vm2127 = vcmp.eq.s32.totalorder %v296, %v1699
        %vm2128 = vcmp.eq.s32.totalorder %v296, %v1714
        %vm2129 = vcmp.eq.s32.totalorder %v296, %v1729
        %vm2130 = vcmp.eq.s32.totalorder %v296, %v1744
        %vm2131 = vcmp.eq.s32.totalorder %v296, %v1759
        %vm2132 = vcmp.eq.s32.totalorder %v296, %v1774
        %vm2133 = vcmp.eq.s32.totalorder %v296, %v1789
        %vm2134 = vcmp.eq.s32.totalorder %v296, %v1804
        %vm2135 = vcmp.eq.s32.totalorder %v296, %v1819
        %vm2136 = vcmp.eq.s32.totalorder %v296, %v1834
        %vm2137 = vcmp.eq.s32.totalorder %v296, %v1849
        %vm2138 = vcmp.eq.s32.totalorder %v296, %v1864
        %vm2139 = vcmp.eq.s32.totalorder %v296, %v1879
        %vm2140 = vcmp.eq.s32.totalorder %v296, %v1894
        %vm2141 = vcmp.eq.s32.totalorder %v296, %v1909
        %vm2142 = vcmp.eq.s32.totalorder %v296, %v1924
        %vm2143 = vcmp.eq.s32.totalorder %v296, %v1939
        %vm2144 = vcmp.eq.s32.totalorder %v296, %v1954
        %vm2145 = vcmp.eq.s32.totalorder %v296, %v1969
        %vm2146 = vcmp.eq.s32.totalorder %v296, %v1984
        %vm2147 = vcmp.eq.s32.totalorder %v296, %v1999
        %vm2148 = vcmp.eq.s32.totalorder %v296, %v2014
        %vm2149 = vcmp.eq.s32.totalorder %v296, %v2029
        %vm2150 = vcmp.eq.s32.totalorder %v296, %v2044
        %vm2151 = vcmp.eq.s32.totalorder %v296, %v2059
        %vm2152 = vcmp.eq.s32.totalorder %v296, %v2074
        %vm2153 = vcmp.eq.s32.totalorder %v296, %v2089
        %v2154 = vsel %vm2090, -inf, %v167
        %v2155 = vsel %vm2091, -inf, %v168
        %v2156 = vsel %vm2092, -inf, %v169
        %v2157 = vsel %vm2093, -inf, %v170
        %v2158 = vsel %vm2094, -inf, %v171
        %v2159 = vsel %vm2095, -inf, %v172
        %v2160 = vsel %vm2096, -inf, %v173
        %v2161 = vsel %vm2097, -inf, %v174
        %v2162 = vsel %vm2098, -inf, %v175
        %v2163 = vsel %vm2099, -inf, %v176
        %v2164 = vsel %vm2100, -inf, %v177
        %v2165 = vsel %vm2101, -inf, %v178
        %v2166 = vsel %vm2102, -inf, %v179
        %v2167 = vsel %vm2103, -inf, %v180
        %v2168 = vsel %vm2104, -inf, %v181
        %v2169 = vsel %vm2105, -inf, %v182
        %v2170 = vsel %vm2106, -inf, %v183
        %v2171 = vsel %vm2107, -inf, %v184
        %v2172 = vsel %vm2108, -inf, %v185
        %v2173 = vsel %vm2109, -inf, %v186
        %v2174 = vsel %vm2110, -inf, %v187
        %v2175 = vsel %vm2111, -inf, %v188
        %v2176 = vsel %vm2112, -inf, %v189
        %v2177 = vsel %vm2113, -inf, %v190
        %v2178 = vsel %vm2114, -inf, %v191
        %v2179 = vsel %vm2115, -inf, %v192
        %v2180 = vsel %vm2116, -inf, %v193
        %v2181 = vsel %vm2117, -inf, %v194
        %v2182 = vsel %vm2118, -inf, %v195
        %v2183 = vsel %vm2119, -inf, %v196
        %v2184 = vsel %vm2120, -inf, %v197
        %v2185 = vsel %vm2121, -inf, %v198
        %v2186 = vsel %vm2122, -inf, %v199
        %v2187 = vsel %vm2123, -inf, %v200
        %v2188 = vsel %vm2124, -inf, %v201
        %v2189 = vsel %vm2125, -inf, %v202
        %v2190 = vsel %vm2126, -inf, %v203
        %v2191 = vsel %vm2127, -inf, %v204
        %v2192 = vsel %vm2128, -inf, %v205
        %v2193 = vsel %vm2129, -inf, %v206
        %v2194 = vsel %vm2130, -inf, %v207
        %v2195 = vsel %vm2131, -inf, %v208
        %v2196 = vsel %vm2132, -inf, %v209
        %v2197 = vsel %vm2133, -inf, %v210
        %v2198 = vsel %vm2134, -inf, %v211
        %v2199 = vsel %vm2135, -inf, %v212
        %v2200 = vsel %vm2136, -inf, %v213
        %v2201 = vsel %vm2137, -inf, %v214
        %v2202 = vsel %vm2138, -inf, %v215
        %v2203 = vsel %vm2139, -inf, %v216
        %v2204 = vsel %vm2140, -inf, %v217
        %v2205 = vsel %vm2141, -inf, %v218
        %v2206 = vsel %vm2142, -inf, %v219
        %v2207 = vsel %vm2143, -inf, %v220
        %v2208 = vsel %vm2144, -inf, %v221
        %v2209 = vsel %vm2145, -inf, %v222
        %v2210 = vsel %vm2146, -inf, %v223
        %v2211 = vsel %vm2147, -inf, %v224
        %v2212 = vsel %vm2148, -inf, %v225
        %v2213 = vsel %vm2149, -inf, %v226
        %v2214 = vsel %vm2150, -inf, %v227
        %v2215 = vsel %vm2151, -inf, %v228
        %v2216 = vsel %vm2152, -inf, %v229
        %v2217 = vsel %vm2153, -inf, %v230
        %v2218 = vsel %vm617, %v2154, -inf
        %2219 = vmax.xlane.f32.xlu0 %v2218
        %v2220 = vpop.xlane.xlu0 %2219
        %v2221 = vsel %vm617, %v2155, -inf
        %2222 = vmax.xlane.f32.xlu0 %v2221
        %v2223 = vpop.xlane.xlu0 %2222
        %v2224 = vsel %vm617, %v2156, -inf
        %2225 = vmax.xlane.f32.xlu0 %v2224
        %v2226 = vpop.xlane.xlu0 %2225
        %v2227 = vsel %vm617, %v2157, -inf
        %2228 = vmax.xlane.f32.xlu0 %v2227
        %v2229 = vpop.xlane.xlu0 %2228
        %v2230 = vsel %vm617, %v2158, -inf
        %2231 = vmax.xlane.f32.xlu0 %v2230
        %v2232 = vpop.xlane.xlu0 %2231
        %v2233 = vsel %vm617, %v2159, -inf
        %2234 = vmax.xlane.f32.xlu0 %v2233
        %v2235 = vpop.xlane.xlu0 %2234
        %v2236 = vsel %vm617, %v2160, -inf
        %2237 = vmax.xlane.f32.xlu0 %v2236
        %v2238 = vpop.xlane.xlu0 %2237
        %v2239 = vsel %vm617, %v2161, -inf
        %2240 = vmax.xlane.f32.xlu0 %v2239
        %v2241 = vpop.xlane.xlu0 %2240
        %v2242 = vsel %vm617, %v2162, -inf
        %2243 = vmax.xlane.f32.xlu0 %v2242
        %v2244 = vpop.xlane.xlu0 %2243
        %v2245 = vsel %vm617, %v2163, -inf
        %2246 = vmax.xlane.f32.xlu0 %v2245
        %v2247 = vpop.xlane.xlu0 %2246
        %v2248 = vsel %vm617, %v2164, -inf
        %2249 = vmax.xlane.f32.xlu0 %v2248
        %v2250 = vpop.xlane.xlu0 %2249
        %v2251 = vsel %vm617, %v2165, -inf
        %2252 = vmax.xlane.f32.xlu0 %v2251
        %v2253 = vpop.xlane.xlu0 %2252
        %v2254 = vsel %vm617, %v2166, -inf
        %2255 = vmax.xlane.f32.xlu0 %v2254
        %v2256 = vpop.xlane.xlu0 %2255
        %v2257 = vsel %vm617, %v2167, -inf
        %2258 = vmax.xlane.f32.xlu0 %v2257
        %v2259 = vpop.xlane.xlu0 %2258
        %v2260 = vsel %vm617, %v2168, -inf
        %2261 = vmax.xlane.f32.xlu0 %v2260
        %v2262 = vpop.xlane.xlu0 %2261
        %v2263 = vsel %vm617, %v2169, -inf
        %2264 = vmax.xlane.f32.xlu0 %v2263
        %v2265 = vpop.xlane.xlu0 %2264
        %v2266 = vsel %vm617, %v2170, -inf
        %2267 = vmax.xlane.f32.xlu0 %v2266
        %v2268 = vpop.xlane.xlu0 %2267
        %v2269 = vsel %vm617, %v2171, -inf
        %2270 = vmax.xlane.f32.xlu0 %v2269
        %v2271 = vpop.xlane.xlu0 %2270
        %v2272 = vsel %vm617, %v2172, -inf
        %2273 = vmax.xlane.f32.xlu0 %v2272
        %v2274 = vpop.xlane.xlu0 %2273
        %v2275 = vsel %vm617, %v2173, -inf
        %2276 = vmax.xlane.f32.xlu0 %v2275
        %v2277 = vpop.xlane.xlu0 %2276
        %v2278 = vsel %vm617, %v2174, -inf
        %2279 = vmax.xlane.f32.xlu0 %v2278
        %v2280 = vpop.xlane.xlu0 %2279
        %v2281 = vsel %vm617, %v2175, -inf
        %2282 = vmax.xlane.f32.xlu0 %v2281
        %v2283 = vpop.xlane.xlu0 %2282
        %v2284 = vsel %vm617, %v2176, -inf
        %2285 = vmax.xlane.f32.xlu0 %v2284
        %v2286 = vpop.xlane.xlu0 %2285
        %v2287 = vsel %vm617, %v2177, -inf
        %2288 = vmax.xlane.f32.xlu0 %v2287
        %v2289 = vpop.xlane.xlu0 %2288
        %v2290 = vsel %vm617, %v2178, -inf
        %2291 = vmax.xlane.f32.xlu0 %v2290
        %v2292 = vpop.xlane.xlu0 %2291
        %v2293 = vsel %vm617, %v2179, -inf
        %2294 = vmax.xlane.f32.xlu0 %v2293
        %v2295 = vpop.xlane.xlu0 %2294
        %v2296 = vsel %vm617, %v2180, -inf
        %2297 = vmax.xlane.f32.xlu0 %v2296
        %v2298 = vpop.xlane.xlu0 %2297
        %v2299 = vsel %vm617, %v2181, -inf
        %2300 = vmax.xlane.f32.xlu0 %v2299
        %v2301 = vpop.xlane.xlu0 %2300
        %v2302 = vsel %vm617, %v2182, -inf
        %2303 = vmax.xlane.f32.xlu0 %v2302
        %v2304 = vpop.xlane.xlu0 %2303
        %v2305 = vsel %vm617, %v2183, -inf
        %2306 = vmax.xlane.f32.xlu0 %v2305
        %v2307 = vpop.xlane.xlu0 %2306
        %v2308 = vsel %vm617, %v2184, -inf
        %2309 = vmax.xlane.f32.xlu0 %v2308
        %v2310 = vpop.xlane.xlu0 %2309
        %v2311 = vsel %vm617, %v2185, -inf
        %2312 = vmax.xlane.f32.xlu0 %v2311
        %v2313 = vpop.xlane.xlu0 %2312
        %v2314 = vsel %vm617, %v2186, -inf
        %2315 = vmax.xlane.f32.xlu0 %v2314
        %v2316 = vpop.xlane.xlu0 %2315
        %v2317 = vsel %vm617, %v2187, -inf
        %2318 = vmax.xlane.f32.xlu0 %v2317
        %v2319 = vpop.xlane.xlu0 %2318
        %v2320 = vsel %vm617, %v2188, -inf
        %2321 = vmax.xlane.f32.xlu0 %v2320
        %v2322 = vpop.xlane.xlu0 %2321
        %v2323 = vsel %vm617, %v2189, -inf
        %2324 = vmax.xlane.f32.xlu0 %v2323
        %v2325 = vpop.xlane.xlu0 %2324
        %v2326 = vsel %vm617, %v2190, -inf
        %2327 = vmax.xlane.f32.xlu0 %v2326
        %v2328 = vpop.xlane.xlu0 %2327
        %v2329 = vsel %vm617, %v2191, -inf
        %2330 = vmax.xlane.f32.xlu0 %v2329
        %v2331 = vpop.xlane.xlu0 %2330
        %v2332 = vsel %vm617, %v2192, -inf
        %2333 = vmax.xlane.f32.xlu0 %v2332
        %v2334 = vpop.xlane.xlu0 %2333
        %v2335 = vsel %vm617, %v2193, -inf
        %2336 = vmax.xlane.f32.xlu0 %v2335
        %v2337 = vpop.xlane.xlu0 %2336
        %v2338 = vsel %vm617, %v2194, -inf
        %2339 = vmax.xlane.f32.xlu0 %v2338
        %v2340 = vpop.xlane.xlu0 %2339
        %v2341 = vsel %vm617, %v2195, -inf
        %2342 = vmax.xlane.f32.xlu0 %v2341
        %v2343 = vpop.xlane.xlu0 %2342
        %v2344 = vsel %vm617, %v2196, -inf
        %2345 = vmax.xlane.f32.xlu0 %v2344
        %v2346 = vpop.xlane.xlu0 %2345
        %v2347 = vsel %vm617, %v2197, -inf
        %2348 = vmax.xlane.f32.xlu0 %v2347
        %v2349 = vpop.xlane.xlu0 %2348
        %v2350 = vsel %vm617, %v2198, -inf
        %2351 = vmax.xlane.f32.xlu0 %v2350
        %v2352 = vpop.xlane.xlu0 %2351
        %v2353 = vsel %vm617, %v2199, -inf
        %2354 = vmax.xlane.f32.xlu0 %v2353
        %v2355 = vpop.xlane.xlu0 %2354
        %v2356 = vsel %vm617, %v2200, -inf
        %2357 = vmax.xlane.f32.xlu0 %v2356
        %v2358 = vpop.xlane.xlu0 %2357
        %v2359 = vsel %vm617, %v2201, -inf
        %2360 = vmax.xlane.f32.xlu0 %v2359
        %v2361 = vpop.xlane.xlu0 %2360
        %v2362 = vsel %vm617, %v2202, -inf
        %2363 = vmax.xlane.f32.xlu0 %v2362
        %v2364 = vpop.xlane.xlu0 %2363
        %v2365 = vsel %vm617, %v2203, -inf
        %2366 = vmax.xlane.f32.xlu0 %v2365
        %v2367 = vpop.xlane.xlu0 %2366
        %v2368 = vsel %vm617, %v2204, -inf
        %2369 = vmax.xlane.f32.xlu0 %v2368
        %v2370 = vpop.xlane.xlu0 %2369
        %v2371 = vsel %vm617, %v2205, -inf
        %2372 = vmax.xlane.f32.xlu0 %v2371
        %v2373 = vpop.xlane.xlu0 %2372
        %v2374 = vsel %vm617, %v2206, -inf
        %2375 = vmax.xlane.f32.xlu0 %v2374
        %v2376 = vpop.xlane.xlu0 %2375
        %v2377 = vsel %vm617, %v2207, -inf
        %2378 = vmax.xlane.f32.xlu0 %v2377
        %v2379 = vpop.xlane.xlu0 %2378
        %v2380 = vsel %vm617, %v2208, -inf
        %2381 = vmax.xlane.f32.xlu0 %v2380
        %v2382 = vpop.xlane.xlu0 %2381
        %v2383 = vsel %vm617, %v2209, -inf
        %2384 = vmax.xlane.f32.xlu0 %v2383
        %v2385 = vpop.xlane.xlu0 %2384
        %v2386 = vsel %vm617, %v2210, -inf
        %2387 = vmax.xlane.f32.xlu0 %v2386
        %v2388 = vpop.xlane.xlu0 %2387
        %v2389 = vsel %vm617, %v2211, -inf
        %2390 = vmax.xlane.f32.xlu0 %v2389
        %v2391 = vpop.xlane.xlu0 %2390
        %v2392 = vsel %vm617, %v2212, -inf
        %2393 = vmax.xlane.f32.xlu0 %v2392
        %v2394 = vpop.xlane.xlu0 %2393
        %v2395 = vsel %vm617, %v2213, -inf
        %2396 = vmax.xlane.f32.xlu0 %v2395
        %v2397 = vpop.xlane.xlu0 %2396
        %v2398 = vsel %vm617, %v2214, -inf
        %2399 = vmax.xlane.f32.xlu0 %v2398
        %v2400 = vpop.xlane.xlu0 %2399
        %v2401 = vsel %vm617, %v2215, -inf
        %2402 = vmax.xlane.f32.xlu0 %v2401
        %v2403 = vpop.xlane.xlu0 %2402
        %v2404 = vsel %vm617, %v2216, -inf
        %2405 = vmax.xlane.f32.xlu0 %v2404
        %v2406 = vpop.xlane.xlu0 %2405
        %v2407 = vsel %vm617, %v2217, -inf
        %2408 = vmax.xlane.f32.xlu0 %v2407
        %v2409 = vpop.xlane.xlu0 %2408
        %vm2410 = vcmp.eq.s32.totalorder %v1144, %v231
        %vm2411 = vcmp.eq.s32.totalorder %v1159, %v232
        %vm2412 = vcmp.eq.s32.totalorder %v1174, %v233
        %vm2413 = vcmp.eq.s32.totalorder %v1189, %v234
        %vm2414 = vcmp.eq.s32.totalorder %v1204, %v235
        %vm2415 = vcmp.eq.s32.totalorder %v1219, %v236
        %vm2416 = vcmp.eq.s32.totalorder %v1234, %v237
        %vm2417 = vcmp.eq.s32.totalorder %v1249, %v238
        %vm2418 = vcmp.eq.s32.totalorder %v1264, %v239
        %vm2419 = vcmp.eq.s32.totalorder %v1279, %v240
        %vm2420 = vcmp.eq.s32.totalorder %v1294, %v241
        %vm2421 = vcmp.eq.s32.totalorder %v1309, %v242
        %vm2422 = vcmp.eq.s32.totalorder %v1324, %v243
        %vm2423 = vcmp.eq.s32.totalorder %v1339, %v244
        %vm2424 = vcmp.eq.s32.totalorder %v1354, %v245
        %vm2425 = vcmp.eq.s32.totalorder %v1369, %v246
        %vm2426 = vcmp.eq.s32.totalorder %v1384, %v247
        %vm2427 = vcmp.eq.s32.totalorder %v1399, %v248
        %vm2428 = vcmp.eq.s32.totalorder %v1414, %v249
        %vm2429 = vcmp.eq.s32.totalorder %v1429, %v250
        %vm2430 = vcmp.eq.s32.totalorder %v1444, %v251
        %vm2431 = vcmp.eq.s32.totalorder %v1459, %v252
        %vm2432 = vcmp.eq.s32.totalorder %v1474, %v253
        %vm2433 = vcmp.eq.s32.totalorder %v1489, %v254
        %vm2434 = vcmp.eq.s32.totalorder %v1504, %v255
        %vm2435 = vcmp.eq.s32.totalorder %v1519, %v256
        %vm2436 = vcmp.eq.s32.totalorder %v1534, %v257
        %vm2437 = vcmp.eq.s32.totalorder %v1549, %v258
        %vm2438 = vcmp.eq.s32.totalorder %v1564, %v259
        %vm2439 = vcmp.eq.s32.totalorder %v1579, %v260
        %vm2440 = vcmp.eq.s32.totalorder %v1594, %v261
        %vm2441 = vcmp.eq.s32.totalorder %v1609, %v262
        %vm2442 = vcmp.eq.s32.totalorder %v1624, %v263
        %vm2443 = vcmp.eq.s32.totalorder %v1639, %v264
        %vm2444 = vcmp.eq.s32.totalorder %v1654, %v265
        %vm2445 = vcmp.eq.s32.totalorder %v1669, %v266
        %vm2446 = vcmp.eq.s32.totalorder %v1684, %v267
        %vm2447 = vcmp.eq.s32.totalorder %v1699, %v268
        %vm2448 = vcmp.eq.s32.totalorder %v1714, %v269
        %vm2449 = vcmp.eq.s32.totalorder %v1729, %v270
        %vm2450 = vcmp.eq.s32.totalorder %v1744, %v271
        %vm2451 = vcmp.eq.s32.totalorder %v1759, %v272
        %vm2452 = vcmp.eq.s32.totalorder %v1774, %v273
        %vm2453 = vcmp.eq.s32.totalorder %v1789, %v274
        %vm2454 = vcmp.eq.s32.totalorder %v1804, %v275
        %vm2455 = vcmp.eq.s32.totalorder %v1819, %v276
        %vm2456 = vcmp.eq.s32.totalorder %v1834, %v277
        %vm2457 = vcmp.eq.s32.totalorder %v1849, %v278
        %vm2458 = vcmp.eq.s32.totalorder %v1864, %v279
        %vm2459 = vcmp.eq.s32.totalorder %v1879, %v280
        %vm2460 = vcmp.eq.s32.totalorder %v1894, %v281
        %vm2461 = vcmp.eq.s32.totalorder %v1909, %v282
        %vm2462 = vcmp.eq.s32.totalorder %v1924, %v283
        %vm2463 = vcmp.eq.s32.totalorder %v1939, %v284
        %vm2464 = vcmp.eq.s32.totalorder %v1954, %v285
        %vm2465 = vcmp.eq.s32.totalorder %v1969, %v286
        %vm2466 = vcmp.eq.s32.totalorder %v1984, %v287
        %vm2467 = vcmp.eq.s32.totalorder %v1999, %v288
        %vm2468 = vcmp.eq.s32.totalorder %v2014, %v289
        %vm2469 = vcmp.eq.s32.totalorder %v2029, %v290
        %vm2470 = vcmp.eq.s32.totalorder %v2044, %v291
        %vm2471 = vcmp.eq.s32.totalorder %v2059, %v292
        %vm2472 = vcmp.eq.s32.totalorder %v2074, %v293
        %vm2473 = vcmp.eq.s32.totalorder %v2089, %v294
        %v2474 = vsel %vm2410, %v2220, %v812
        %v2475 = vsel %vm2411, %v2223, %v815
        %v2476 = vsel %vm2412, %v2226, %v818
        %v2477 = vsel %vm2413, %v2229, %v821
        %v2478 = vsel %vm2414, %v2232, %v824
        %v2479 = vsel %vm2415, %v2235, %v827
        %v2480 = vsel %vm2416, %v2238, %v830
        %v2481 = vsel %vm2417, %v2241, %v833
        %v2482 = vsel %vm2418, %v2244, %v836
        %v2483 = vsel %vm2419, %v2247, %v839
        %v2484 = vsel %vm2420, %v2250, %v842
        %v2485 = vsel %vm2421, %v2253, %v845
        %v2486 = vsel %vm2422, %v2256, %v848
        %v2487 = vsel %vm2423, %v2259, %v851
        %v2488 = vsel %vm2424, %v2262, %v854
        %v2489 = vsel %vm2425, %v2265, %v857
        %v2490 = vsel %vm2426, %v2268, %v860
        %v2491 = vsel %vm2427, %v2271, %v863
        %v2492 = vsel %vm2428, %v2274, %v866
        %v2493 = vsel %vm2429, %v2277, %v869
        %v2494 = vsel %vm2430, %v2280, %v872
        %v2495 = vsel %vm2431, %v2283, %v875
        %v2496 = vsel %vm2432, %v2286, %v878
        %v2497 = vsel %vm2433, %v2289, %v881
        %v2498 = vsel %vm2434, %v2292, %v884
        %v2499 = vsel %vm2435, %v2295, %v887
        %v2500 = vsel %vm2436, %v2298, %v890
        %v2501 = vsel %vm2437, %v2301, %v893
        %v2502 = vsel %vm2438, %v2304, %v896
        %v2503 = vsel %vm2439, %v2307, %v899
        %v2504 = vsel %vm2440, %v2310, %v902
        %v2505 = vsel %vm2441, %v2313, %v905
        %v2506 = vsel %vm2442, %v2316, %v908
        %v2507 = vsel %vm2443, %v2319, %v911
        %v2508 = vsel %vm2444, %v2322, %v914
        %v2509 = vsel %vm2445, %v2325, %v917
        %v2510 = vsel %vm2446, %v2328, %v920
        %v2511 = vsel %vm2447, %v2331, %v923
        %v2512 = vsel %vm2448, %v2334, %v926
        %v2513 = vsel %vm2449, %v2337, %v929
        %v2514 = vsel %vm2450, %v2340, %v932
        %v2515 = vsel %vm2451, %v2343, %v935
        %v2516 = vsel %vm2452, %v2346, %v938
        %v2517 = vsel %vm2453, %v2349, %v941
        %v2518 = vsel %vm2454, %v2352, %v944
        %v2519 = vsel %vm2455, %v2355, %v947
        %v2520 = vsel %vm2456, %v2358, %v950
        %v2521 = vsel %vm2457, %v2361, %v953
        %v2522 = vsel %vm2458, %v2364, %v956
        %v2523 = vsel %vm2459, %v2367, %v959
        %v2524 = vsel %vm2460, %v2370, %v962
        %v2525 = vsel %vm2461, %v2373, %v965
        %v2526 = vsel %vm2462, %v2376, %v968
        %v2527 = vsel %vm2463, %v2379, %v971
        %v2528 = vsel %vm2464, %v2382, %v974
        %v2529 = vsel %vm2465, %v2385, %v977
        %v2530 = vsel %vm2466, %v2388, %v980
        %v2531 = vsel %vm2467, %v2391, %v983
        %v2532 = vsel %vm2468, %v2394, %v986
        %v2533 = vsel %vm2469, %v2397, %v989
        %v2534 = vsel %vm2470, %v2400, %v992
        %v2535 = vsel %vm2471, %v2403, %v995
        %v2536 = vsel %vm2472, %v2406, %v998
        %v2537 = vsel %vm2473, %v2409, %v1001
        %v2538 = vsub.f32 %v620, %v2474
        %v2539 = vsub.f32 %v623, %v2475
        %v2540 = vsub.f32 %v626, %v2476
        %v2541 = vsub.f32 %v629, %v2477
        %v2542 = vsub.f32 %v632, %v2478
        %v2543 = vsub.f32 %v635, %v2479
        %v2544 = vsub.f32 %v638, %v2480
        %v2545 = vsub.f32 %v641, %v2481
        %v2546 = vsub.f32 %v644, %v2482
        %v2547 = vsub.f32 %v647, %v2483
        %v2548 = vsub.f32 %v650, %v2484
        %v2549 = vsub.f32 %v653, %v2485
        %v2550 = vsub.f32 %v656, %v2486
        %v2551 = vsub.f32 %v659, %v2487
        %v2552 = vsub.f32 %v662, %v2488
        %v2553 = vsub.f32 %v665, %v2489
        %v2554 = vsub.f32 %v668, %v2490
        %v2555 = vsub.f32 %v671, %v2491
        %v2556 = vsub.f32 %v674, %v2492
        %v2557 = vsub.f32 %v677, %v2493
        %v2558 = vsub.f32 %v680, %v2494
        %v2559 = vsub.f32 %v683, %v2495
        %v2560 = vsub.f32 %v686, %v2496
        %v2561 = vsub.f32 %v689, %v2497
        %v2562 = vsub.f32 %v692, %v2498
        %v2563 = vsub.f32 %v695, %v2499
        %v2564 = vsub.f32 %v698, %v2500
        %v2565 = vsub.f32 %v701, %v2501
        %v2566 = vsub.f32 %v704, %v2502
        %v2567 = vsub.f32 %v707, %v2503
        %v2568 = vsub.f32 %v710, %v2504
        %v2569 = vsub.f32 %v713, %v2505
        %v2570 = vsub.f32 %v716, %v2506
        %v2571 = vsub.f32 %v719, %v2507
        %v2572 = vsub.f32 %v722, %v2508
        %v2573 = vsub.f32 %v725, %v2509
        %v2574 = vsub.f32 %v728, %v2510
        %v2575 = vsub.f32 %v731, %v2511
        %v2576 = vsub.f32 %v734, %v2512
        %v2577 = vsub.f32 %v737, %v2513
        %v2578 = vsub.f32 %v740, %v2514
        %v2579 = vsub.f32 %v743, %v2515
        %v2580 = vsub.f32 %v746, %v2516
        %v2581 = vsub.f32 %v749, %v2517
        %v2582 = vsub.f32 %v752, %v2518
        %v2583 = vsub.f32 %v755, %v2519
        %v2584 = vsub.f32 %v758, %v2520
        %v2585 = vsub.f32 %v761, %v2521
        %v2586 = vsub.f32 %v764, %v2522
        %v2587 = vsub.f32 %v767, %v2523
        %v2588 = vsub.f32 %v770, %v2524
        %v2589 = vsub.f32 %v773, %v2525
        %v2590 = vsub.f32 %v776, %v2526
        %v2591 = vsub.f32 %v779, %v2527
        %v2592 = vsub.f32 %v782, %v2528
        %v2593 = vsub.f32 %v785, %v2529
        %v2594 = vsub.f32 %v788, %v2530
        %v2595 = vsub.f32 %v791, %v2531
        %v2596 = vsub.f32 %v794, %v2532
        %v2597 = vsub.f32 %v797, %v2533
        %v2598 = vsub.f32 %v800, %v2534
        %v2599 = vsub.f32 %v803, %v2535
        %v2600 = vsub.f32 %v806, %v2536
        %v2601 = vsub.f32 %v809, %v2537
        %vm2602 = vcmp.eq.f32.partialorder %v167, %v2220
        %vm2603 = vcmp.eq.f32.partialorder %v168, %v2223
        %vm2604 = vcmp.eq.f32.partialorder %v169, %v2226
        %vm2605 = vcmp.eq.f32.partialorder %v170, %v2229
        %vm2606 = vcmp.eq.f32.partialorder %v171, %v2232
        %vm2607 = vcmp.eq.f32.partialorder %v172, %v2235
        %vm2608 = vcmp.eq.f32.partialorder %v173, %v2238
        %vm2609 = vcmp.eq.f32.partialorder %v174, %v2241
        %vm2610 = vcmp.eq.f32.partialorder %v175, %v2244
        %vm2611 = vcmp.eq.f32.partialorder %v176, %v2247
        %vm2612 = vcmp.eq.f32.partialorder %v177, %v2250
        %vm2613 = vcmp.eq.f32.partialorder %v178, %v2253
        %vm2614 = vcmp.eq.f32.partialorder %v179, %v2256
        %vm2615 = vcmp.eq.f32.partialorder %v180, %v2259
        %vm2616 = vcmp.eq.f32.partialorder %v181, %v2262
        %vm2617 = vcmp.eq.f32.partialorder %v182, %v2265
        %vm2618 = vcmp.eq.f32.partialorder %v183, %v2268
        %vm2619 = vcmp.eq.f32.partialorder %v184, %v2271
        %vm2620 = vcmp.eq.f32.partialorder %v185, %v2274
        %vm2621 = vcmp.eq.f32.partialorder %v186, %v2277
        %vm2622 = vcmp.eq.f32.partialorder %v187, %v2280
        %vm2623 = vcmp.eq.f32.partialorder %v188, %v2283
        %vm2624 = vcmp.eq.f32.partialorder %v189, %v2286
        %vm2625 = vcmp.eq.f32.partialorder %v190, %v2289
        %vm2626 = vcmp.eq.f32.partialorder %v191, %v2292
        %vm2627 = vcmp.eq.f32.partialorder %v192, %v2295
        %vm2628 = vcmp.eq.f32.partialorder %v193, %v2298
        %vm2629 = vcmp.eq.f32.partialorder %v194, %v2301
        %vm2630 = vcmp.eq.f32.partialorder %v195, %v2304
        %vm2631 = vcmp.eq.f32.partialorder %v196, %v2307
        %vm2632 = vcmp.eq.f32.partialorder %v197, %v2310
        %vm2633 = vcmp.eq.f32.partialorder %v198, %v2313
        %vm2634 = vcmp.eq.f32.partialorder %v199, %v2316
        %vm2635 = vcmp.eq.f32.partialorder %v200, %v2319
        %vm2636 = vcmp.eq.f32.partialorder %v201, %v2322
        %vm2637 = vcmp.eq.f32.partialorder %v202, %v2325
        %vm2638 = vcmp.eq.f32.partialorder %v203, %v2328
        %vm2639 = vcmp.eq.f32.partialorder %v204, %v2331
        %vm2640 = vcmp.eq.f32.partialorder %v205, %v2334
        %vm2641 = vcmp.eq.f32.partialorder %v206, %v2337
        %vm2642 = vcmp.eq.f32.partialorder %v207, %v2340
        %vm2643 = vcmp.eq.f32.partialorder %v208, %v2343
        %vm2644 = vcmp.eq.f32.partialorder %v209, %v2346
        %vm2645 = vcmp.eq.f32.partialorder %v210, %v2349
        %vm2646 = vcmp.eq.f32.partialorder %v211, %v2352
        %vm2647 = vcmp.eq.f32.partialorder %v212, %v2355
        %vm2648 = vcmp.eq.f32.partialorder %v213, %v2358
        %vm2649 = vcmp.eq.f32.partialorder %v214, %v2361
        %vm2650 = vcmp.eq.f32.partialorder %v215, %v2364
        %vm2651 = vcmp.eq.f32.partialorder %v216, %v2367
        %vm2652 = vcmp.eq.f32.partialorder %v217, %v2370
        %vm2653 = vcmp.eq.f32.partialorder %v218, %v2373
        %vm2654 = vcmp.eq.f32.partialorder %v219, %v2376
        %vm2655 = vcmp.eq.f32.partialorder %v220, %v2379
        %vm2656 = vcmp.eq.f32.partialorder %v221, %v2382
        %vm2657 = vcmp.eq.f32.partialorder %v222, %v2385
        %vm2658 = vcmp.eq.f32.partialorder %v223, %v2388
        %vm2659 = vcmp.eq.f32.partialorder %v224, %v2391
        %vm2660 = vcmp.eq.f32.partialorder %v225, %v2394
        %vm2661 = vcmp.eq.f32.partialorder %v226, %v2397
        %vm2662 = vcmp.eq.f32.partialorder %v227, %v2400
        %vm2663 = vcmp.eq.f32.partialorder %v228, %v2403
        %vm2664 = vcmp.eq.f32.partialorder %v229, %v2406
        %vm2665 = vcmp.eq.f32.partialorder %v230, %v2409
        %vm2666 = vmxor %vm2090, 1
        %vm2667 = vmxor %vm2091, 1
        %vm2668 = vmxor %vm2092, 1
        %vm2669 = vmxor %vm2093, 1
        %vm2670 = vmxor %vm2094, 1
        %vm2671 = vmxor %vm2095, 1
        %vm2672 = vmxor %vm2096, 1
        %vm2673 = vmxor %vm2097, 1
        %vm2674 = vmxor %vm2098, 1
        %vm2675 = vmxor %vm2099, 1
        %vm2676 = vmxor %vm2100, 1
        %vm2677 = vmxor %vm2101, 1
        %vm2678 = vmxor %vm2102, 1
        %vm2679 = vmxor %vm2103, 1
        %vm2680 = vmxor %vm2104, 1
        %vm2681 = vmxor %vm2105, 1
        %vm2682 = vmxor %vm2106, 1
        %vm2683 = vmxor %vm2107, 1
        %vm2684 = vmxor %vm2108, 1
        %vm2685 = vmxor %vm2109, 1
        %vm2686 = vmxor %vm2110, 1
        %vm2687 = vmxor %vm2111, 1
        %vm2688 = vmxor %vm2112, 1
        %vm2689 = vmxor %vm2113, 1
        %vm2690 = vmxor %vm2114, 1
        %vm2691 = vmxor %vm2115, 1
        %vm2692 = vmxor %vm2116, 1
        %vm2693 = vmxor %vm2117, 1
        %vm2694 = vmxor %vm2118, 1
        %vm2695 = vmxor %vm2119, 1
        %vm2696 = vmxor %vm2120, 1
        %vm2697 = vmxor %vm2121, 1
        %vm2698 = vmxor %vm2122, 1
        %vm2699 = vmxor %vm2123, 1
        %vm2700 = vmxor %vm2124, 1
        %vm2701 = vmxor %vm2125, 1
        %vm2702 = vmxor %vm2126, 1
        %vm2703 = vmxor %vm2127, 1
        %vm2704 = vmxor %vm2128, 1
        %vm2705 = vmxor %vm2129, 1
        %vm2706 = vmxor %vm2130, 1
        %vm2707 = vmxor %vm2131, 1
        %vm2708 = vmxor %vm2132, 1
        %vm2709 = vmxor %vm2133, 1
        %vm2710 = vmxor %vm2134, 1
        %vm2711 = vmxor %vm2135, 1
        %vm2712 = vmxor %vm2136, 1
        %vm2713 = vmxor %vm2137, 1
        %vm2714 = vmxor %vm2138, 1
        %vm2715 = vmxor %vm2139, 1
        %vm2716 = vmxor %vm2140, 1
        %vm2717 = vmxor %vm2141, 1
        %vm2718 = vmxor %vm2142, 1
        %vm2719 = vmxor %vm2143, 1
        %vm2720 = vmxor %vm2144, 1
        %vm2721 = vmxor %vm2145, 1
        %vm2722 = vmxor %vm2146, 1
        %vm2723 = vmxor %vm2147, 1
        %vm2724 = vmxor %vm2148, 1
        %vm2725 = vmxor %vm2149, 1
        %vm2726 = vmxor %vm2150, 1
        %vm2727 = vmxor %vm2151, 1
        %vm2728 = vmxor %vm2152, 1
        %vm2729 = vmxor %vm2153, 1
        %vm2730 = vmand %vm2602, %vm2666
        %vm2731 = vmand %vm2603, %vm2667
        %vm2732 = vmand %vm2604, %vm2668
        %vm2733 = vmand %vm2605, %vm2669
        %vm2734 = vmand %vm2606, %vm2670
        %vm2735 = vmand %vm2607, %vm2671
        %vm2736 = vmand %vm2608, %vm2672
        %vm2737 = vmand %vm2609, %vm2673
        %vm2738 = vmand %vm2610, %vm2674
        %vm2739 = vmand %vm2611, %vm2675
        %vm2740 = vmand %vm2612, %vm2676
        %vm2741 = vmand %vm2613, %vm2677
        %vm2742 = vmand %vm2614, %vm2678
        %vm2743 = vmand %vm2615, %vm2679
        %vm2744 = vmand %vm2616, %vm2680
        %vm2745 = vmand %vm2617, %vm2681
        %vm2746 = vmand %vm2618, %vm2682
        %vm2747 = vmand %vm2619, %vm2683
        %vm2748 = vmand %vm2620, %vm2684
        %vm2749 = vmand %vm2621, %vm2685
        %vm2750 = vmand %vm2622, %vm2686
        %vm2751 = vmand %vm2623, %vm2687
        %vm2752 = vmand %vm2624, %vm2688
        %vm2753 = vmand %vm2625, %vm2689
        %vm2754 = vmand %vm2626, %vm2690
        %vm2755 = vmand %vm2627, %vm2691
        %vm2756 = vmand %vm2628, %vm2692
        %vm2757 = vmand %vm2629, %vm2693
        %vm2758 = vmand %vm2630, %vm2694
        %vm2759 = vmand %vm2631, %vm2695
        %vm2760 = vmand %vm2632, %vm2696
        %vm2761 = vmand %vm2633, %vm2697
        %vm2762 = vmand %vm2634, %vm2698
        %vm2763 = vmand %vm2635, %vm2699
        %vm2764 = vmand %vm2636, %vm2700
        %vm2765 = vmand %vm2637, %vm2701
        %vm2766 = vmand %vm2638, %vm2702
        %vm2767 = vmand %vm2639, %vm2703
        %vm2768 = vmand %vm2640, %vm2704
        %vm2769 = vmand %vm2641, %vm2705
        %vm2770 = vmand %vm2642, %vm2706
        %vm2771 = vmand %vm2643, %vm2707
        %vm2772 = vmand %vm2644, %vm2708
        %vm2773 = vmand %vm2645, %vm2709
        %vm2774 = vmand %vm2646, %vm2710
        %vm2775 = vmand %vm2647, %vm2711
        %vm2776 = vmand %vm2648, %vm2712
        %vm2777 = vmand %vm2649, %vm2713
        %vm2778 = vmand %vm2650, %vm2714
        %vm2779 = vmand %vm2651, %vm2715
        %vm2780 = vmand %vm2652, %vm2716
        %vm2781 = vmand %vm2653, %vm2717
        %vm2782 = vmand %vm2654, %vm2718
        %vm2783 = vmand %vm2655, %vm2719
        %vm2784 = vmand %vm2656, %vm2720
        %vm2785 = vmand %vm2657, %vm2721
        %vm2786 = vmand %vm2658, %vm2722
        %vm2787 = vmand %vm2659, %vm2723
        %vm2788 = vmand %vm2660, %vm2724
        %vm2789 = vmand %vm2661, %vm2725
        %vm2790 = vmand %vm2662, %vm2726
        %vm2791 = vmand %vm2663, %vm2727
        %vm2792 = vmand %vm2664, %vm2728
        %vm2793 = vmand %vm2665, %vm2729
        %v2794 = vsel %vm2730, %v296, 10
        %v2795 = vsel %vm2731, %v296, 10
        %v2796 = vsel %vm2732, %v296, 10
        %v2797 = vsel %vm2733, %v296, 10
        %v2798 = vsel %vm2734, %v296, 10
        %v2799 = vsel %vm2735, %v296, 10
        %v2800 = vsel %vm2736, %v296, 10
        %v2801 = vsel %vm2737, %v296, 10
        %v2802 = vsel %vm2738, %v296, 10
        %v2803 = vsel %vm2739, %v296, 10
        %v2804 = vsel %vm2740, %v296, 10
        %v2805 = vsel %vm2741, %v296, 10
        %v2806 = vsel %vm2742, %v296, 10
        %v2807 = vsel %vm2743, %v296, 10
        %v2808 = vsel %vm2744, %v296, 10
        %v2809 = vsel %vm2745, %v296, 10
        %v2810 = vsel %vm2746, %v296, 10
        %v2811 = vsel %vm2747, %v296, 10
        %v2812 = vsel %vm2748, %v296, 10
        %v2813 = vsel %vm2749, %v296, 10
        %v2814 = vsel %vm2750, %v296, 10
        %v2815 = vsel %vm2751, %v296, 10
        %v2816 = vsel %vm2752, %v296, 10
        %v2817 = vsel %vm2753, %v296, 10
        %v2818 = vsel %vm2754, %v296, 10
        %v2819 = vsel %vm2755, %v296, 10
        %v2820 = vsel %vm2756, %v296, 10
        %v2821 = vsel %vm2757, %v296, 10
        %v2822 = vsel %vm2758, %v296, 10
        %v2823 = vsel %vm2759, %v296, 10
        %v2824 = vsel %vm2760, %v296, 10
        %v2825 = vsel %vm2761, %v296, 10
        %v2826 = vsel %vm2762, %v296, 10
        %v2827 = vsel %vm2763, %v296, 10
        %v2828 = vsel %vm2764, %v296, 10
        %v2829 = vsel %vm2765, %v296, 10
        %v2830 = vsel %vm2766, %v296, 10
        %v2831 = vsel %vm2767, %v296, 10
        %v2832 = vsel %vm2768, %v296, 10
        %v2833 = vsel %vm2769, %v296, 10
        %v2834 = vsel %vm2770, %v296, 10
        %v2835 = vsel %vm2771, %v296, 10
        %v2836 = vsel %vm2772, %v296, 10
        %v2837 = vsel %vm2773, %v296, 10
        %v2838 = vsel %vm2774, %v296, 10
        %v2839 = vsel %vm2775, %v296, 10
        %v2840 = vsel %vm2776, %v296, 10
        %v2841 = vsel %vm2777, %v296, 10
        %v2842 = vsel %vm2778, %v296, 10
        %v2843 = vsel %vm2779, %v296, 10
        %v2844 = vsel %vm2780, %v296, 10
        %v2845 = vsel %vm2781, %v296, 10
        %v2846 = vsel %vm2782, %v296, 10
        %v2847 = vsel %vm2783, %v296, 10
        %v2848 = vsel %vm2784, %v296, 10
        %v2849 = vsel %vm2785, %v296, 10
        %v2850 = vsel %vm2786, %v296, 10
        %v2851 = vsel %vm2787, %v296, 10
        %v2852 = vsel %vm2788, %v296, 10
        %v2853 = vsel %vm2789, %v296, 10
        %v2854 = vsel %vm2790, %v296, 10
        %v2855 = vsel %vm2791, %v296, 10
        %v2856 = vsel %vm2792, %v296, 10
        %v2857 = vsel %vm2793, %v296, 10
        %v2858 = vsel %vm617, %v2794, 2147483647
        %v2859 = vand.u32 %v2858, 65535
        %v2860 = vshra.s32 %v2858, 16
        %v2861 = vcvt.s32.f32 %v2859
        %v2862 = vcvt.s32.f32 %v2860
        %2863 = vmin.xlane.f32.xlu0 %v2862
        %v2864 = vpop.xlane.xlu0 %2863
        %vm2865 = vcmp.eq.f32.partialorder %v2862, %v2864
        %v2866 = vsel %vm2865, %v2861, inf
        %2867 = vmin.xlane.f32.xlu0 %v2866
        %v2868 = vpop.xlane.xlu0 %2867
        %v2869 = vcvt.f32.s32 %v2868
        %v2870 = vcvt.f32.s32 %v2864
        %v2871 = vshll.u32 %v2870, 16
        %v2872 = vadd.s32 %v2871, %v2869
        %v2873 = vsel %vm617, %v2795, 2147483647
        %v2874 = vand.u32 %v2873, 65535
        %v2875 = vshra.s32 %v2873, 16
        %v2876 = vcvt.s32.f32 %v2874
        %v2877 = vcvt.s32.f32 %v2875
        %2878 = vmin.xlane.f32.xlu0 %v2877
        %v2879 = vpop.xlane.xlu0 %2878
        %vm2880 = vcmp.eq.f32.partialorder %v2877, %v2879
        %v2881 = vsel %vm2880, %v2876, inf
        %2882 = vmin.xlane.f32.xlu0 %v2881
        %v2883 = vpop.xlane.xlu0 %2882
        %v2884 = vcvt.f32.s32 %v2883
        %v2885 = vcvt.f32.s32 %v2879
        %v2886 = vshll.u32 %v2885, 16
        %v2887 = vadd.s32 %v2886, %v2884
        %v2888 = vsel %vm617, %v2796, 2147483647
        %v2889 = vand.u32 %v2888, 65535
        %v2890 = vshra.s32 %v2888, 16
        %v2891 = vcvt.s32.f32 %v2889
        %v2892 = vcvt.s32.f32 %v2890
        %2893 = vmin.xlane.f32.xlu0 %v2892
        %v2894 = vpop.xlane.xlu0 %2893
        %vm2895 = vcmp.eq.f32.partialorder %v2892, %v2894
        %v2896 = vsel %vm2895, %v2891, inf
        %2897 = vmin.xlane.f32.xlu0 %v2896
        %v2898 = vpop.xlane.xlu0 %2897
        %v2899 = vcvt.f32.s32 %v2898
        %v2900 = vcvt.f32.s32 %v2894
        %v2901 = vshll.u32 %v2900, 16
        %v2902 = vadd.s32 %v2901, %v2899
        %v2903 = vsel %vm617, %v2797, 2147483647
        %v2904 = vand.u32 %v2903, 65535
        %v2905 = vshra.s32 %v2903, 16
        %v2906 = vcvt.s32.f32 %v2904
        %v2907 = vcvt.s32.f32 %v2905
        %2908 = vmin.xlane.f32.xlu0 %v2907
        %v2909 = vpop.xlane.xlu0 %2908
        %vm2910 = vcmp.eq.f32.partialorder %v2907, %v2909
        %v2911 = vsel %vm2910, %v2906, inf
        %2912 = vmin.xlane.f32.xlu0 %v2911
        %v2913 = vpop.xlane.xlu0 %2912
        %v2914 = vcvt.f32.s32 %v2913
        %v2915 = vcvt.f32.s32 %v2909
        %v2916 = vshll.u32 %v2915, 16
        %v2917 = vadd.s32 %v2916, %v2914
        %v2918 = vsel %vm617, %v2798, 2147483647
        %v2919 = vand.u32 %v2918, 65535
        %v2920 = vshra.s32 %v2918, 16
        %v2921 = vcvt.s32.f32 %v2919
        %v2922 = vcvt.s32.f32 %v2920
        %2923 = vmin.xlane.f32.xlu0 %v2922
        %v2924 = vpop.xlane.xlu0 %2923
        %vm2925 = vcmp.eq.f32.partialorder %v2922, %v2924
        %v2926 = vsel %vm2925, %v2921, inf
        %2927 = vmin.xlane.f32.xlu0 %v2926
        %v2928 = vpop.xlane.xlu0 %2927
        %v2929 = vcvt.f32.s32 %v2928
        %v2930 = vcvt.f32.s32 %v2924
        %v2931 = vshll.u32 %v2930, 16
        %v2932 = vadd.s32 %v2931, %v2929
        %v2933 = vsel %vm617, %v2799, 2147483647
        %v2934 = vand.u32 %v2933, 65535
        %v2935 = vshra.s32 %v2933, 16
        %v2936 = vcvt.s32.f32 %v2934
        %v2937 = vcvt.s32.f32 %v2935
        %2938 = vmin.xlane.f32.xlu0 %v2937
        %v2939 = vpop.xlane.xlu0 %2938
        %vm2940 = vcmp.eq.f32.partialorder %v2937, %v2939
        %v2941 = vsel %vm2940, %v2936, inf
        %2942 = vmin.xlane.f32.xlu0 %v2941
        %v2943 = vpop.xlane.xlu0 %2942
        %v2944 = vcvt.f32.s32 %v2943
        %v2945 = vcvt.f32.s32 %v2939
        %v2946 = vshll.u32 %v2945, 16
        %v2947 = vadd.s32 %v2946, %v2944
        %v2948 = vsel %vm617, %v2800, 2147483647
        %v2949 = vand.u32 %v2948, 65535
        %v2950 = vshra.s32 %v2948, 16
        %v2951 = vcvt.s32.f32 %v2949
        %v2952 = vcvt.s32.f32 %v2950
        %2953 = vmin.xlane.f32.xlu0 %v2952
        %v2954 = vpop.xlane.xlu0 %2953
        %vm2955 = vcmp.eq.f32.partialorder %v2952, %v2954
        %v2956 = vsel %vm2955, %v2951, inf
        %2957 = vmin.xlane.f32.xlu0 %v2956
        %v2958 = vpop.xlane.xlu0 %2957
        %v2959 = vcvt.f32.s32 %v2958
        %v2960 = vcvt.f32.s32 %v2954
        %v2961 = vshll.u32 %v2960, 16
        %v2962 = vadd.s32 %v2961, %v2959
        %v2963 = vsel %vm617, %v2801, 2147483647
        %v2964 = vand.u32 %v2963, 65535
        %v2965 = vshra.s32 %v2963, 16
        %v2966 = vcvt.s32.f32 %v2964
        %v2967 = vcvt.s32.f32 %v2965
        %2968 = vmin.xlane.f32.xlu0 %v2967
        %v2969 = vpop.xlane.xlu0 %2968
        %vm2970 = vcmp.eq.f32.partialorder %v2967, %v2969
        %v2971 = vsel %vm2970, %v2966, inf
        %2972 = vmin.xlane.f32.xlu0 %v2971
        %v2973 = vpop.xlane.xlu0 %2972
        %v2974 = vcvt.f32.s32 %v2973
        %v2975 = vcvt.f32.s32 %v2969
        %v2976 = vshll.u32 %v2975, 16
        %v2977 = vadd.s32 %v2976, %v2974
        %v2978 = vsel %vm617, %v2802, 2147483647
        %v2979 = vand.u32 %v2978, 65535
        %v2980 = vshra.s32 %v2978, 16
        %v2981 = vcvt.s32.f32 %v2979
        %v2982 = vcvt.s32.f32 %v2980
        %2983 = vmin.xlane.f32.xlu0 %v2982
        %v2984 = vpop.xlane.xlu0 %2983
        %vm2985 = vcmp.eq.f32.partialorder %v2982, %v2984
        %v2986 = vsel %vm2985, %v2981, inf
        %2987 = vmin.xlane.f32.xlu0 %v2986
        %v2988 = vpop.xlane.xlu0 %2987
        %v2989 = vcvt.f32.s32 %v2988
        %v2990 = vcvt.f32.s32 %v2984
        %v2991 = vshll.u32 %v2990, 16
        %v2992 = vadd.s32 %v2991, %v2989
        %v2993 = vsel %vm617, %v2803, 2147483647
        %v2994 = vand.u32 %v2993, 65535
        %v2995 = vshra.s32 %v2993, 16
        %v2996 = vcvt.s32.f32 %v2994
        %v2997 = vcvt.s32.f32 %v2995
        %2998 = vmin.xlane.f32.xlu0 %v2997
        %v2999 = vpop.xlane.xlu0 %2998
        %vm3000 = vcmp.eq.f32.partialorder %v2997, %v2999
        %v3001 = vsel %vm3000, %v2996, inf
        %3002 = vmin.xlane.f32.xlu0 %v3001
        %v3003 = vpop.xlane.xlu0 %3002
        %v3004 = vcvt.f32.s32 %v3003
        %v3005 = vcvt.f32.s32 %v2999
        %v3006 = vshll.u32 %v3005, 16
        %v3007 = vadd.s32 %v3006, %v3004
        %v3008 = vsel %vm617, %v2804, 2147483647
        %v3009 = vand.u32 %v3008, 65535
        %v3010 = vshra.s32 %v3008, 16
        %v3011 = vcvt.s32.f32 %v3009
        %v3012 = vcvt.s32.f32 %v3010
        %3013 = vmin.xlane.f32.xlu0 %v3012
        %v3014 = vpop.xlane.xlu0 %3013
        %vm3015 = vcmp.eq.f32.partialorder %v3012, %v3014
        %v3016 = vsel %vm3015, %v3011, inf
        %3017 = vmin.xlane.f32.xlu0 %v3016
        %v3018 = vpop.xlane.xlu0 %3017
        %v3019 = vcvt.f32.s32 %v3018
        %v3020 = vcvt.f32.s32 %v3014
        %v3021 = vshll.u32 %v3020, 16
        %v3022 = vadd.s32 %v3021, %v3019
        %v3023 = vsel %vm617, %v2805, 2147483647
        %v3024 = vand.u32 %v3023, 65535
        %v3025 = vshra.s32 %v3023, 16
        %v3026 = vcvt.s32.f32 %v3024
        %v3027 = vcvt.s32.f32 %v3025
        %3028 = vmin.xlane.f32.xlu0 %v3027
        %v3029 = vpop.xlane.xlu0 %3028
        %vm3030 = vcmp.eq.f32.partialorder %v3027, %v3029
        %v3031 = vsel %vm3030, %v3026, inf
        %3032 = vmin.xlane.f32.xlu0 %v3031
        %v3033 = vpop.xlane.xlu0 %3032
        %v3034 = vcvt.f32.s32 %v3033
        %v3035 = vcvt.f32.s32 %v3029
        %v3036 = vshll.u32 %v3035, 16
        %v3037 = vadd.s32 %v3036, %v3034
        %v3038 = vsel %vm617, %v2806, 2147483647
        %v3039 = vand.u32 %v3038, 65535
        %v3040 = vshra.s32 %v3038, 16
        %v3041 = vcvt.s32.f32 %v3039
        %v3042 = vcvt.s32.f32 %v3040
        %3043 = vmin.xlane.f32.xlu0 %v3042
        %v3044 = vpop.xlane.xlu0 %3043
        %vm3045 = vcmp.eq.f32.partialorder %v3042, %v3044
        %v3046 = vsel %vm3045, %v3041, inf
        %3047 = vmin.xlane.f32.xlu0 %v3046
        %v3048 = vpop.xlane.xlu0 %3047
        %v3049 = vcvt.f32.s32 %v3048
        %v3050 = vcvt.f32.s32 %v3044
        %v3051 = vshll.u32 %v3050, 16
        %v3052 = vadd.s32 %v3051, %v3049
        %v3053 = vsel %vm617, %v2807, 2147483647
        %v3054 = vand.u32 %v3053, 65535
        %v3055 = vshra.s32 %v3053, 16
        %v3056 = vcvt.s32.f32 %v3054
        %v3057 = vcvt.s32.f32 %v3055
        %3058 = vmin.xlane.f32.xlu0 %v3057
        %v3059 = vpop.xlane.xlu0 %3058
        %vm3060 = vcmp.eq.f32.partialorder %v3057, %v3059
        %v3061 = vsel %vm3060, %v3056, inf
        %3062 = vmin.xlane.f32.xlu0 %v3061
        %v3063 = vpop.xlane.xlu0 %3062
        %v3064 = vcvt.f32.s32 %v3063
        %v3065 = vcvt.f32.s32 %v3059
        %v3066 = vshll.u32 %v3065, 16
        %v3067 = vadd.s32 %v3066, %v3064
        %v3068 = vsel %vm617, %v2808, 2147483647
        %v3069 = vand.u32 %v3068, 65535
        %v3070 = vshra.s32 %v3068, 16
        %v3071 = vcvt.s32.f32 %v3069
        %v3072 = vcvt.s32.f32 %v3070
        %3073 = vmin.xlane.f32.xlu0 %v3072
        %v3074 = vpop.xlane.xlu0 %3073
        %vm3075 = vcmp.eq.f32.partialorder %v3072, %v3074
        %v3076 = vsel %vm3075, %v3071, inf
        %3077 = vmin.xlane.f32.xlu0 %v3076
        %v3078 = vpop.xlane.xlu0 %3077
        %v3079 = vcvt.f32.s32 %v3078
        %v3080 = vcvt.f32.s32 %v3074
        %v3081 = vshll.u32 %v3080, 16
        %v3082 = vadd.s32 %v3081, %v3079
        %v3083 = vsel %vm617, %v2809, 2147483647
        %v3084 = vand.u32 %v3083, 65535
        %v3085 = vshra.s32 %v3083, 16
        %v3086 = vcvt.s32.f32 %v3084
        %v3087 = vcvt.s32.f32 %v3085
        %3088 = vmin.xlane.f32.xlu0 %v3087
        %v3089 = vpop.xlane.xlu0 %3088
        %vm3090 = vcmp.eq.f32.partialorder %v3087, %v3089
        %v3091 = vsel %vm3090, %v3086, inf
        %3092 = vmin.xlane.f32.xlu0 %v3091
        %v3093 = vpop.xlane.xlu0 %3092
        %v3094 = vcvt.f32.s32 %v3093
        %v3095 = vcvt.f32.s32 %v3089
        %v3096 = vshll.u32 %v3095, 16
        %v3097 = vadd.s32 %v3096, %v3094
        %v3098 = vsel %vm617, %v2810, 2147483647
        %v3099 = vand.u32 %v3098, 65535
        %v3100 = vshra.s32 %v3098, 16
        %v3101 = vcvt.s32.f32 %v3099
        %v3102 = vcvt.s32.f32 %v3100
        %3103 = vmin.xlane.f32.xlu0 %v3102
        %v3104 = vpop.xlane.xlu0 %3103
        %vm3105 = vcmp.eq.f32.partialorder %v3102, %v3104
        %v3106 = vsel %vm3105, %v3101, inf
        %3107 = vmin.xlane.f32.xlu0 %v3106
        %v3108 = vpop.xlane.xlu0 %3107
        %v3109 = vcvt.f32.s32 %v3108
        %v3110 = vcvt.f32.s32 %v3104
        %v3111 = vshll.u32 %v3110, 16
        %v3112 = vadd.s32 %v3111, %v3109
        %v3113 = vsel %vm617, %v2811, 2147483647
        %v3114 = vand.u32 %v3113, 65535
        %v3115 = vshra.s32 %v3113, 16
        %v3116 = vcvt.s32.f32 %v3114
        %v3117 = vcvt.s32.f32 %v3115
        %3118 = vmin.xlane.f32.xlu0 %v3117
        %v3119 = vpop.xlane.xlu0 %3118
        %vm3120 = vcmp.eq.f32.partialorder %v3117, %v3119
        %v3121 = vsel %vm3120, %v3116, inf
        %3122 = vmin.xlane.f32.xlu0 %v3121
        %v3123 = vpop.xlane.xlu0 %3122
        %v3124 = vcvt.f32.s32 %v3123
        %v3125 = vcvt.f32.s32 %v3119
        %v3126 = vshll.u32 %v3125, 16
        %v3127 = vadd.s32 %v3126, %v3124
        %v3128 = vsel %vm617, %v2812, 2147483647
        %v3129 = vand.u32 %v3128, 65535
        %v3130 = vshra.s32 %v3128, 16
        %v3131 = vcvt.s32.f32 %v3129
        %v3132 = vcvt.s32.f32 %v3130
        %3133 = vmin.xlane.f32.xlu0 %v3132
        %v3134 = vpop.xlane.xlu0 %3133
        %vm3135 = vcmp.eq.f32.partialorder %v3132, %v3134
        %v3136 = vsel %vm3135, %v3131, inf
        %3137 = vmin.xlane.f32.xlu0 %v3136
        %v3138 = vpop.xlane.xlu0 %3137
        %v3139 = vcvt.f32.s32 %v3138
        %v3140 = vcvt.f32.s32 %v3134
        %v3141 = vshll.u32 %v3140, 16
        %v3142 = vadd.s32 %v3141, %v3139
        %v3143 = vsel %vm617, %v2813, 2147483647
        %v3144 = vand.u32 %v3143, 65535
        %v3145 = vshra.s32 %v3143, 16
        %v3146 = vcvt.s32.f32 %v3144
        %v3147 = vcvt.s32.f32 %v3145
        %3148 = vmin.xlane.f32.xlu0 %v3147
        %v3149 = vpop.xlane.xlu0 %3148
        %vm3150 = vcmp.eq.f32.partialorder %v3147, %v3149
        %v3151 = vsel %vm3150, %v3146, inf
        %3152 = vmin.xlane.f32.xlu0 %v3151
        %v3153 = vpop.xlane.xlu0 %3152
        %v3154 = vcvt.f32.s32 %v3153
        %v3155 = vcvt.f32.s32 %v3149
        %v3156 = vshll.u32 %v3155, 16
        %v3157 = vadd.s32 %v3156, %v3154
        %v3158 = vsel %vm617, %v2814, 2147483647
        %v3159 = vand.u32 %v3158, 65535
        %v3160 = vshra.s32 %v3158, 16
        %v3161 = vcvt.s32.f32 %v3159
        %v3162 = vcvt.s32.f32 %v3160
        %3163 = vmin.xlane.f32.xlu0 %v3162
        %v3164 = vpop.xlane.xlu0 %3163
        %vm3165 = vcmp.eq.f32.partialorder %v3162, %v3164
        %v3166 = vsel %vm3165, %v3161, inf
        %3167 = vmin.xlane.f32.xlu0 %v3166
        %v3168 = vpop.xlane.xlu0 %3167
        %v3169 = vcvt.f32.s32 %v3168
        %v3170 = vcvt.f32.s32 %v3164
        %v3171 = vshll.u32 %v3170, 16
        %v3172 = vadd.s32 %v3171, %v3169
        %v3173 = vsel %vm617, %v2815, 2147483647
        %v3174 = vand.u32 %v3173, 65535
        %v3175 = vshra.s32 %v3173, 16
        %v3176 = vcvt.s32.f32 %v3174
        %v3177 = vcvt.s32.f32 %v3175
        %3178 = vmin.xlane.f32.xlu0 %v3177
        %v3179 = vpop.xlane.xlu0 %3178
        %vm3180 = vcmp.eq.f32.partialorder %v3177, %v3179
        %v3181 = vsel %vm3180, %v3176, inf
        %3182 = vmin.xlane.f32.xlu0 %v3181
        %v3183 = vpop.xlane.xlu0 %3182
        %v3184 = vcvt.f32.s32 %v3183
        %v3185 = vcvt.f32.s32 %v3179
        %v3186 = vshll.u32 %v3185, 16
        %v3187 = vadd.s32 %v3186, %v3184
        %v3188 = vsel %vm617, %v2816, 2147483647
        %v3189 = vand.u32 %v3188, 65535
        %v3190 = vshra.s32 %v3188, 16
        %v3191 = vcvt.s32.f32 %v3189
        %v3192 = vcvt.s32.f32 %v3190
        %3193 = vmin.xlane.f32.xlu0 %v3192
        %v3194 = vpop.xlane.xlu0 %3193
        %vm3195 = vcmp.eq.f32.partialorder %v3192, %v3194
        %v3196 = vsel %vm3195, %v3191, inf
        %3197 = vmin.xlane.f32.xlu0 %v3196
        %v3198 = vpop.xlane.xlu0 %3197
        %v3199 = vcvt.f32.s32 %v3198
        %v3200 = vcvt.f32.s32 %v3194
        %v3201 = vshll.u32 %v3200, 16
        %v3202 = vadd.s32 %v3201, %v3199
        %v3203 = vsel %vm617, %v2817, 2147483647
        %v3204 = vand.u32 %v3203, 65535
        %v3205 = vshra.s32 %v3203, 16
        %v3206 = vcvt.s32.f32 %v3204
        %v3207 = vcvt.s32.f32 %v3205
        %3208 = vmin.xlane.f32.xlu0 %v3207
        %v3209 = vpop.xlane.xlu0 %3208
        %vm3210 = vcmp.eq.f32.partialorder %v3207, %v3209
        %v3211 = vsel %vm3210, %v3206, inf
        %3212 = vmin.xlane.f32.xlu0 %v3211
        %v3213 = vpop.xlane.xlu0 %3212
        %v3214 = vcvt.f32.s32 %v3213
        %v3215 = vcvt.f32.s32 %v3209
        %v3216 = vshll.u32 %v3215, 16
        %v3217 = vadd.s32 %v3216, %v3214
        %v3218 = vsel %vm617, %v2818, 2147483647
        %v3219 = vand.u32 %v3218, 65535
        %v3220 = vshra.s32 %v3218, 16
        %v3221 = vcvt.s32.f32 %v3219
        %v3222 = vcvt.s32.f32 %v3220
        %3223 = vmin.xlane.f32.xlu0 %v3222
        %v3224 = vpop.xlane.xlu0 %3223
        %vm3225 = vcmp.eq.f32.partialorder %v3222, %v3224
        %v3226 = vsel %vm3225, %v3221, inf
        %3227 = vmin.xlane.f32.xlu0 %v3226
        %v3228 = vpop.xlane.xlu0 %3227
        %v3229 = vcvt.f32.s32 %v3228
        %v3230 = vcvt.f32.s32 %v3224
        %v3231 = vshll.u32 %v3230, 16
        %v3232 = vadd.s32 %v3231, %v3229
        %v3233 = vsel %vm617, %v2819, 2147483647
        %v3234 = vand.u32 %v3233, 65535
        %v3235 = vshra.s32 %v3233, 16
        %v3236 = vcvt.s32.f32 %v3234
        %v3237 = vcvt.s32.f32 %v3235
        %3238 = vmin.xlane.f32.xlu0 %v3237
        %v3239 = vpop.xlane.xlu0 %3238
        %vm3240 = vcmp.eq.f32.partialorder %v3237, %v3239
        %v3241 = vsel %vm3240, %v3236, inf
        %3242 = vmin.xlane.f32.xlu0 %v3241
        %v3243 = vpop.xlane.xlu0 %3242
        %v3244 = vcvt.f32.s32 %v3243
        %v3245 = vcvt.f32.s32 %v3239
        %v3246 = vshll.u32 %v3245, 16
        %v3247 = vadd.s32 %v3246, %v3244
        %v3248 = vsel %vm617, %v2820, 2147483647
        %v3249 = vand.u32 %v3248, 65535
        %v3250 = vshra.s32 %v3248, 16
        %v3251 = vcvt.s32.f32 %v3249
        %v3252 = vcvt.s32.f32 %v3250
        %3253 = vmin.xlane.f32.xlu0 %v3252
        %v3254 = vpop.xlane.xlu0 %3253
        %vm3255 = vcmp.eq.f32.partialorder %v3252, %v3254
        %v3256 = vsel %vm3255, %v3251, inf
        %3257 = vmin.xlane.f32.xlu0 %v3256
        %v3258 = vpop.xlane.xlu0 %3257
        %v3259 = vcvt.f32.s32 %v3258
        %v3260 = vcvt.f32.s32 %v3254
        %v3261 = vshll.u32 %v3260, 16
        %v3262 = vadd.s32 %v3261, %v3259
        %v3263 = vsel %vm617, %v2821, 2147483647
        %v3264 = vand.u32 %v3263, 65535
        %v3265 = vshra.s32 %v3263, 16
        %v3266 = vcvt.s32.f32 %v3264
        %v3267 = vcvt.s32.f32 %v3265
        %3268 = vmin.xlane.f32.xlu0 %v3267
        %v3269 = vpop.xlane.xlu0 %3268
        %vm3270 = vcmp.eq.f32.partialorder %v3267, %v3269
        %v3271 = vsel %vm3270, %v3266, inf
        %3272 = vmin.xlane.f32.xlu0 %v3271
        %v3273 = vpop.xlane.xlu0 %3272
        %v3274 = vcvt.f32.s32 %v3273
        %v3275 = vcvt.f32.s32 %v3269
        %v3276 = vshll.u32 %v3275, 16
        %v3277 = vadd.s32 %v3276, %v3274
        %v3278 = vsel %vm617, %v2822, 2147483647
        %v3279 = vand.u32 %v3278, 65535
        %v3280 = vshra.s32 %v3278, 16
        %v3281 = vcvt.s32.f32 %v3279
        %v3282 = vcvt.s32.f32 %v3280
        %3283 = vmin.xlane.f32.xlu0 %v3282
        %v3284 = vpop.xlane.xlu0 %3283
        %vm3285 = vcmp.eq.f32.partialorder %v3282, %v3284
        %v3286 = vsel %vm3285, %v3281, inf
        %3287 = vmin.xlane.f32.xlu0 %v3286
        %v3288 = vpop.xlane.xlu0 %3287
        %v3289 = vcvt.f32.s32 %v3288
        %v3290 = vcvt.f32.s32 %v3284
        %v3291 = vshll.u32 %v3290, 16
        %v3292 = vadd.s32 %v3291, %v3289
        %v3293 = vsel %vm617, %v2823, 2147483647
        %v3294 = vand.u32 %v3293, 65535
        %v3295 = vshra.s32 %v3293, 16
        %v3296 = vcvt.s32.f32 %v3294
        %v3297 = vcvt.s32.f32 %v3295
        %3298 = vmin.xlane.f32.xlu0 %v3297
        %v3299 = vpop.xlane.xlu0 %3298
        %vm3300 = vcmp.eq.f32.partialorder %v3297, %v3299
        %v3301 = vsel %vm3300, %v3296, inf
        %3302 = vmin.xlane.f32.xlu0 %v3301
        %v3303 = vpop.xlane.xlu0 %3302
        %v3304 = vcvt.f32.s32 %v3303
        %v3305 = vcvt.f32.s32 %v3299
        %v3306 = vshll.u32 %v3305, 16
        %v3307 = vadd.s32 %v3306, %v3304
        %v3308 = vsel %vm617, %v2824, 2147483647
        %v3309 = vand.u32 %v3308, 65535
        %v3310 = vshra.s32 %v3308, 16
        %v3311 = vcvt.s32.f32 %v3309
        %v3312 = vcvt.s32.f32 %v3310
        %3313 = vmin.xlane.f32.xlu0 %v3312
        %v3314 = vpop.xlane.xlu0 %3313
        %vm3315 = vcmp.eq.f32.partialorder %v3312, %v3314
        %v3316 = vsel %vm3315, %v3311, inf
        %3317 = vmin.xlane.f32.xlu0 %v3316
        %v3318 = vpop.xlane.xlu0 %3317
        %v3319 = vcvt.f32.s32 %v3318
        %v3320 = vcvt.f32.s32 %v3314
        %v3321 = vshll.u32 %v3320, 16
        %v3322 = vadd.s32 %v3321, %v3319
        %v3323 = vsel %vm617, %v2825, 2147483647
        %v3324 = vand.u32 %v3323, 65535
        %v3325 = vshra.s32 %v3323, 16
        %v3326 = vcvt.s32.f32 %v3324
        %v3327 = vcvt.s32.f32 %v3325
        %3328 = vmin.xlane.f32.xlu0 %v3327
        %v3329 = vpop.xlane.xlu0 %3328
        %vm3330 = vcmp.eq.f32.partialorder %v3327, %v3329
        %v3331 = vsel %vm3330, %v3326, inf
        %3332 = vmin.xlane.f32.xlu0 %v3331
        %v3333 = vpop.xlane.xlu0 %3332
        %v3334 = vcvt.f32.s32 %v3333
        %v3335 = vcvt.f32.s32 %v3329
        %v3336 = vshll.u32 %v3335, 16
        %v3337 = vadd.s32 %v3336, %v3334
        %v3338 = vsel %vm617, %v2826, 2147483647
        %v3339 = vand.u32 %v3338, 65535
        %v3340 = vshra.s32 %v3338, 16
        %v3341 = vcvt.s32.f32 %v3339
        %v3342 = vcvt.s32.f32 %v3340
        %3343 = vmin.xlane.f32.xlu0 %v3342
        %v3344 = vpop.xlane.xlu0 %3343
        %vm3345 = vcmp.eq.f32.partialorder %v3342, %v3344
        %v3346 = vsel %vm3345, %v3341, inf
        %3347 = vmin.xlane.f32.xlu0 %v3346
        %v3348 = vpop.xlane.xlu0 %3347
        %v3349 = vcvt.f32.s32 %v3348
        %v3350 = vcvt.f32.s32 %v3344
        %v3351 = vshll.u32 %v3350, 16
        %v3352 = vadd.s32 %v3351, %v3349
        %v3353 = vsel %vm617, %v2827, 2147483647
        %v3354 = vand.u32 %v3353, 65535
        %v3355 = vshra.s32 %v3353, 16
        %v3356 = vcvt.s32.f32 %v3354
        %v3357 = vcvt.s32.f32 %v3355
        %3358 = vmin.xlane.f32.xlu0 %v3357
        %v3359 = vpop.xlane.xlu0 %3358
        %vm3360 = vcmp.eq.f32.partialorder %v3357, %v3359
        %v3361 = vsel %vm3360, %v3356, inf
        %3362 = vmin.xlane.f32.xlu0 %v3361
        %v3363 = vpop.xlane.xlu0 %3362
        %v3364 = vcvt.f32.s32 %v3363
        %v3365 = vcvt.f32.s32 %v3359
        %v3366 = vshll.u32 %v3365, 16
        %v3367 = vadd.s32 %v3366, %v3364
        %v3368 = vsel %vm617, %v2828, 2147483647
        %v3369 = vand.u32 %v3368, 65535
        %v3370 = vshra.s32 %v3368, 16
        %v3371 = vcvt.s32.f32 %v3369
        %v3372 = vcvt.s32.f32 %v3370
        %3373 = vmin.xlane.f32.xlu0 %v3372
        %v3374 = vpop.xlane.xlu0 %3373
        %vm3375 = vcmp.eq.f32.partialorder %v3372, %v3374
        %v3376 = vsel %vm3375, %v3371, inf
        %3377 = vmin.xlane.f32.xlu0 %v3376
        %v3378 = vpop.xlane.xlu0 %3377
        %v3379 = vcvt.f32.s32 %v3378
        %v3380 = vcvt.f32.s32 %v3374
        %v3381 = vshll.u32 %v3380, 16
        %v3382 = vadd.s32 %v3381, %v3379
        %v3383 = vsel %vm617, %v2829, 2147483647
        %v3384 = vand.u32 %v3383, 65535
        %v3385 = vshra.s32 %v3383, 16
        %v3386 = vcvt.s32.f32 %v3384
        %v3387 = vcvt.s32.f32 %v3385
        %3388 = vmin.xlane.f32.xlu0 %v3387
        %v3389 = vpop.xlane.xlu0 %3388
        %vm3390 = vcmp.eq.f32.partialorder %v3387, %v3389
        %v3391 = vsel %vm3390, %v3386, inf
        %3392 = vmin.xlane.f32.xlu0 %v3391
        %v3393 = vpop.xlane.xlu0 %3392
        %v3394 = vcvt.f32.s32 %v3393
        %v3395 = vcvt.f32.s32 %v3389
        %v3396 = vshll.u32 %v3395, 16
        %v3397 = vadd.s32 %v3396, %v3394
        %v3398 = vsel %vm617, %v2830, 2147483647
        %v3399 = vand.u32 %v3398, 65535
        %v3400 = vshra.s32 %v3398, 16
        %v3401 = vcvt.s32.f32 %v3399
        %v3402 = vcvt.s32.f32 %v3400
        %3403 = vmin.xlane.f32.xlu0 %v3402
        %v3404 = vpop.xlane.xlu0 %3403
        %vm3405 = vcmp.eq.f32.partialorder %v3402, %v3404
        %v3406 = vsel %vm3405, %v3401, inf
        %3407 = vmin.xlane.f32.xlu0 %v3406
        %v3408 = vpop.xlane.xlu0 %3407
        %v3409 = vcvt.f32.s32 %v3408
        %v3410 = vcvt.f32.s32 %v3404
        %v3411 = vshll.u32 %v3410, 16
        %v3412 = vadd.s32 %v3411, %v3409
        %v3413 = vsel %vm617, %v2831, 2147483647
        %v3414 = vand.u32 %v3413, 65535
        %v3415 = vshra.s32 %v3413, 16
        %v3416 = vcvt.s32.f32 %v3414
        %v3417 = vcvt.s32.f32 %v3415
        %3418 = vmin.xlane.f32.xlu0 %v3417
        %v3419 = vpop.xlane.xlu0 %3418
        %vm3420 = vcmp.eq.f32.partialorder %v3417, %v3419
        %v3421 = vsel %vm3420, %v3416, inf
        %3422 = vmin.xlane.f32.xlu0 %v3421
        %v3423 = vpop.xlane.xlu0 %3422
        %v3424 = vcvt.f32.s32 %v3423
        %v3425 = vcvt.f32.s32 %v3419
        %v3426 = vshll.u32 %v3425, 16
        %v3427 = vadd.s32 %v3426, %v3424
        %v3428 = vsel %vm617, %v2832, 2147483647
        %v3429 = vand.u32 %v3428, 65535
        %v3430 = vshra.s32 %v3428, 16
        %v3431 = vcvt.s32.f32 %v3429
        %v3432 = vcvt.s32.f32 %v3430
        %3433 = vmin.xlane.f32.xlu0 %v3432
        %v3434 = vpop.xlane.xlu0 %3433
        %vm3435 = vcmp.eq.f32.partialorder %v3432, %v3434
        %v3436 = vsel %vm3435, %v3431, inf
        %3437 = vmin.xlane.f32.xlu0 %v3436
        %v3438 = vpop.xlane.xlu0 %3437
        %v3439 = vcvt.f32.s32 %v3438
        %v3440 = vcvt.f32.s32 %v3434
        %v3441 = vshll.u32 %v3440, 16
        %v3442 = vadd.s32 %v3441, %v3439
        %v3443 = vsel %vm617, %v2833, 2147483647
        %v3444 = vand.u32 %v3443, 65535
        %v3445 = vshra.s32 %v3443, 16
        %v3446 = vcvt.s32.f32 %v3444
        %v3447 = vcvt.s32.f32 %v3445
        %3448 = vmin.xlane.f32.xlu0 %v3447
        %v3449 = vpop.xlane.xlu0 %3448
        %vm3450 = vcmp.eq.f32.partialorder %v3447, %v3449
        %v3451 = vsel %vm3450, %v3446, inf
        %3452 = vmin.xlane.f32.xlu0 %v3451
        %v3453 = vpop.xlane.xlu0 %3452
        %v3454 = vcvt.f32.s32 %v3453
        %v3455 = vcvt.f32.s32 %v3449
        %v3456 = vshll.u32 %v3455, 16
        %v3457 = vadd.s32 %v3456, %v3454
        %v3458 = vsel %vm617, %v2834, 2147483647
        %v3459 = vand.u32 %v3458, 65535
        %v3460 = vshra.s32 %v3458, 16
        %v3461 = vcvt.s32.f32 %v3459
        %v3462 = vcvt.s32.f32 %v3460
        %3463 = vmin.xlane.f32.xlu0 %v3462
        %v3464 = vpop.xlane.xlu0 %3463
        %vm3465 = vcmp.eq.f32.partialorder %v3462, %v3464
        %v3466 = vsel %vm3465, %v3461, inf
        %3467 = vmin.xlane.f32.xlu0 %v3466
        %v3468 = vpop.xlane.xlu0 %3467
        %v3469 = vcvt.f32.s32 %v3468
        %v3470 = vcvt.f32.s32 %v3464
        %v3471 = vshll.u32 %v3470, 16
        %v3472 = vadd.s32 %v3471, %v3469
        %v3473 = vsel %vm617, %v2835, 2147483647
        %v3474 = vand.u32 %v3473, 65535
        %v3475 = vshra.s32 %v3473, 16
        %v3476 = vcvt.s32.f32 %v3474
        %v3477 = vcvt.s32.f32 %v3475
        %3478 = vmin.xlane.f32.xlu0 %v3477
        %v3479 = vpop.xlane.xlu0 %3478
        %vm3480 = vcmp.eq.f32.partialorder %v3477, %v3479
        %v3481 = vsel %vm3480, %v3476, inf
        %3482 = vmin.xlane.f32.xlu0 %v3481
        %v3483 = vpop.xlane.xlu0 %3482
        %v3484 = vcvt.f32.s32 %v3483
        %v3485 = vcvt.f32.s32 %v3479
        %v3486 = vshll.u32 %v3485, 16
        %v3487 = vadd.s32 %v3486, %v3484
        %v3488 = vsel %vm617, %v2836, 2147483647
        %v3489 = vand.u32 %v3488, 65535
        %v3490 = vshra.s32 %v3488, 16
        %v3491 = vcvt.s32.f32 %v3489
        %v3492 = vcvt.s32.f32 %v3490
        %3493 = vmin.xlane.f32.xlu0 %v3492
        %v3494 = vpop.xlane.xlu0 %3493
        %vm3495 = vcmp.eq.f32.partialorder %v3492, %v3494
        %v3496 = vsel %vm3495, %v3491, inf
        %3497 = vmin.xlane.f32.xlu0 %v3496
        %v3498 = vpop.xlane.xlu0 %3497
        %v3499 = vcvt.f32.s32 %v3498
        %v3500 = vcvt.f32.s32 %v3494
        %v3501 = vshll.u32 %v3500, 16
        %v3502 = vadd.s32 %v3501, %v3499
        %v3503 = vsel %vm617, %v2837, 2147483647
        %v3504 = vand.u32 %v3503, 65535
        %v3505 = vshra.s32 %v3503, 16
        %v3506 = vcvt.s32.f32 %v3504
        %v3507 = vcvt.s32.f32 %v3505
        %3508 = vmin.xlane.f32.xlu0 %v3507
        %v3509 = vpop.xlane.xlu0 %3508
        %vm3510 = vcmp.eq.f32.partialorder %v3507, %v3509
        %v3511 = vsel %vm3510, %v3506, inf
        %3512 = vmin.xlane.f32.xlu0 %v3511
        %v3513 = vpop.xlane.xlu0 %3512
        %v3514 = vcvt.f32.s32 %v3513
        %v3515 = vcvt.f32.s32 %v3509
        %v3516 = vshll.u32 %v3515, 16
        %v3517 = vadd.s32 %v3516, %v3514
        %v3518 = vsel %vm617, %v2838, 2147483647
        %v3519 = vand.u32 %v3518, 65535
        %v3520 = vshra.s32 %v3518, 16
        %v3521 = vcvt.s32.f32 %v3519
        %v3522 = vcvt.s32.f32 %v3520
        %3523 = vmin.xlane.f32.xlu0 %v3522
        %v3524 = vpop.xlane.xlu0 %3523
        %vm3525 = vcmp.eq.f32.partialorder %v3522, %v3524
        %v3526 = vsel %vm3525, %v3521, inf
        %3527 = vmin.xlane.f32.xlu0 %v3526
        %v3528 = vpop.xlane.xlu0 %3527
        %v3529 = vcvt.f32.s32 %v3528
        %v3530 = vcvt.f32.s32 %v3524
        %v3531 = vshll.u32 %v3530, 16
        %v3532 = vadd.s32 %v3531, %v3529
        %v3533 = vsel %vm617, %v2839, 2147483647
        %v3534 = vand.u32 %v3533, 65535
        %v3535 = vshra.s32 %v3533, 16
        %v3536 = vcvt.s32.f32 %v3534
        %v3537 = vcvt.s32.f32 %v3535
        %3538 = vmin.xlane.f32.xlu0 %v3537
        %v3539 = vpop.xlane.xlu0 %3538
        %vm3540 = vcmp.eq.f32.partialorder %v3537, %v3539
        %v3541 = vsel %vm3540, %v3536, inf
        %3542 = vmin.xlane.f32.xlu0 %v3541
        %v3543 = vpop.xlane.xlu0 %3542
        %v3544 = vcvt.f32.s32 %v3543
        %v3545 = vcvt.f32.s32 %v3539
        %v3546 = vshll.u32 %v3545, 16
        %v3547 = vadd.s32 %v3546, %v3544
        %v3548 = vsel %vm617, %v2840, 2147483647
        %v3549 = vand.u32 %v3548, 65535
        %v3550 = vshra.s32 %v3548, 16
        %v3551 = vcvt.s32.f32 %v3549
        %v3552 = vcvt.s32.f32 %v3550
        %3553 = vmin.xlane.f32.xlu0 %v3552
        %v3554 = vpop.xlane.xlu0 %3553
        %vm3555 = vcmp.eq.f32.partialorder %v3552, %v3554
        %v3556 = vsel %vm3555, %v3551, inf
        %3557 = vmin.xlane.f32.xlu0 %v3556
        %v3558 = vpop.xlane.xlu0 %3557
        %v3559 = vcvt.f32.s32 %v3558
        %v3560 = vcvt.f32.s32 %v3554
        %v3561 = vshll.u32 %v3560, 16
        %v3562 = vadd.s32 %v3561, %v3559
        %v3563 = vsel %vm617, %v2841, 2147483647
        %v3564 = vand.u32 %v3563, 65535
        %v3565 = vshra.s32 %v3563, 16
        %v3566 = vcvt.s32.f32 %v3564
        %v3567 = vcvt.s32.f32 %v3565
        %3568 = vmin.xlane.f32.xlu0 %v3567
        %v3569 = vpop.xlane.xlu0 %3568
        %vm3570 = vcmp.eq.f32.partialorder %v3567, %v3569
        %v3571 = vsel %vm3570, %v3566, inf
        %3572 = vmin.xlane.f32.xlu0 %v3571
        %v3573 = vpop.xlane.xlu0 %3572
        %v3574 = vcvt.f32.s32 %v3573
        %v3575 = vcvt.f32.s32 %v3569
        %v3576 = vshll.u32 %v3575, 16
        %v3577 = vadd.s32 %v3576, %v3574
        %v3578 = vsel %vm617, %v2842, 2147483647
        %v3579 = vand.u32 %v3578, 65535
        %v3580 = vshra.s32 %v3578, 16
        %v3581 = vcvt.s32.f32 %v3579
        %v3582 = vcvt.s32.f32 %v3580
        %3583 = vmin.xlane.f32.xlu0 %v3582
        %v3584 = vpop.xlane.xlu0 %3583
        %vm3585 = vcmp.eq.f32.partialorder %v3582, %v3584
        %v3586 = vsel %vm3585, %v3581, inf
        %3587 = vmin.xlane.f32.xlu0 %v3586
        %v3588 = vpop.xlane.xlu0 %3587
        %v3589 = vcvt.f32.s32 %v3588
        %v3590 = vcvt.f32.s32 %v3584
        %v3591 = vshll.u32 %v3590, 16
        %v3592 = vadd.s32 %v3591, %v3589
        %v3593 = vsel %vm617, %v2843, 2147483647
        %v3594 = vand.u32 %v3593, 65535
        %v3595 = vshra.s32 %v3593, 16
        %v3596 = vcvt.s32.f32 %v3594
        %v3597 = vcvt.s32.f32 %v3595
        %3598 = vmin.xlane.f32.xlu0 %v3597
        %v3599 = vpop.xlane.xlu0 %3598
        %vm3600 = vcmp.eq.f32.partialorder %v3597, %v3599
        %v3601 = vsel %vm3600, %v3596, inf
        %3602 = vmin.xlane.f32.xlu0 %v3601
        %v3603 = vpop.xlane.xlu0 %3602
        %v3604 = vcvt.f32.s32 %v3603
        %v3605 = vcvt.f32.s32 %v3599
        %v3606 = vshll.u32 %v3605, 16
        %v3607 = vadd.s32 %v3606, %v3604
        %v3608 = vsel %vm617, %v2844, 2147483647
        %v3609 = vand.u32 %v3608, 65535
        %v3610 = vshra.s32 %v3608, 16
        %v3611 = vcvt.s32.f32 %v3609
        %v3612 = vcvt.s32.f32 %v3610
        %3613 = vmin.xlane.f32.xlu0 %v3612
        %v3614 = vpop.xlane.xlu0 %3613
        %vm3615 = vcmp.eq.f32.partialorder %v3612, %v3614
        %v3616 = vsel %vm3615, %v3611, inf
        %3617 = vmin.xlane.f32.xlu0 %v3616
        %v3618 = vpop.xlane.xlu0 %3617
        %v3619 = vcvt.f32.s32 %v3618
        %v3620 = vcvt.f32.s32 %v3614
        %v3621 = vshll.u32 %v3620, 16
        %v3622 = vadd.s32 %v3621, %v3619
        %v3623 = vsel %vm617, %v2845, 2147483647
        %v3624 = vand.u32 %v3623, 65535
        %v3625 = vshra.s32 %v3623, 16
        %v3626 = vcvt.s32.f32 %v3624
        %v3627 = vcvt.s32.f32 %v3625
        %3628 = vmin.xlane.f32.xlu0 %v3627
        %v3629 = vpop.xlane.xlu0 %3628
        %vm3630 = vcmp.eq.f32.partialorder %v3627, %v3629
        %v3631 = vsel %vm3630, %v3626, inf
        %3632 = vmin.xlane.f32.xlu0 %v3631
        %v3633 = vpop.xlane.xlu0 %3632
        %v3634 = vcvt.f32.s32 %v3633
        %v3635 = vcvt.f32.s32 %v3629
        %v3636 = vshll.u32 %v3635, 16
        %v3637 = vadd.s32 %v3636, %v3634
        %v3638 = vsel %vm617, %v2846, 2147483647
        %v3639 = vand.u32 %v3638, 65535
        %v3640 = vshra.s32 %v3638, 16
        %v3641 = vcvt.s32.f32 %v3639
        %v3642 = vcvt.s32.f32 %v3640
        %3643 = vmin.xlane.f32.xlu0 %v3642
        %v3644 = vpop.xlane.xlu0 %3643
        %vm3645 = vcmp.eq.f32.partialorder %v3642, %v3644
        %v3646 = vsel %vm3645, %v3641, inf
        %3647 = vmin.xlane.f32.xlu0 %v3646
        %v3648 = vpop.xlane.xlu0 %3647
        %v3649 = vcvt.f32.s32 %v3648
        %v3650 = vcvt.f32.s32 %v3644
        %v3651 = vshll.u32 %v3650, 16
        %v3652 = vadd.s32 %v3651, %v3649
        %v3653 = vsel %vm617, %v2847, 2147483647
        %v3654 = vand.u32 %v3653, 65535
        %v3655 = vshra.s32 %v3653, 16
        %v3656 = vcvt.s32.f32 %v3654
        %v3657 = vcvt.s32.f32 %v3655
        %3658 = vmin.xlane.f32.xlu0 %v3657
        %v3659 = vpop.xlane.xlu0 %3658
        %vm3660 = vcmp.eq.f32.partialorder %v3657, %v3659
        %v3661 = vsel %vm3660, %v3656, inf
        %3662 = vmin.xlane.f32.xlu0 %v3661
        %v3663 = vpop.xlane.xlu0 %3662
        %v3664 = vcvt.f32.s32 %v3663
        %v3665 = vcvt.f32.s32 %v3659
        %v3666 = vshll.u32 %v3665, 16
        %v3667 = vadd.s32 %v3666, %v3664
        %v3668 = vsel %vm617, %v2848, 2147483647
        %v3669 = vand.u32 %v3668, 65535
        %v3670 = vshra.s32 %v3668, 16
        %v3671 = vcvt.s32.f32 %v3669
        %v3672 = vcvt.s32.f32 %v3670
        %3673 = vmin.xlane.f32.xlu0 %v3672
        %v3674 = vpop.xlane.xlu0 %3673
        %vm3675 = vcmp.eq.f32.partialorder %v3672, %v3674
        %v3676 = vsel %vm3675, %v3671, inf
        %3677 = vmin.xlane.f32.xlu0 %v3676
        %v3678 = vpop.xlane.xlu0 %3677
        %v3679 = vcvt.f32.s32 %v3678
        %v3680 = vcvt.f32.s32 %v3674
        %v3681 = vshll.u32 %v3680, 16
        %v3682 = vadd.s32 %v3681, %v3679
        %v3683 = vsel %vm617, %v2849, 2147483647
        %v3684 = vand.u32 %v3683, 65535
        %v3685 = vshra.s32 %v3683, 16
        %v3686 = vcvt.s32.f32 %v3684
        %v3687 = vcvt.s32.f32 %v3685
        %3688 = vmin.xlane.f32.xlu0 %v3687
        %v3689 = vpop.xlane.xlu0 %3688
        %vm3690 = vcmp.eq.f32.partialorder %v3687, %v3689
        %v3691 = vsel %vm3690, %v3686, inf
        %3692 = vmin.xlane.f32.xlu0 %v3691
        %v3693 = vpop.xlane.xlu0 %3692
        %v3694 = vcvt.f32.s32 %v3693
        %v3695 = vcvt.f32.s32 %v3689
        %v3696 = vshll.u32 %v3695, 16
        %v3697 = vadd.s32 %v3696, %v3694
        %v3698 = vsel %vm617, %v2850, 2147483647
        %v3699 = vand.u32 %v3698, 65535
        %v3700 = vshra.s32 %v3698, 16
        %v3701 = vcvt.s32.f32 %v3699
        %v3702 = vcvt.s32.f32 %v3700
        %3703 = vmin.xlane.f32.xlu0 %v3702
        %v3704 = vpop.xlane.xlu0 %3703
        %vm3705 = vcmp.eq.f32.partialorder %v3702, %v3704
        %v3706 = vsel %vm3705, %v3701, inf
        %3707 = vmin.xlane.f32.xlu0 %v3706
        %v3708 = vpop.xlane.xlu0 %3707
        %v3709 = vcvt.f32.s32 %v3708
        %v3710 = vcvt.f32.s32 %v3704
        %v3711 = vshll.u32 %v3710, 16
        %v3712 = vadd.s32 %v3711, %v3709
        %v3713 = vsel %vm617, %v2851, 2147483647
        %v3714 = vand.u32 %v3713, 65535
        %v3715 = vshra.s32 %v3713, 16
        %v3716 = vcvt.s32.f32 %v3714
        %v3717 = vcvt.s32.f32 %v3715
        %3718 = vmin.xlane.f32.xlu0 %v3717
        %v3719 = vpop.xlane.xlu0 %3718
        %vm3720 = vcmp.eq.f32.partialorder %v3717, %v3719
        %v3721 = vsel %vm3720, %v3716, inf
        %3722 = vmin.xlane.f32.xlu0 %v3721
        %v3723 = vpop.xlane.xlu0 %3722
        %v3724 = vcvt.f32.s32 %v3723
        %v3725 = vcvt.f32.s32 %v3719
        %v3726 = vshll.u32 %v3725, 16
        %v3727 = vadd.s32 %v3726, %v3724
        %v3728 = vsel %vm617, %v2852, 2147483647
        %v3729 = vand.u32 %v3728, 65535
        %v3730 = vshra.s32 %v3728, 16
        %v3731 = vcvt.s32.f32 %v3729
        %v3732 = vcvt.s32.f32 %v3730
        %3733 = vmin.xlane.f32.xlu0 %v3732
        %v3734 = vpop.xlane.xlu0 %3733
        %vm3735 = vcmp.eq.f32.partialorder %v3732, %v3734
        %v3736 = vsel %vm3735, %v3731, inf
        %3737 = vmin.xlane.f32.xlu0 %v3736
        %v3738 = vpop.xlane.xlu0 %3737
        %v3739 = vcvt.f32.s32 %v3738
        %v3740 = vcvt.f32.s32 %v3734
        %v3741 = vshll.u32 %v3740, 16
        %v3742 = vadd.s32 %v3741, %v3739
        %v3743 = vsel %vm617, %v2853, 2147483647
        %v3744 = vand.u32 %v3743, 65535
        %v3745 = vshra.s32 %v3743, 16
        %v3746 = vcvt.s32.f32 %v3744
        %v3747 = vcvt.s32.f32 %v3745
        %3748 = vmin.xlane.f32.xlu0 %v3747
        %v3749 = vpop.xlane.xlu0 %3748
        %vm3750 = vcmp.eq.f32.partialorder %v3747, %v3749
        %v3751 = vsel %vm3750, %v3746, inf
        %3752 = vmin.xlane.f32.xlu0 %v3751
        %v3753 = vpop.xlane.xlu0 %3752
        %v3754 = vcvt.f32.s32 %v3753
        %v3755 = vcvt.f32.s32 %v3749
        %v3756 = vshll.u32 %v3755, 16
        %v3757 = vadd.s32 %v3756, %v3754
        %v3758 = vsel %vm617, %v2854, 2147483647
        %v3759 = vand.u32 %v3758, 65535
        %v3760 = vshra.s32 %v3758, 16
        %v3761 = vcvt.s32.f32 %v3759
        %v3762 = vcvt.s32.f32 %v3760
        %3763 = vmin.xlane.f32.xlu0 %v3762
        %v3764 = vpop.xlane.xlu0 %3763
        %vm3765 = vcmp.eq.f32.partialorder %v3762, %v3764
        %v3766 = vsel %vm3765, %v3761, inf
        %3767 = vmin.xlane.f32.xlu0 %v3766
        %v3768 = vpop.xlane.xlu0 %3767
        %v3769 = vcvt.f32.s32 %v3768
        %v3770 = vcvt.f32.s32 %v3764
        %v3771 = vshll.u32 %v3770, 16
        %v3772 = vadd.s32 %v3771, %v3769
        %v3773 = vsel %vm617, %v2855, 2147483647
        %v3774 = vand.u32 %v3773, 65535
        %v3775 = vshra.s32 %v3773, 16
        %v3776 = vcvt.s32.f32 %v3774
        %v3777 = vcvt.s32.f32 %v3775
        %3778 = vmin.xlane.f32.xlu0 %v3777
        %v3779 = vpop.xlane.xlu0 %3778
        %vm3780 = vcmp.eq.f32.partialorder %v3777, %v3779
        %v3781 = vsel %vm3780, %v3776, inf
        %3782 = vmin.xlane.f32.xlu0 %v3781
        %v3783 = vpop.xlane.xlu0 %3782
        %v3784 = vcvt.f32.s32 %v3783
        %v3785 = vcvt.f32.s32 %v3779
        %v3786 = vshll.u32 %v3785, 16
        %v3787 = vadd.s32 %v3786, %v3784
        %v3788 = vsel %vm617, %v2856, 2147483647
        %v3789 = vand.u32 %v3788, 65535
        %v3790 = vshra.s32 %v3788, 16
        %v3791 = vcvt.s32.f32 %v3789
        %v3792 = vcvt.s32.f32 %v3790
        %3793 = vmin.xlane.f32.xlu0 %v3792
        %v3794 = vpop.xlane.xlu0 %3793
        %vm3795 = vcmp.eq.f32.partialorder %v3792, %v3794
        %v3796 = vsel %vm3795, %v3791, inf
        %3797 = vmin.xlane.f32.xlu0 %v3796
        %v3798 = vpop.xlane.xlu0 %3797
        %v3799 = vcvt.f32.s32 %v3798
        %v3800 = vcvt.f32.s32 %v3794
        %v3801 = vshll.u32 %v3800, 16
        %v3802 = vadd.s32 %v3801, %v3799
        %v3803 = vsel %vm617, %v2857, 2147483647
        %v3804 = vand.u32 %v3803, 65535
        %v3805 = vshra.s32 %v3803, 16
        %v3806 = vcvt.s32.f32 %v3804
        %v3807 = vcvt.s32.f32 %v3805
        %3808 = vmin.xlane.f32.xlu0 %v3807
        %v3809 = vpop.xlane.xlu0 %3808
        %vm3810 = vcmp.eq.f32.partialorder %v3807, %v3809
        %v3811 = vsel %vm3810, %v3806, inf
        %3812 = vmin.xlane.f32.xlu0 %v3811
        %v3813 = vpop.xlane.xlu0 %3812
        %v3814 = vcvt.f32.s32 %v3813
        %v3815 = vcvt.f32.s32 %v3809
        %v3816 = vshll.u32 %v3815, 16
        %v3817 = vadd.s32 %v3816, %v3814
        %vm3818 = vcmp.eq.s32.totalorder %v296, %v2872
        %vm3819 = vcmp.eq.s32.totalorder %v296, %v2887
        %vm3820 = vcmp.eq.s32.totalorder %v296, %v2902
        %vm3821 = vcmp.eq.s32.totalorder %v296, %v2917
        %vm3822 = vcmp.eq.s32.totalorder %v296, %v2932
        %vm3823 = vcmp.eq.s32.totalorder %v296, %v2947
        %vm3824 = vcmp.eq.s32.totalorder %v296, %v2962
        %vm3825 = vcmp.eq.s32.totalorder %v296, %v2977
        %vm3826 = vcmp.eq.s32.totalorder %v296, %v2992
        %vm3827 = vcmp.eq.s32.totalorder %v296, %v3007
        %vm3828 = vcmp.eq.s32.totalorder %v296, %v3022
        %vm3829 = vcmp.eq.s32.totalorder %v296, %v3037
        %vm3830 = vcmp.eq.s32.totalorder %v296, %v3052
        %vm3831 = vcmp.eq.s32.totalorder %v296, %v3067
        %vm3832 = vcmp.eq.s32.totalorder %v296, %v3082
        %vm3833 = vcmp.eq.s32.totalorder %v296, %v3097
        %vm3834 = vcmp.eq.s32.totalorder %v296, %v3112
        %vm3835 = vcmp.eq.s32.totalorder %v296, %v3127
        %vm3836 = vcmp.eq.s32.totalorder %v296, %v3142
        %vm3837 = vcmp.eq.s32.totalorder %v296, %v3157
        %vm3838 = vcmp.eq.s32.totalorder %v296, %v3172
        %vm3839 = vcmp.eq.s32.totalorder %v296, %v3187
        %vm3840 = vcmp.eq.s32.totalorder %v296, %v3202
        %vm3841 = vcmp.eq.s32.totalorder %v296, %v3217
        %vm3842 = vcmp.eq.s32.totalorder %v296, %v3232
        %vm3843 = vcmp.eq.s32.totalorder %v296, %v3247
        %vm3844 = vcmp.eq.s32.totalorder %v296, %v3262
        %vm3845 = vcmp.eq.s32.totalorder %v296, %v3277
        %vm3846 = vcmp.eq.s32.totalorder %v296, %v3292
        %vm3847 = vcmp.eq.s32.totalorder %v296, %v3307
        %vm3848 = vcmp.eq.s32.totalorder %v296, %v3322
        %vm3849 = vcmp.eq.s32.totalorder %v296, %v3337
        %vm3850 = vcmp.eq.s32.totalorder %v296, %v3352
        %vm3851 = vcmp.eq.s32.totalorder %v296, %v3367
        %vm3852 = vcmp.eq.s32.totalorder %v296, %v3382
        %vm3853 = vcmp.eq.s32.totalorder %v296, %v3397
        %vm3854 = vcmp.eq.s32.totalorder %v296, %v3412
        %vm3855 = vcmp.eq.s32.totalorder %v296, %v3427
        %vm3856 = vcmp.eq.s32.totalorder %v296, %v3442
        %vm3857 = vcmp.eq.s32.totalorder %v296, %v3457
        %vm3858 = vcmp.eq.s32.totalorder %v296, %v3472
        %vm3859 = vcmp.eq.s32.totalorder %v296, %v3487
        %vm3860 = vcmp.eq.s32.totalorder %v296, %v3502
        %vm3861 = vcmp.eq.s32.totalorder %v296, %v3517
        %vm3862 = vcmp.eq.s32.totalorder %v296, %v3532
        %vm3863 = vcmp.eq.s32.totalorder %v296, %v3547
        %vm3864 = vcmp.eq.s32.totalorder %v296, %v3562
        %vm3865 = vcmp.eq.s32.totalorder %v296, %v3577
        %vm3866 = vcmp.eq.s32.totalorder %v296, %v3592
        %vm3867 = vcmp.eq.s32.totalorder %v296, %v3607
        %vm3868 = vcmp.eq.s32.totalorder %v296, %v3622
        %vm3869 = vcmp.eq.s32.totalorder %v296, %v3637
        %vm3870 = vcmp.eq.s32.totalorder %v296, %v3652
        %vm3871 = vcmp.eq.s32.totalorder %v296, %v3667
        %vm3872 = vcmp.eq.s32.totalorder %v296, %v3682
        %vm3873 = vcmp.eq.s32.totalorder %v296, %v3697
        %vm3874 = vcmp.eq.s32.totalorder %v296, %v3712
        %vm3875 = vcmp.eq.s32.totalorder %v296, %v3727
        %vm3876 = vcmp.eq.s32.totalorder %v296, %v3742
        %vm3877 = vcmp.eq.s32.totalorder %v296, %v3757
        %vm3878 = vcmp.eq.s32.totalorder %v296, %v3772
        %vm3879 = vcmp.eq.s32.totalorder %v296, %v3787
        %vm3880 = vcmp.eq.s32.totalorder %v296, %v3802
        %vm3881 = vcmp.eq.s32.totalorder %v296, %v3817
        %vm3882 = vmor %vm2090, %vm3818
        %vm3883 = vmor %vm2091, %vm3819
        %vm3884 = vmor %vm2092, %vm3820
        %vm3885 = vmor %vm2093, %vm3821
        %vm3886 = vmor %vm2094, %vm3822
        %vm3887 = vmor %vm2095, %vm3823
        %vm3888 = vmor %vm2096, %vm3824
        %vm3889 = vmor %vm2097, %vm3825
        %vm3890 = vmor %vm2098, %vm3826
        %vm3891 = vmor %vm2099, %vm3827
        %vm3892 = vmor %vm2100, %vm3828
        %vm3893 = vmor %vm2101, %vm3829
        %vm3894 = vmor %vm2102, %vm3830
        %vm3895 = vmor %vm2103, %vm3831
        %vm3896 = vmor %vm2104, %vm3832
        %vm3897 = vmor %vm2105, %vm3833
        %vm3898 = vmor %vm2106, %vm3834
        %vm3899 = vmor %vm2107, %vm3835
        %vm3900 = vmor %vm2108, %vm3836
        %vm3901 = vmor %vm2109, %vm3837
        %vm3902 = vmor %vm2110, %vm3838
        %vm3903 = vmor %vm2111, %vm3839
        %vm3904 = vmor %vm2112, %vm3840
        %vm3905 = vmor %vm2113, %vm3841
        %vm3906 = vmor %vm2114, %vm3842
        %vm3907 = vmor %vm2115, %vm3843
        %vm3908 = vmor %vm2116, %vm3844
        %vm3909 = vmor %vm2117, %vm3845
        %vm3910 = vmor %vm2118, %vm3846
        %vm3911 = vmor %vm2119, %vm3847
        %vm3912 = vmor %vm2120, %vm3848
        %vm3913 = vmor %vm2121, %vm3849
        %vm3914 = vmor %vm2122, %vm3850
        %vm3915 = vmor %vm2123, %vm3851
        %vm3916 = vmor %vm2124, %vm3852
        %vm3917 = vmor %vm2125, %vm3853
        %vm3918 = vmor %vm2126, %vm3854
        %vm3919 = vmor %vm2127, %vm3855
        %vm3920 = vmor %vm2128, %vm3856
        %vm3921 = vmor %vm2129, %vm3857
        %vm3922 = vmor %vm2130, %vm3858
        %vm3923 = vmor %vm2131, %vm3859
        %vm3924 = vmor %vm2132, %vm3860
        %vm3925 = vmor %vm2133, %vm3861
        %vm3926 = vmor %vm2134, %vm3862
        %vm3927 = vmor %vm2135, %vm3863
        %vm3928 = vmor %vm2136, %vm3864
        %vm3929 = vmor %vm2137, %vm3865
        %vm3930 = vmor %vm2138, %vm3866
        %vm3931 = vmor %vm2139, %vm3867
        %vm3932 = vmor %vm2140, %vm3868
        %vm3933 = vmor %vm2141, %vm3869
        %vm3934 = vmor %vm2142, %vm3870
        %vm3935 = vmor %vm2143, %vm3871
        %vm3936 = vmor %vm2144, %vm3872
        %vm3937 = vmor %vm2145, %vm3873
        %vm3938 = vmor %vm2146, %vm3874
        %vm3939 = vmor %vm2147, %vm3875
        %vm3940 = vmor %vm2148, %vm3876
        %vm3941 = vmor %vm2149, %vm3877
        %vm3942 = vmor %vm2150, %vm3878
        %vm3943 = vmor %vm2151, %vm3879
        %vm3944 = vmor %vm2152, %vm3880
        %vm3945 = vmor %vm2153, %vm3881
        %v3946 = vsel %vm3882, -inf, %v167
        %v3947 = vsel %vm3883, -inf, %v168
        %v3948 = vsel %vm3884, -inf, %v169
        %v3949 = vsel %vm3885, -inf, %v170
        %v3950 = vsel %vm3886, -inf, %v171
        %v3951 = vsel %vm3887, -inf, %v172
        %v3952 = vsel %vm3888, -inf, %v173
        %v3953 = vsel %vm3889, -inf, %v174
        %v3954 = vsel %vm3890, -inf, %v175
        %v3955 = vsel %vm3891, -inf, %v176
        %v3956 = vsel %vm3892, -inf, %v177
        %v3957 = vsel %vm3893, -inf, %v178
        %v3958 = vsel %vm3894, -inf, %v179
        %v3959 = vsel %vm3895, -inf, %v180
        %v3960 = vsel %vm3896, -inf, %v181
        %v3961 = vsel %vm3897, -inf, %v182
        %v3962 = vsel %vm3898, -inf, %v183
        %v3963 = vsel %vm3899, -inf, %v184
        %v3964 = vsel %vm3900, -inf, %v185
        %v3965 = vsel %vm3901, -inf, %v186
        %v3966 = vsel %vm3902, -inf, %v187
        %v3967 = vsel %vm3903, -inf, %v188
        %v3968 = vsel %vm3904, -inf, %v189
        %v3969 = vsel %vm3905, -inf, %v190
        %v3970 = vsel %vm3906, -inf, %v191
        %v3971 = vsel %vm3907, -inf, %v192
        %v3972 = vsel %vm3908, -inf, %v193
        %v3973 = vsel %vm3909, -inf, %v194
        %v3974 = vsel %vm3910, -inf, %v195
        %v3975 = vsel %vm3911, -inf, %v196
        %v3976 = vsel %vm3912, -inf, %v197
        %v3977 = vsel %vm3913, -inf, %v198
        %v3978 = vsel %vm3914, -inf, %v199
        %v3979 = vsel %vm3915, -inf, %v200
        %v3980 = vsel %vm3916, -inf, %v201
        %v3981 = vsel %vm3917, -inf, %v202
        %v3982 = vsel %vm3918, -inf, %v203
        %v3983 = vsel %vm3919, -inf, %v204
        %v3984 = vsel %vm3920, -inf, %v205
        %v3985 = vsel %vm3921, -inf, %v206
        %v3986 = vsel %vm3922, -inf, %v207
        %v3987 = vsel %vm3923, -inf, %v208
        %v3988 = vsel %vm3924, -inf, %v209
        %v3989 = vsel %vm3925, -inf, %v210
        %v3990 = vsel %vm3926, -inf, %v211
        %v3991 = vsel %vm3927, -inf, %v212
        %v3992 = vsel %vm3928, -inf, %v213
        %v3993 = vsel %vm3929, -inf, %v214
        %v3994 = vsel %vm3930, -inf, %v215
        %v3995 = vsel %vm3931, -inf, %v216
        %v3996 = vsel %vm3932, -inf, %v217
        %v3997 = vsel %vm3933, -inf, %v218
        %v3998 = vsel %vm3934, -inf, %v219
        %v3999 = vsel %vm3935, -inf, %v220
        %v4000 = vsel %vm3936, -inf, %v221
        %v4001 = vsel %vm3937, -inf, %v222
        %v4002 = vsel %vm3938, -inf, %v223
        %v4003 = vsel %vm3939, -inf, %v224
        %v4004 = vsel %vm3940, -inf, %v225
        %v4005 = vsel %vm3941, -inf, %v226
        %v4006 = vsel %vm3942, -inf, %v227
        %v4007 = vsel %vm3943, -inf, %v228
        %v4008 = vsel %vm3944, -inf, %v229
        %v4009 = vsel %vm3945, -inf, %v230
        %v4010 = vsel %vm617, %v3946, -inf
        %4011 = vmax.xlane.f32.xlu0 %v4010
        %v4012 = vpop.xlane.xlu0 %4011
        %v4013 = vsel %vm617, %v3947, -inf
        %4014 = vmax.xlane.f32.xlu0 %v4013
        %v4015 = vpop.xlane.xlu0 %4014
        %v4016 = vsel %vm617, %v3948, -inf
        %4017 = vmax.xlane.f32.xlu0 %v4016
        %v4018 = vpop.xlane.xlu0 %4017
        %v4019 = vsel %vm617, %v3949, -inf
        %4020 = vmax.xlane.f32.xlu0 %v4019
        %v4021 = vpop.xlane.xlu0 %4020
        %v4022 = vsel %vm617, %v3950, -inf
        %4023 = vmax.xlane.f32.xlu0 %v4022
        %v4024 = vpop.xlane.xlu0 %4023
        %v4025 = vsel %vm617, %v3951, -inf
        %4026 = vmax.xlane.f32.xlu0 %v4025
        %v4027 = vpop.xlane.xlu0 %4026
        %v4028 = vsel %vm617, %v3952, -inf
        %4029 = vmax.xlane.f32.xlu0 %v4028
        %v4030 = vpop.xlane.xlu0 %4029
        %v4031 = vsel %vm617, %v3953, -inf
        %4032 = vmax.xlane.f32.xlu0 %v4031
        %v4033 = vpop.xlane.xlu0 %4032
        %v4034 = vsel %vm617, %v3954, -inf
        %4035 = vmax.xlane.f32.xlu0 %v4034
        %v4036 = vpop.xlane.xlu0 %4035
        %v4037 = vsel %vm617, %v3955, -inf
        %4038 = vmax.xlane.f32.xlu0 %v4037
        %v4039 = vpop.xlane.xlu0 %4038
        %v4040 = vsel %vm617, %v3956, -inf
        %4041 = vmax.xlane.f32.xlu0 %v4040
        %v4042 = vpop.xlane.xlu0 %4041
        %v4043 = vsel %vm617, %v3957, -inf
        %4044 = vmax.xlane.f32.xlu0 %v4043
        %v4045 = vpop.xlane.xlu0 %4044
        %v4046 = vsel %vm617, %v3958, -inf
        %4047 = vmax.xlane.f32.xlu0 %v4046
        %v4048 = vpop.xlane.xlu0 %4047
        %v4049 = vsel %vm617, %v3959, -inf
        %4050 = vmax.xlane.f32.xlu0 %v4049
        %v4051 = vpop.xlane.xlu0 %4050
        %v4052 = vsel %vm617, %v3960, -inf
        %4053 = vmax.xlane.f32.xlu0 %v4052
        %v4054 = vpop.xlane.xlu0 %4053
        %v4055 = vsel %vm617, %v3961, -inf
        %4056 = vmax.xlane.f32.xlu0 %v4055
        %v4057 = vpop.xlane.xlu0 %4056
        %v4058 = vsel %vm617, %v3962, -inf
        %4059 = vmax.xlane.f32.xlu0 %v4058
        %v4060 = vpop.xlane.xlu0 %4059
        %v4061 = vsel %vm617, %v3963, -inf
        %4062 = vmax.xlane.f32.xlu0 %v4061
        %v4063 = vpop.xlane.xlu0 %4062
        %v4064 = vsel %vm617, %v3964, -inf
        %4065 = vmax.xlane.f32.xlu0 %v4064
        %v4066 = vpop.xlane.xlu0 %4065
        %v4067 = vsel %vm617, %v3965, -inf
        %4068 = vmax.xlane.f32.xlu0 %v4067
        %v4069 = vpop.xlane.xlu0 %4068
        %v4070 = vsel %vm617, %v3966, -inf
        %4071 = vmax.xlane.f32.xlu0 %v4070
        %v4072 = vpop.xlane.xlu0 %4071
        %v4073 = vsel %vm617, %v3967, -inf
        %4074 = vmax.xlane.f32.xlu0 %v4073
        %v4075 = vpop.xlane.xlu0 %4074
        %v4076 = vsel %vm617, %v3968, -inf
        %4077 = vmax.xlane.f32.xlu0 %v4076
        %v4078 = vpop.xlane.xlu0 %4077
        %v4079 = vsel %vm617, %v3969, -inf
        %4080 = vmax.xlane.f32.xlu0 %v4079
        %v4081 = vpop.xlane.xlu0 %4080
        %v4082 = vsel %vm617, %v3970, -inf
        %4083 = vmax.xlane.f32.xlu0 %v4082
        %v4084 = vpop.xlane.xlu0 %4083
        %v4085 = vsel %vm617, %v3971, -inf
        %4086 = vmax.xlane.f32.xlu0 %v4085
        %v4087 = vpop.xlane.xlu0 %4086
        %v4088 = vsel %vm617, %v3972, -inf
        %4089 = vmax.xlane.f32.xlu0 %v4088
        %v4090 = vpop.xlane.xlu0 %4089
        %v4091 = vsel %vm617, %v3973, -inf
        %4092 = vmax.xlane.f32.xlu0 %v4091
        %v4093 = vpop.xlane.xlu0 %4092
        %v4094 = vsel %vm617, %v3974, -inf
        %4095 = vmax.xlane.f32.xlu0 %v4094
        %v4096 = vpop.xlane.xlu0 %4095
        %v4097 = vsel %vm617, %v3975, -inf
        %4098 = vmax.xlane.f32.xlu0 %v4097
        %v4099 = vpop.xlane.xlu0 %4098
        %v4100 = vsel %vm617, %v3976, -inf
        %4101 = vmax.xlane.f32.xlu0 %v4100
        %v4102 = vpop.xlane.xlu0 %4101
        %v4103 = vsel %vm617, %v3977, -inf
        %4104 = vmax.xlane.f32.xlu0 %v4103
        %v4105 = vpop.xlane.xlu0 %4104
        %v4106 = vsel %vm617, %v3978, -inf
        %4107 = vmax.xlane.f32.xlu0 %v4106
        %v4108 = vpop.xlane.xlu0 %4107
        %v4109 = vsel %vm617, %v3979, -inf
        %4110 = vmax.xlane.f32.xlu0 %v4109
        %v4111 = vpop.xlane.xlu0 %4110
        %v4112 = vsel %vm617, %v3980, -inf
        %4113 = vmax.xlane.f32.xlu0 %v4112
        %v4114 = vpop.xlane.xlu0 %4113
        %v4115 = vsel %vm617, %v3981, -inf
        %4116 = vmax.xlane.f32.xlu0 %v4115
        %v4117 = vpop.xlane.xlu0 %4116
        %v4118 = vsel %vm617, %v3982, -inf
        %4119 = vmax.xlane.f32.xlu0 %v4118
        %v4120 = vpop.xlane.xlu0 %4119
        %v4121 = vsel %vm617, %v3983, -inf
        %4122 = vmax.xlane.f32.xlu0 %v4121
        %v4123 = vpop.xlane.xlu0 %4122
        %v4124 = vsel %vm617, %v3984, -inf
        %4125 = vmax.xlane.f32.xlu0 %v4124
        %v4126 = vpop.xlane.xlu0 %4125
        %v4127 = vsel %vm617, %v3985, -inf
        %4128 = vmax.xlane.f32.xlu0 %v4127
        %v4129 = vpop.xlane.xlu0 %4128
        %v4130 = vsel %vm617, %v3986, -inf
        %4131 = vmax.xlane.f32.xlu0 %v4130
        %v4132 = vpop.xlane.xlu0 %4131
        %v4133 = vsel %vm617, %v3987, -inf
        %4134 = vmax.xlane.f32.xlu0 %v4133
        %v4135 = vpop.xlane.xlu0 %4134
        %v4136 = vsel %vm617, %v3988, -inf
        %4137 = vmax.xlane.f32.xlu0 %v4136
        %v4138 = vpop.xlane.xlu0 %4137
        %v4139 = vsel %vm617, %v3989, -inf
        %4140 = vmax.xlane.f32.xlu0 %v4139
        %v4141 = vpop.xlane.xlu0 %4140
        %v4142 = vsel %vm617, %v3990, -inf
        %4143 = vmax.xlane.f32.xlu0 %v4142
        %v4144 = vpop.xlane.xlu0 %4143
        %v4145 = vsel %vm617, %v3991, -inf
        %4146 = vmax.xlane.f32.xlu0 %v4145
        %v4147 = vpop.xlane.xlu0 %4146
        %v4148 = vsel %vm617, %v3992, -inf
        %4149 = vmax.xlane.f32.xlu0 %v4148
        %v4150 = vpop.xlane.xlu0 %4149
        %v4151 = vsel %vm617, %v3993, -inf
        %4152 = vmax.xlane.f32.xlu0 %v4151
        %v4153 = vpop.xlane.xlu0 %4152
        %v4154 = vsel %vm617, %v3994, -inf
        %4155 = vmax.xlane.f32.xlu0 %v4154
        %v4156 = vpop.xlane.xlu0 %4155
        %v4157 = vsel %vm617, %v3995, -inf
        %4158 = vmax.xlane.f32.xlu0 %v4157
        %v4159 = vpop.xlane.xlu0 %4158
        %v4160 = vsel %vm617, %v3996, -inf
        %4161 = vmax.xlane.f32.xlu0 %v4160
        %v4162 = vpop.xlane.xlu0 %4161
        %v4163 = vsel %vm617, %v3997, -inf
        %4164 = vmax.xlane.f32.xlu0 %v4163
        %v4165 = vpop.xlane.xlu0 %4164
        %v4166 = vsel %vm617, %v3998, -inf
        %4167 = vmax.xlane.f32.xlu0 %v4166
        %v4168 = vpop.xlane.xlu0 %4167
        %v4169 = vsel %vm617, %v3999, -inf
        %4170 = vmax.xlane.f32.xlu0 %v4169
        %v4171 = vpop.xlane.xlu0 %4170
        %v4172 = vsel %vm617, %v4000, -inf
        %4173 = vmax.xlane.f32.xlu0 %v4172
        %v4174 = vpop.xlane.xlu0 %4173
        %v4175 = vsel %vm617, %v4001, -inf
        %4176 = vmax.xlane.f32.xlu0 %v4175
        %v4177 = vpop.xlane.xlu0 %4176
        %v4178 = vsel %vm617, %v4002, -inf
        %4179 = vmax.xlane.f32.xlu0 %v4178
        %v4180 = vpop.xlane.xlu0 %4179
        %v4181 = vsel %vm617, %v4003, -inf
        %4182 = vmax.xlane.f32.xlu0 %v4181
        %v4183 = vpop.xlane.xlu0 %4182
        %v4184 = vsel %vm617, %v4004, -inf
        %4185 = vmax.xlane.f32.xlu0 %v4184
        %v4186 = vpop.xlane.xlu0 %4185
        %v4187 = vsel %vm617, %v4005, -inf
        %4188 = vmax.xlane.f32.xlu0 %v4187
        %v4189 = vpop.xlane.xlu0 %4188
        %v4190 = vsel %vm617, %v4006, -inf
        %4191 = vmax.xlane.f32.xlu0 %v4190
        %v4192 = vpop.xlane.xlu0 %4191
        %v4193 = vsel %vm617, %v4007, -inf
        %4194 = vmax.xlane.f32.xlu0 %v4193
        %v4195 = vpop.xlane.xlu0 %4194
        %v4196 = vsel %vm617, %v4008, -inf
        %4197 = vmax.xlane.f32.xlu0 %v4196
        %v4198 = vpop.xlane.xlu0 %4197
        %v4199 = vsel %vm617, %v4009, -inf
        %4200 = vmax.xlane.f32.xlu0 %v4199
        %v4201 = vpop.xlane.xlu0 %4200
        %v4202 = vsub.f32 %v812, %v4012
        %v4203 = vsub.f32 %v815, %v4015
        %v4204 = vsub.f32 %v818, %v4018
        %v4205 = vsub.f32 %v821, %v4021
        %v4206 = vsub.f32 %v824, %v4024
        %v4207 = vsub.f32 %v827, %v4027
        %v4208 = vsub.f32 %v830, %v4030
        %v4209 = vsub.f32 %v833, %v4033
        %v4210 = vsub.f32 %v836, %v4036
        %v4211 = vsub.f32 %v839, %v4039
        %v4212 = vsub.f32 %v842, %v4042
        %v4213 = vsub.f32 %v845, %v4045
        %v4214 = vsub.f32 %v848, %v4048
        %v4215 = vsub.f32 %v851, %v4051
        %v4216 = vsub.f32 %v854, %v4054
        %v4217 = vsub.f32 %v857, %v4057
        %v4218 = vsub.f32 %v860, %v4060
        %v4219 = vsub.f32 %v863, %v4063
        %v4220 = vsub.f32 %v866, %v4066
        %v4221 = vsub.f32 %v869, %v4069
        %v4222 = vsub.f32 %v872, %v4072
        %v4223 = vsub.f32 %v875, %v4075
        %v4224 = vsub.f32 %v878, %v4078
        %v4225 = vsub.f32 %v881, %v4081
        %v4226 = vsub.f32 %v884, %v4084
        %v4227 = vsub.f32 %v887, %v4087
        %v4228 = vsub.f32 %v890, %v4090
        %v4229 = vsub.f32 %v893, %v4093
        %v4230 = vsub.f32 %v896, %v4096
        %v4231 = vsub.f32 %v899, %v4099
        %v4232 = vsub.f32 %v902, %v4102
        %v4233 = vsub.f32 %v905, %v4105
        %v4234 = vsub.f32 %v908, %v4108
        %v4235 = vsub.f32 %v911, %v4111
        %v4236 = vsub.f32 %v914, %v4114
        %v4237 = vsub.f32 %v917, %v4117
        %v4238 = vsub.f32 %v920, %v4120
        %v4239 = vsub.f32 %v923, %v4123
        %v4240 = vsub.f32 %v926, %v4126
        %v4241 = vsub.f32 %v929, %v4129
        %v4242 = vsub.f32 %v932, %v4132
        %v4243 = vsub.f32 %v935, %v4135
        %v4244 = vsub.f32 %v938, %v4138
        %v4245 = vsub.f32 %v941, %v4141
        %v4246 = vsub.f32 %v944, %v4144
        %v4247 = vsub.f32 %v947, %v4147
        %v4248 = vsub.f32 %v950, %v4150
        %v4249 = vsub.f32 %v953, %v4153
        %v4250 = vsub.f32 %v956, %v4156
        %v4251 = vsub.f32 %v959, %v4159
        %v4252 = vsub.f32 %v962, %v4162
        %v4253 = vsub.f32 %v965, %v4165
        %v4254 = vsub.f32 %v968, %v4168
        %v4255 = vsub.f32 %v971, %v4171
        %v4256 = vsub.f32 %v974, %v4174
        %v4257 = vsub.f32 %v977, %v4177
        %v4258 = vsub.f32 %v980, %v4180
        %v4259 = vsub.f32 %v983, %v4183
        %v4260 = vsub.f32 %v986, %v4186
        %v4261 = vsub.f32 %v989, %v4189
        %v4262 = vsub.f32 %v992, %v4192
        %v4263 = vsub.f32 %v995, %v4195
        %v4264 = vsub.f32 %v998, %v4198
        %v4265 = vsub.f32 %v1001, %v4201
        %v4266 = vsub.f32 0.0, %v2538
        %v4267 = vsub.f32 0.0, %v2539
        %v4268 = vsub.f32 0.0, %v2540
        %v4269 = vsub.f32 0.0, %v2541
        %v4270 = vsub.f32 0.0, %v2542
        %v4271 = vsub.f32 0.0, %v2543
        %v4272 = vsub.f32 0.0, %v2544
        %v4273 = vsub.f32 0.0, %v2545
        %v4274 = vsub.f32 0.0, %v2546
        %v4275 = vsub.f32 0.0, %v2547
        %v4276 = vsub.f32 0.0, %v2548
        %v4277 = vsub.f32 0.0, %v2549
        %v4278 = vsub.f32 0.0, %v2550
        %v4279 = vsub.f32 0.0, %v2551
        %v4280 = vsub.f32 0.0, %v2552
        %v4281 = vsub.f32 0.0, %v2553
        %v4282 = vsub.f32 0.0, %v2554
        %v4283 = vsub.f32 0.0, %v2555
        %v4284 = vsub.f32 0.0, %v2556
        %v4285 = vsub.f32 0.0, %v2557
        %v4286 = vsub.f32 0.0, %v2558
        %v4287 = vsub.f32 0.0, %v2559
        %v4288 = vsub.f32 0.0, %v2560
        %v4289 = vsub.f32 0.0, %v2561
        %v4290 = vsub.f32 0.0, %v2562
        %v4291 = vsub.f32 0.0, %v2563
        %v4292 = vsub.f32 0.0, %v2564
        %v4293 = vsub.f32 0.0, %v2565
        %v4294 = vsub.f32 0.0, %v2566
        %v4295 = vsub.f32 0.0, %v2567
        %v4296 = vsub.f32 0.0, %v2568
        %v4297 = vsub.f32 0.0, %v2569
        %v4298 = vsub.f32 0.0, %v2570
        %v4299 = vsub.f32 0.0, %v2571
        %v4300 = vsub.f32 0.0, %v2572
        %v4301 = vsub.f32 0.0, %v2573
        %v4302 = vsub.f32 0.0, %v2574
        %v4303 = vsub.f32 0.0, %v2575
        %v4304 = vsub.f32 0.0, %v2576
        %v4305 = vsub.f32 0.0, %v2577
        %v4306 = vsub.f32 0.0, %v2578
        %v4307 = vsub.f32 0.0, %v2579
        %v4308 = vsub.f32 0.0, %v2580
        %v4309 = vsub.f32 0.0, %v2581
        %v4310 = vsub.f32 0.0, %v2582
        %v4311 = vsub.f32 0.0, %v2583
        %v4312 = vsub.f32 0.0, %v2584
        %v4313 = vsub.f32 0.0, %v2585
        %v4314 = vsub.f32 0.0, %v2586
        %v4315 = vsub.f32 0.0, %v2587
        %v4316 = vsub.f32 0.0, %v2588
        %v4317 = vsub.f32 0.0, %v2589
        %v4318 = vsub.f32 0.0, %v2590
        %v4319 = vsub.f32 0.0, %v2591
        %v4320 = vsub.f32 0.0, %v2592
        %v4321 = vsub.f32 0.0, %v2593
        %v4322 = vsub.f32 0.0, %v2594
        %v4323 = vsub.f32 0.0, %v2595
        %v4324 = vsub.f32 0.0, %v2596
        %v4325 = vsub.f32 0.0, %v2597
        %v4326 = vsub.f32 0.0, %v2598
        %v4327 = vsub.f32 0.0, %v2599
        %v4328 = vsub.f32 0.0, %v2600
        %v4329 = vsub.f32 0.0, %v2601
        %v4330 = vmax.f32 %v4202, 1e-08
        %v4331 = vmax.f32 %v4203, 1e-08
        %v4332 = vmax.f32 %v4204, 1e-08
        %v4333 = vmax.f32 %v4205, 1e-08
        %v4334 = vmax.f32 %v4206, 1e-08
        %v4335 = vmax.f32 %v4207, 1e-08
        %v4336 = vmax.f32 %v4208, 1e-08
        %v4337 = vmax.f32 %v4209, 1e-08
        %v4338 = vmax.f32 %v4210, 1e-08
        %v4339 = vmax.f32 %v4211, 1e-08
        %v4340 = vmax.f32 %v4212, 1e-08
        %v4341 = vmax.f32 %v4213, 1e-08
        %v4342 = vmax.f32 %v4214, 1e-08
        %v4343 = vmax.f32 %v4215, 1e-08
        %v4344 = vmax.f32 %v4216, 1e-08
        %v4345 = vmax.f32 %v4217, 1e-08
        %v4346 = vmax.f32 %v4218, 1e-08
        %v4347 = vmax.f32 %v4219, 1e-08
        %v4348 = vmax.f32 %v4220, 1e-08
        %v4349 = vmax.f32 %v4221, 1e-08
        %v4350 = vmax.f32 %v4222, 1e-08
        %v4351 = vmax.f32 %v4223, 1e-08
        %v4352 = vmax.f32 %v4224, 1e-08
        %v4353 = vmax.f32 %v4225, 1e-08
        %v4354 = vmax.f32 %v4226, 1e-08
        %v4355 = vmax.f32 %v4227, 1e-08
        %v4356 = vmax.f32 %v4228, 1e-08
        %v4357 = vmax.f32 %v4229, 1e-08
        %v4358 = vmax.f32 %v4230, 1e-08
        %v4359 = vmax.f32 %v4231, 1e-08
        %v4360 = vmax.f32 %v4232, 1e-08
        %v4361 = vmax.f32 %v4233, 1e-08
        %v4362 = vmax.f32 %v4234, 1e-08
        %v4363 = vmax.f32 %v4235, 1e-08
        %v4364 = vmax.f32 %v4236, 1e-08
        %v4365 = vmax.f32 %v4237, 1e-08
        %v4366 = vmax.f32 %v4238, 1e-08
        %v4367 = vmax.f32 %v4239, 1e-08
        %v4368 = vmax.f32 %v4240, 1e-08
        %v4369 = vmax.f32 %v4241, 1e-08
        %v4370 = vmax.f32 %v4242, 1e-08
        %v4371 = vmax.f32 %v4243, 1e-08
        %v4372 = vmax.f32 %v4244, 1e-08
        %v4373 = vmax.f32 %v4245, 1e-08
        %v4374 = vmax.f32 %v4246, 1e-08
        %v4375 = vmax.f32 %v4247, 1e-08
        %v4376 = vmax.f32 %v4248, 1e-08
        %v4377 = vmax.f32 %v4249, 1e-08
        %v4378 = vmax.f32 %v4250, 1e-08
        %v4379 = vmax.f32 %v4251, 1e-08
        %v4380 = vmax.f32 %v4252, 1e-08
        %v4381 = vmax.f32 %v4253, 1e-08
        %v4382 = vmax.f32 %v4254, 1e-08
        %v4383 = vmax.f32 %v4255, 1e-08
        %v4384 = vmax.f32 %v4256, 1e-08
        %v4385 = vmax.f32 %v4257, 1e-08
        %v4386 = vmax.f32 %v4258, 1e-08
        %v4387 = vmax.f32 %v4259, 1e-08
        %v4388 = vmax.f32 %v4260, 1e-08
        %v4389 = vmax.f32 %v4261, 1e-08
        %v4390 = vmax.f32 %v4262, 1e-08
        %v4391 = vmax.f32 %v4263, 1e-08
        %v4392 = vmax.f32 %v4264, 1e-08
        %v4393 = vmax.f32 %v4265, 1e-08
        %v4394 = vrcp.pop %v4330
        %v4395 = vmul.f32 %v4266, %v4394
        %v4396 = vrcp.pop %v4331
        %v4397 = vmul.f32 %v4267, %v4396
        %v4398 = vrcp.pop %v4332
        %v4399 = vmul.f32 %v4268, %v4398
        %v4400 = vrcp.pop %v4333
        %v4401 = vmul.f32 %v4269, %v4400
        %v4402 = vrcp.pop %v4334
        %v4403 = vmul.f32 %v4270, %v4402
        %v4404 = vrcp.pop %v4335
        %v4405 = vmul.f32 %v4271, %v4404
        %v4406 = vrcp.pop %v4336
        %v4407 = vmul.f32 %v4272, %v4406
        %v4408 = vrcp.pop %v4337
        %v4409 = vmul.f32 %v4273, %v4408
        %v4410 = vrcp.pop %v4338
        %v4411 = vmul.f32 %v4274, %v4410
        %v4412 = vrcp.pop %v4339
        %v4413 = vmul.f32 %v4275, %v4412
        %v4414 = vrcp.pop %v4340
        %v4415 = vmul.f32 %v4276, %v4414
        %v4416 = vrcp.pop %v4341
        %v4417 = vmul.f32 %v4277, %v4416
        %v4418 = vrcp.pop %v4342
        %v4419 = vmul.f32 %v4278, %v4418
        %v4420 = vrcp.pop %v4343
        %v4421 = vmul.f32 %v4279, %v4420
        %v4422 = vrcp.pop %v4344
        %v4423 = vmul.f32 %v4280, %v4422
        %v4424 = vrcp.pop %v4345
        %v4425 = vmul.f32 %v4281, %v4424
        %v4426 = vrcp.pop %v4346
        %v4427 = vmul.f32 %v4282, %v4426
        %v4428 = vrcp.pop %v4347
        %v4429 = vmul.f32 %v4283, %v4428
        %v4430 = vrcp.pop %v4348
        %v4431 = vmul.f32 %v4284, %v4430
        %v4432 = vrcp.pop %v4349
        %v4433 = vmul.f32 %v4285, %v4432
        %v4434 = vrcp.pop %v4350
        %v4435 = vmul.f32 %v4286, %v4434
        %v4436 = vrcp.pop %v4351
        %v4437 = vmul.f32 %v4287, %v4436
        %v4438 = vrcp.pop %v4352
        %v4439 = vmul.f32 %v4288, %v4438
        %v4440 = vrcp.pop %v4353
        %v4441 = vmul.f32 %v4289, %v4440
        %v4442 = vrcp.pop %v4354
        %v4443 = vmul.f32 %v4290, %v4442
        %v4444 = vrcp.pop %v4355
        %v4445 = vmul.f32 %v4291, %v4444
        %v4446 = vrcp.pop %v4356
        %v4447 = vmul.f32 %v4292, %v4446
        %v4448 = vrcp.pop %v4357
        %v4449 = vmul.f32 %v4293, %v4448
        %v4450 = vrcp.pop %v4358
        %v4451 = vmul.f32 %v4294, %v4450
        %v4452 = vrcp.pop %v4359
        %v4453 = vmul.f32 %v4295, %v4452
        %v4454 = vrcp.pop %v4360
        %v4455 = vmul.f32 %v4296, %v4454
        %v4456 = vrcp.pop %v4361
        %v4457 = vmul.f32 %v4297, %v4456
        %v4458 = vrcp.pop %v4362
        %v4459 = vmul.f32 %v4298, %v4458
        %v4460 = vrcp.pop %v4363
        %v4461 = vmul.f32 %v4299, %v4460
        %v4462 = vrcp.pop %v4364
        %v4463 = vmul.f32 %v4300, %v4462
        %v4464 = vrcp.pop %v4365
        %v4465 = vmul.f32 %v4301, %v4464
        %v4466 = vrcp.pop %v4366
        %v4467 = vmul.f32 %v4302, %v4466
        %v4468 = vrcp.pop %v4367
        %v4469 = vmul.f32 %v4303, %v4468
        %v4470 = vrcp.pop %v4368
        %v4471 = vmul.f32 %v4304, %v4470
        %v4472 = vrcp.pop %v4369
        %v4473 = vmul.f32 %v4305, %v4472
        %v4474 = vrcp.pop %v4370
        %v4475 = vmul.f32 %v4306, %v4474
        %v4476 = vrcp.pop %v4371
        %v4477 = vmul.f32 %v4307, %v4476
        %v4478 = vrcp.pop %v4372
        %v4479 = vmul.f32 %v4308, %v4478
        %v4480 = vrcp.pop %v4373
        %v4481 = vmul.f32 %v4309, %v4480
        %v4482 = vrcp.pop %v4374
        %v4483 = vmul.f32 %v4310, %v4482
        %v4484 = vrcp.pop %v4375
        %v4485 = vmul.f32 %v4311, %v4484
        %v4486 = vrcp.pop %v4376
        %v4487 = vmul.f32 %v4312, %v4486
        %v4488 = vrcp.pop %v4377
        %v4489 = vmul.f32 %v4313, %v4488
        %v4490 = vrcp.pop %v4378
        %v4491 = vmul.f32 %v4314, %v4490
        %v4492 = vrcp.pop %v4379
        %v4493 = vmul.f32 %v4315, %v4492
        %v4494 = vrcp.pop %v4380
        %v4495 = vmul.f32 %v4316, %v4494
        %v4496 = vrcp.pop %v4381
        %v4497 = vmul.f32 %v4317, %v4496
        %v4498 = vrcp.pop %v4382
        %v4499 = vmul.f32 %v4318, %v4498
        %v4500 = vrcp.pop %v4383
        %v4501 = vmul.f32 %v4319, %v4500
        %v4502 = vrcp.pop %v4384
        %v4503 = vmul.f32 %v4320, %v4502
        %v4504 = vrcp.pop %v4385
        %v4505 = vmul.f32 %v4321, %v4504
        %v4506 = vrcp.pop %v4386
        %v4507 = vmul.f32 %v4322, %v4506
        %v4508 = vrcp.pop %v4387
        %v4509 = vmul.f32 %v4323, %v4508
        %v4510 = vrcp.pop %v4388
        %v4511 = vmul.f32 %v4324, %v4510
        %v4512 = vrcp.pop %v4389
        %v4513 = vmul.f32 %v4325, %v4512
        %v4514 = vrcp.pop %v4390
        %v4515 = vmul.f32 %v4326, %v4514
        %v4516 = vrcp.pop %v4391
        %v4517 = vmul.f32 %v4327, %v4516
        %v4518 = vrcp.pop %v4392
        %v4519 = vmul.f32 %v4328, %v4518
        %v4520 = vrcp.pop %v4393
        %v4521 = vmul.f32 %v4329, %v4520
        %4523 = vset.pattern.permute.xlu0 0
        %4524 = vperm.xlu0 %4523, %v4395
        %v4525 = vpop.permute.xlu0 %4524
        %4528 = vset.pattern.permute.xlu0 0
        %4529 = vperm.xlu0 %4528, %v4397
        %v4530 = vpop.permute.xlu0 %4529
        %4533 = vset.pattern.permute.xlu0 0
        %4534 = vperm.xlu0 %4533, %v4399
        %v4535 = vpop.permute.xlu0 %4534
        %4538 = vset.pattern.permute.xlu0 0
        %4539 = vperm.xlu0 %4538, %v4401
        %v4540 = vpop.permute.xlu0 %4539
        %4543 = vset.pattern.permute.xlu0 0
        %4544 = vperm.xlu0 %4543, %v4403
        %v4545 = vpop.permute.xlu0 %4544
        %4548 = vset.pattern.permute.xlu0 0
        %4549 = vperm.xlu0 %4548, %v4405
        %v4550 = vpop.permute.xlu0 %4549
        %4553 = vset.pattern.permute.xlu0 0
        %4554 = vperm.xlu0 %4553, %v4407
        %v4555 = vpop.permute.xlu0 %4554
        %4558 = vset.pattern.permute.xlu0 0
        %4559 = vperm.xlu0 %4558, %v4409
        %v4560 = vpop.permute.xlu0 %4559
        %4563 = vset.pattern.permute.xlu0 0
        %4564 = vperm.xlu0 %4563, %v4411
        %v4565 = vpop.permute.xlu0 %4564
        %4568 = vset.pattern.permute.xlu0 0
        %4569 = vperm.xlu0 %4568, %v4413
        %v4570 = vpop.permute.xlu0 %4569
        %4573 = vset.pattern.permute.xlu0 0
        %4574 = vperm.xlu0 %4573, %v4415
        %v4575 = vpop.permute.xlu0 %4574
        %4578 = vset.pattern.permute.xlu0 0
        %4579 = vperm.xlu0 %4578, %v4417
        %v4580 = vpop.permute.xlu0 %4579
        %4583 = vset.pattern.permute.xlu0 0
        %4584 = vperm.xlu0 %4583, %v4419
        %v4585 = vpop.permute.xlu0 %4584
        %4588 = vset.pattern.permute.xlu0 0
        %4589 = vperm.xlu0 %4588, %v4421
        %v4590 = vpop.permute.xlu0 %4589
        %4593 = vset.pattern.permute.xlu0 0
        %4594 = vperm.xlu0 %4593, %v4423
        %v4595 = vpop.permute.xlu0 %4594
        %4598 = vset.pattern.permute.xlu0 0
        %4599 = vperm.xlu0 %4598, %v4425
        %v4600 = vpop.permute.xlu0 %4599
        %4603 = vset.pattern.permute.xlu0 0
        %4604 = vperm.xlu0 %4603, %v4427
        %v4605 = vpop.permute.xlu0 %4604
        %4608 = vset.pattern.permute.xlu0 0
        %4609 = vperm.xlu0 %4608, %v4429
        %v4610 = vpop.permute.xlu0 %4609
        %4613 = vset.pattern.permute.xlu0 0
        %4614 = vperm.xlu0 %4613, %v4431
        %v4615 = vpop.permute.xlu0 %4614
        %4618 = vset.pattern.permute.xlu0 0
        %4619 = vperm.xlu0 %4618, %v4433
        %v4620 = vpop.permute.xlu0 %4619
        %4623 = vset.pattern.permute.xlu0 0
        %4624 = vperm.xlu0 %4623, %v4435
        %v4625 = vpop.permute.xlu0 %4624
        %4628 = vset.pattern.permute.xlu0 0
        %4629 = vperm.xlu0 %4628, %v4437
        %v4630 = vpop.permute.xlu0 %4629
        %4633 = vset.pattern.permute.xlu0 0
        %4634 = vperm.xlu0 %4633, %v4439
        %v4635 = vpop.permute.xlu0 %4634
        %4638 = vset.pattern.permute.xlu0 0
        %4639 = vperm.xlu0 %4638, %v4441
        %v4640 = vpop.permute.xlu0 %4639
        %4643 = vset.pattern.permute.xlu0 0
        %4644 = vperm.xlu0 %4643, %v4443
        %v4645 = vpop.permute.xlu0 %4644
        %4648 = vset.pattern.permute.xlu0 0
        %4649 = vperm.xlu0 %4648, %v4445
        %v4650 = vpop.permute.xlu0 %4649
        %4653 = vset.pattern.permute.xlu0 0
        %4654 = vperm.xlu0 %4653, %v4447
        %v4655 = vpop.permute.xlu0 %4654
        %4658 = vset.pattern.permute.xlu0 0
        %4659 = vperm.xlu0 %4658, %v4449
        %v4660 = vpop.permute.xlu0 %4659
        %4663 = vset.pattern.permute.xlu0 0
        %4664 = vperm.xlu0 %4663, %v4451
        %v4665 = vpop.permute.xlu0 %4664
        %4668 = vset.pattern.permute.xlu0 0
        %4669 = vperm.xlu0 %4668, %v4453
        %v4670 = vpop.permute.xlu0 %4669
        %4673 = vset.pattern.permute.xlu0 0
        %4674 = vperm.xlu0 %4673, %v4455
        %v4675 = vpop.permute.xlu0 %4674
        %4678 = vset.pattern.permute.xlu0 0
        %4679 = vperm.xlu0 %4678, %v4457
        %v4680 = vpop.permute.xlu0 %4679
        %4683 = vset.pattern.permute.xlu0 0
        %4684 = vperm.xlu0 %4683, %v4459
        %v4685 = vpop.permute.xlu0 %4684
        %4688 = vset.pattern.permute.xlu0 0
        %4689 = vperm.xlu0 %4688, %v4461
        %v4690 = vpop.permute.xlu0 %4689
        %4693 = vset.pattern.permute.xlu0 0
        %4694 = vperm.xlu0 %4693, %v4463
        %v4695 = vpop.permute.xlu0 %4694
        %4698 = vset.pattern.permute.xlu0 0
        %4699 = vperm.xlu0 %4698, %v4465
        %v4700 = vpop.permute.xlu0 %4699
        %4703 = vset.pattern.permute.xlu0 0
        %4704 = vperm.xlu0 %4703, %v4467
        %v4705 = vpop.permute.xlu0 %4704
        %4708 = vset.pattern.permute.xlu0 0
        %4709 = vperm.xlu0 %4708, %v4469
        %v4710 = vpop.permute.xlu0 %4709
        %4713 = vset.pattern.permute.xlu0 0
        %4714 = vperm.xlu0 %4713, %v4471
        %v4715 = vpop.permute.xlu0 %4714
        %4718 = vset.pattern.permute.xlu0 0
        %4719 = vperm.xlu0 %4718, %v4473
        %v4720 = vpop.permute.xlu0 %4719
        %4723 = vset.pattern.permute.xlu0 0
        %4724 = vperm.xlu0 %4723, %v4475
        %v4725 = vpop.permute.xlu0 %4724
        %4728 = vset.pattern.permute.xlu0 0
        %4729 = vperm.xlu0 %4728, %v4477
        %v4730 = vpop.permute.xlu0 %4729
        %4733 = vset.pattern.permute.xlu0 0
        %4734 = vperm.xlu0 %4733, %v4479
        %v4735 = vpop.permute.xlu0 %4734
        %4738 = vset.pattern.permute.xlu0 0
        %4739 = vperm.xlu0 %4738, %v4481
        %v4740 = vpop.permute.xlu0 %4739
        %4743 = vset.pattern.permute.xlu0 0
        %4744 = vperm.xlu0 %4743, %v4483
        %v4745 = vpop.permute.xlu0 %4744
        %4748 = vset.pattern.permute.xlu0 0
        %4749 = vperm.xlu0 %4748, %v4485
        %v4750 = vpop.permute.xlu0 %4749
        %4753 = vset.pattern.permute.xlu0 0
        %4754 = vperm.xlu0 %4753, %v4487
        %v4755 = vpop.permute.xlu0 %4754
        %4758 = vset.pattern.permute.xlu0 0
        %4759 = vperm.xlu0 %4758, %v4489
        %v4760 = vpop.permute.xlu0 %4759
        %4763 = vset.pattern.permute.xlu0 0
        %4764 = vperm.xlu0 %4763, %v4491
        %v4765 = vpop.permute.xlu0 %4764
        %4768 = vset.pattern.permute.xlu0 0
        %4769 = vperm.xlu0 %4768, %v4493
        %v4770 = vpop.permute.xlu0 %4769
        %4773 = vset.pattern.permute.xlu0 0
        %4774 = vperm.xlu0 %4773, %v4495
        %v4775 = vpop.permute.xlu0 %4774
        %4778 = vset.pattern.permute.xlu0 0
        %4779 = vperm.xlu0 %4778, %v4497
        %v4780 = vpop.permute.xlu0 %4779
        %4783 = vset.pattern.permute.xlu0 0
        %4784 = vperm.xlu0 %4783, %v4499
        %v4785 = vpop.permute.xlu0 %4784
        %4788 = vset.pattern.permute.xlu0 0
        %4789 = vperm.xlu0 %4788, %v4501
        %v4790 = vpop.permute.xlu0 %4789
        %4793 = vset.pattern.permute.xlu0 0
        %4794 = vperm.xlu0 %4793, %v4503
        %v4795 = vpop.permute.xlu0 %4794
        %4798 = vset.pattern.permute.xlu0 0
        %4799 = vperm.xlu0 %4798, %v4505
        %v4800 = vpop.permute.xlu0 %4799
        %4803 = vset.pattern.permute.xlu0 0
        %4804 = vperm.xlu0 %4803, %v4507
        %v4805 = vpop.permute.xlu0 %4804
        %4808 = vset.pattern.permute.xlu0 0
        %4809 = vperm.xlu0 %4808, %v4509
        %v4810 = vpop.permute.xlu0 %4809
        %4813 = vset.pattern.permute.xlu0 0
        %4814 = vperm.xlu0 %4813, %v4511
        %v4815 = vpop.permute.xlu0 %4814
        %4818 = vset.pattern.permute.xlu0 0
        %4819 = vperm.xlu0 %4818, %v4513
        %v4820 = vpop.permute.xlu0 %4819
        %4823 = vset.pattern.permute.xlu0 0
        %4824 = vperm.xlu0 %4823, %v4515
        %v4825 = vpop.permute.xlu0 %4824
        %4828 = vset.pattern.permute.xlu0 0
        %4829 = vperm.xlu0 %4828, %v4517
        %v4830 = vpop.permute.xlu0 %4829
        %4833 = vset.pattern.permute.xlu0 0
        %4834 = vperm.xlu0 %4833, %v4519
        %v4835 = vpop.permute.xlu0 %4834
        %4838 = vset.pattern.permute.xlu0 0
        %4839 = vperm.xlu0 %4838, %v4521
        %v4840 = vpop.permute.xlu0 %4839
        %4842 = vxpose.xlu0.b32.start [1/16] %v4525, 128
        %4843 = vxpose.xlu0.b32.cont [2/16] %v4530, 128
        %4844 = vxpose.xlu0.b32.cont [3/16] %v4535, 128
        %4845 = vxpose.xlu0.b32.cont [4/16] %v4540, 128
        %4846 = vxpose.xlu0.b32.cont [5/16] %v4545, 128
        %4847 = vxpose.xlu0.b32.cont [6/16] %v4550, 128
        %4848 = vxpose.xlu0.b32.cont [7/16] %v4555, 128
        %4849 = vxpose.xlu0.b32.cont [8/16] %v4560, 128
        %4850 = vxpose.xlu0.b32.cont [9/16] %v4565, 128
        %4851 = vxpose.xlu0.b32.cont [10/16] %v4570, 128
        %4852 = vxpose.xlu0.b32.cont [11/16] %v4575, 128
        %4853 = vxpose.xlu0.b32.cont [12/16] %v4580, 128
        %4854 = vxpose.xlu0.b32.cont [13/16] %v4585, 128
        %4855 = vxpose.xlu0.b32.cont [14/16] %v4590, 128
        %4856 = vxpose.xlu0.b32.cont [15/16] %v4595, 128
        %4857 = vxpose.xlu0.b32.end [16/16] %v4600, 128
        %v4858 = vpop.trf.xlu0
        %v4859 = vpop.trf.xlu0
        %v4860 = vpop.trf.xlu0
        %v4861 = vpop.trf.xlu0
        %v4862 = vpop.trf.xlu0
        %v4863 = vpop.trf.xlu0
        %v4864 = vpop.trf.xlu0
        %v4865 = vpop.trf.xlu0
        %v4866 = vpop.trf.xlu0
        %v4867 = vpop.trf.xlu0
        %v4868 = vpop.trf.xlu0
        %v4869 = vpop.trf.xlu0
        %v4870 = vpop.trf.xlu0
        %v4871 = vpop.trf.xlu0
        %v4872 = vpop.trf.xlu0
        %v4873 = vpop.trf.xlu0
        %4874 = vxpose.xlu0.b32.start [1/16] %v4605, 128
        %4875 = vxpose.xlu0.b32.cont [2/16] %v4610, 128
        %4876 = vxpose.xlu0.b32.cont [3/16] %v4615, 128
        %4877 = vxpose.xlu0.b32.cont [4/16] %v4620, 128
        %4878 = vxpose.xlu0.b32.cont [5/16] %v4625, 128
        %4879 = vxpose.xlu0.b32.cont [6/16] %v4630, 128
        %4880 = vxpose.xlu0.b32.cont [7/16] %v4635, 128
        %4881 = vxpose.xlu0.b32.cont [8/16] %v4640, 128
        %4882 = vxpose.xlu0.b32.cont [9/16] %v4645, 128
        %4883 = vxpose.xlu0.b32.cont [10/16] %v4650, 128
        %4884 = vxpose.xlu0.b32.cont [11/16] %v4655, 128
        %4885 = vxpose.xlu0.b32.cont [12/16] %v4660, 128
        %4886 = vxpose.xlu0.b32.cont [13/16] %v4665, 128
        %4887 = vxpose.xlu0.b32.cont [14/16] %v4670, 128
        %4888 = vxpose.xlu0.b32.cont [15/16] %v4675, 128
        %4889 = vxpose.xlu0.b32.end [16/16] %v4680, 128
        %v4890 = vpop.trf.xlu0
        %v4891 = vpop.trf.xlu0
        %v4892 = vpop.trf.xlu0
        %v4893 = vpop.trf.xlu0
        %v4894 = vpop.trf.xlu0
        %v4895 = vpop.trf.xlu0
        %v4896 = vpop.trf.xlu0
        %v4897 = vpop.trf.xlu0
        %v4898 = vpop.trf.xlu0
        %v4899 = vpop.trf.xlu0
        %v4900 = vpop.trf.xlu0
        %v4901 = vpop.trf.xlu0
        %v4902 = vpop.trf.xlu0
        %v4903 = vpop.trf.xlu0
        %v4904 = vpop.trf.xlu0
        %v4905 = vpop.trf.xlu0
        %4906 = vxpose.xlu0.b32.start [1/16] %v4685, 128
        %4907 = vxpose.xlu0.b32.cont [2/16] %v4690, 128
        %4908 = vxpose.xlu0.b32.cont [3/16] %v4695, 128
        %4909 = vxpose.xlu0.b32.cont [4/16] %v4700, 128
        %4910 = vxpose.xlu0.b32.cont [5/16] %v4705, 128
        %4911 = vxpose.xlu0.b32.cont [6/16] %v4710, 128
        %4912 = vxpose.xlu0.b32.cont [7/16] %v4715, 128
        %4913 = vxpose.xlu0.b32.cont [8/16] %v4720, 128
        %4914 = vxpose.xlu0.b32.cont [9/16] %v4725, 128
        %4915 = vxpose.xlu0.b32.cont [10/16] %v4730, 128
        %4916 = vxpose.xlu0.b32.cont [11/16] %v4735, 128
        %4917 = vxpose.xlu0.b32.cont [12/16] %v4740, 128
        %4918 = vxpose.xlu0.b32.cont [13/16] %v4745, 128
        %4919 = vxpose.xlu0.b32.cont [14/16] %v4750, 128
        %4920 = vxpose.xlu0.b32.cont [15/16] %v4755, 128
        %4921 = vxpose.xlu0.b32.end [16/16] %v4760, 128
        %v4922 = vpop.trf.xlu0
        %v4923 = vpop.trf.xlu0
        %v4924 = vpop.trf.xlu0
        %v4925 = vpop.trf.xlu0
        %v4926 = vpop.trf.xlu0
        %v4927 = vpop.trf.xlu0
        %v4928 = vpop.trf.xlu0
        %v4929 = vpop.trf.xlu0
        %v4930 = vpop.trf.xlu0
        %v4931 = vpop.trf.xlu0
        %v4932 = vpop.trf.xlu0
        %v4933 = vpop.trf.xlu0
        %v4934 = vpop.trf.xlu0
        %v4935 = vpop.trf.xlu0
        %v4936 = vpop.trf.xlu0
        %v4937 = vpop.trf.xlu0
        %4938 = vxpose.xlu0.b32.start [1/16] %v4765, 128
        %4939 = vxpose.xlu0.b32.cont [2/16] %v4770, 128
        %4940 = vxpose.xlu0.b32.cont [3/16] %v4775, 128
        %4941 = vxpose.xlu0.b32.cont [4/16] %v4780, 128
        %4942 = vxpose.xlu0.b32.cont [5/16] %v4785, 128
        %4943 = vxpose.xlu0.b32.cont [6/16] %v4790, 128
        %4944 = vxpose.xlu0.b32.cont [7/16] %v4795, 128
        %4945 = vxpose.xlu0.b32.cont [8/16] %v4800, 128
        %4946 = vxpose.xlu0.b32.cont [9/16] %v4805, 128
        %4947 = vxpose.xlu0.b32.cont [10/16] %v4810, 128
        %4948 = vxpose.xlu0.b32.cont [11/16] %v4815, 128
        %4949 = vxpose.xlu0.b32.cont [12/16] %v4820, 128
        %4950 = vxpose.xlu0.b32.cont [13/16] %v4825, 128
        %4951 = vxpose.xlu0.b32.cont [14/16] %v4830, 128
        %4952 = vxpose.xlu0.b32.cont [15/16] %v4835, 128
        %4953 = vxpose.xlu0.b32.end [16/16] %v4840, 128
        %v4954 = vpop.trf.xlu0
        %v4955 = vpop.trf.xlu0
        %v4956 = vpop.trf.xlu0
        %v4957 = vpop.trf.xlu0
        %v4958 = vpop.trf.xlu0
        %v4959 = vpop.trf.xlu0
        %v4960 = vpop.trf.xlu0
        %v4961 = vpop.trf.xlu0
        %v4962 = vpop.trf.xlu0
        %v4963 = vpop.trf.xlu0
        %v4964 = vpop.trf.xlu0
        %v4965 = vpop.trf.xlu0
        %v4966 = vpop.trf.xlu0
        %v4967 = vpop.trf.xlu0
        %v4968 = vpop.trf.xlu0
        %v4969 = vpop.trf.xlu0
        %v4974 = vcombine.low %v4858, %v4890
        %v4975 = vcombine.low %v4922, %v4954
        %v4977 = vunpack.c.l.s4 1966171168
        %v4978 = vunpack.c.0.s8 %v4977
        %v4979 = vlaneseq
        %v4980 = vshrl.u32 %v4979, 7
        %v4981 = vsub.s32 %v4978, %v4980
        %v4982 = vrot.slane %v4974, %v4981
        %v4984 = vunpack.c.l.s4 1966171168
        %v4985 = vunpack.c.0.s8 %v4984
        %v4986 = vlaneseq
        %v4987 = vshrl.u32 %v4986, 7
        %v4988 = vsub.s32 %v4985, %v4987
        %v4989 = vrot.slane %v4975, %v4988
        %v4990 = vcombine.low %v4982, %v4989
        %v4992 = vunpack.c.l.s4 1966171168
        %v4993 = vunpack.c.0.s8 %v4992
        %v4994 = vlaneseq
        %v4995 = vshrl.u32 %v4994, 7
        %v4996 = vsub.s32 %v4993, %v4995
        %v4997 = vrot.slane %v4990, %v4996
        %v4999 = vlaneseq
        %vm5000 = vcmp.ge.s32.totalorder %v4999, 0
        %vm5001 = vcmp.lt.s32.totalorder %v4999, 512
        %vm5002 = vmand %vm5000, %vm5001
        %5003 = vst.msk [vmem:[%s153] sm:$0xf] %vm5002, %v4997
        %s5004 = sand.u32 %s76, 1
        %s5005 = scalar_lea.sflag [#allocation3], %s5004
        %s5006 = sand.u32 %s76, 1
        %s5007 = smul.addr %s5006, 4
        %s5008 = scalar_lea.vmem [#allocation2], %s5007
        // Predicated region
        $region29: #{tpu_custom_call.1} parent=27 // pred_check
          %p5009 = pneg %p86
        $region30: #{tpu_custom_call.1} parent=27 // pred_check_branch
          %5011 = sbr.rel (%p5009) target = $region32
        $region31: #{tpu_custom_call.1} parent=27 // pred_region
          %s5012 = smul.u32 4, %s16
          %s5014 = ssub.s32 64, 64
          %5015 = vsyncadd %s5005, %s5014
          %s5016 = smul.addr %s5012, 16
          %s5017 = scalar_lea.hbm %s2, %s5016
          %s5019 = sshll.u32 %s5008, 4
          %s5020 = int_to_ptr.vmem [resolvable:$true] %s5019
          %5022 = dma.vmem_to_hbm [thread:$0]  %s5020, 64, %s5017, %s5005
        $region32: #{tpu_custom_call.1} parent=27 // pred_fallthru
          _
      $region28: #{tpu_custom_call.1} parent=5 // pred_fallthru
        _
      %p5023 = scmp.le.s32.totalorder 2, %s11
      // Predicated region
      $region33: #{tpu_custom_call.1} parent=5 // pred_check
        %p5024 = pneg %p5023
      $region34: #{tpu_custom_call.1} parent=5 // pred_check_branch
        %5026 = sbr.rel (%p5024) target = $region36
      $region35: #{tpu_custom_call.1} parent=5 // pred_region
        %s5027 = ssub.s32 %s11, 2
        // Predicated region
        $region37: #{tpu_custom_call.1} parent=35 // pred_check
          %p5028 = pneg %p92
        $region38: #{tpu_custom_call.1} parent=35 // pred_check_branch
          %5030 = sbr.rel (%p5028) target = $region40
        $region39: #{tpu_custom_call.1} parent=35 // pred_region
          %s5031 = sand.u32 %s77, 1
          %s5032 = scalar_lea.sflag [#allocation3], %s5031
          %s5033 = sand.u32 %s77, 1
          %s5034 = smul.addr %s5033, 4
          %s5035 = scalar_lea.vmem [#allocation2], %s5034
          %5036 = dma.done %s5032, 64
        $region40: #{tpu_custom_call.1} parent=35 // pred_fallthru
          _
      $region36: #{tpu_custom_call.1} parent=5 // pred_fallthru
        _
    $region6: #{tpu_custom_call.1} parent=1 // loop_footer
      %s15 = sadd.s32 1, %s11
    $region7: #{tpu_custom_call.1} parent=1 // loop_footer_branch
      %10 = sbr.rel target = $region3
    $region8: #{tpu_custom_call.1} parent=1 // loop_exit
      _
    %5037 = vsyncpa [#allocation3], 1
    %s5038 = scalar_lea.sflag [#allocation3], 1
    %5039 = vsyncpa %s5038, 1

</llo_original>
